<compile_context>
chip_gen: v6e
topology: v6e:2x2x1
jax: 0.10.0
libtpu: 0.0.40
codegen_flags: <defaults>
</compile_context>

<pallas_src>
import functools

import jax
import jax.numpy as jnp
from jax.experimental import pallas as pl
from jax.experimental.pallas import tpu as pltpu

LANE = 128


def _round_up(v, m):
    return (v + m - 1) // m * m


def _pick_tile(m, target=512):
    """Largest sublane-aligned divisor of m that is <= target; bounded fallbacks."""
    for cand in range(min(m, target), 7, -1):
        if m % cand == 0 and cand % 8 == 0:
            return cand
    if m <= 1024:                      # full-extent block is legal and bounded
        return m
    for cand in range(min(m, target), 0, -1):   # last resort: bounded masked tile
        if m % cand == 0:
            return cand
    return m


def _cparams(*semantics):
    return pltpu.CompilerParams(
        dimension_semantics=semantics,
        vmem_limit_bytes=32 * 1024 * 1024,
    )


# ---------------- in-kernel nonlinearities ----------------
def _hswish(x):
    return x * jnp.clip(x + 3.0, 0.0, 6.0) * (1.0 / 6.0)


def _hsigmoid(x):
    return jnp.clip(x + 3.0, 0.0, 6.0) * (1.0 / 6.0)


def _relu(x):
    return jnp.maximum(x, 0.0)


# -------- kernel 1: 1x1 expand conv (BN folded into weight) + bias + hswish --------
def _expand_kernel(x_ref, w_ref, b_ref, o_ref):
    y = jnp.dot(x_ref[...], w_ref[...], preferred_element_type=jnp.float32)
    o_ref[...] = _hswish(y + b_ref[...]).astype(o_ref.dtype)


def expand_conv(x2d, w, b, tm):
    m, cin = x2d.shape               # cin kept un-padded (full-extent K block)
    cexp_p = w.shape[1]
    return pl.pallas_call(
        _expand_kernel,
        out_shape=jax.ShapeDtypeStruct((m, cexp_p), jnp.bfloat16),
        grid=(m // tm,),
        in_specs=[
            pl.BlockSpec((tm, cin), lambda i: (i, 0)),
            pl.BlockSpec((cin, cexp_p), lambda i: (0, 0)),   # weight: VMEM-resident
            pl.BlockSpec((1, cexp_p), lambda i: (0, 0)),
        ],
        out_specs=pl.BlockSpec((tm, cexp_p), lambda i: (i, 0)),
        compiler_params=_cparams("parallel"),
    )(x2d, w, b)


# -------- kernel 2: depthwise kxk conv (+ bias + hswish) --------
# bf16 halo scratch (border zeroed, interior copied once); register accumulation per
# 8-row output strip; one store per strip; stride handled by single decimation.
def _dwconv_kernel(x_ref, w_ref, b_ref, o_ref, xp_ref, *, ksize, stride):
    pad = ksize // 2
    hi, wi = x_ref.shape[1], x_ref.shape[2]
    _, ho, wo, cb = o_ref.shape
    hp, wp = hi + 2 * pad, wi + 2 * pad

    # ---- bf16 halo: zero only the border rows/cols, copy the interior once ----
    zrow = jnp.zeros((pad, wp, cb), xp_ref.dtype)
    xp_ref[0:pad] = zrow
    xp_ref[pad + hi:hp] = zrow
    zcol = jnp.zeros((hi, pad, cb), xp_ref.dtype)
    xp_ref[pad:pad + hi, 0:pad] = zcol
    xp_ref[pad:pad + hi, pad + wi:wp] = zcol
    xp_ref[pad:pad + hi, pad:pad + wi] = x_ref[0]

    wk = w_ref[...]                  # (K, K, cb) f32, BN scale folded
    bias = b_ref[...]                # (1, cb) f32

    RS = 8                           # output rows per strip (one vreg-resident acc)
    for r0 in range(0, ho, RS):      # static unroll (shapes known at trace time)
        rs = min(RS, ho - r0)
        acc = None
        for ky in range(ksize):
            lo = r0 * stride + ky
            span = (rs - 1) * stride + 1
            rows = xp_ref[lo:lo + span]          # (span, wp, cb) bf16, loaded once per ky
            if stride != 1:
                rows = rows[::stride]            # decimate rows once (leading dim)
            rows = rows.astype(jnp.float32)
            for kx in range(ksize):
                patch = rows[:, kx:kx + wi, :]   # stride-1 columns; decimate at write
                term = patch * wk[ky, kx]
                acc = term if acc is None else acc + term
        y = _hswish(acc + bias)
        if stride != 1:
            y = y[:, ::stride, :][:, :wo, :]
        o_ref[0, r0:r0 + rs] = y.astype(o_ref.dtype)


def depthwise_conv(x_nhwc, w_kkc, b, ksize, stride):
    n, h, w, c_p = x_nhwc.shape
    pad = ksize // 2
    ho = (h + 2 * pad - ksize) // stride + 1
    wo = (w + 2 * pad - ksize) // stride + 1
    cb = LANE
    kern = functools.partial(_dwconv_kernel, ksize=ksize, stride=stride)
    return pl.pallas_call(
        kern,
        out_shape=jax.ShapeDtypeStruct((n, ho, wo, c_p), jnp.bfloat16),
        grid=(n, c_p // cb),
        in_specs=[
            pl.BlockSpec((1, h, w, cb), lambda i, c: (i, 0, 0, c)),
            pl.BlockSpec((ksize, ksize, cb), lambda i, c: (0, 0, c)),
            pl.BlockSpec((1, cb), lambda i, c: (0, c)),
        ],
        out_specs=pl.BlockSpec((1, ho, wo, cb), lambda i, c: (i, 0, 0, c)),
        scratch_shapes=[
            pltpu.VMEM((h + 2 * pad, w + 2 * pad, cb), jnp.bfloat16),  # bf16 halo only
        ],
        compiler_params=_cparams("parallel", "parallel"),
    )(x_nhwc, w_kkc, b)


# -------- kernel 3: 1x1 project conv (+ bias) fused with SE global average pool --------
def _project_pool_kernel(x_ref, w_ref, b_ref, o_ref, pool_ref, *, inv_hw):
    y = jnp.dot(x_ref[0], w_ref[...], preferred_element_type=jnp.float32) + b_ref[...]
    o_ref[0] = y.astype(o_ref.dtype)

    @pl.when(pl.program_id(1) == 0)
    def _():
        pool_ref[...] = jnp.zeros_like(pool_ref)

    pool_ref[...] += (jnp.sum(y, axis=0, keepdims=True) * inv_hw)[None]


def project_conv_pool(x3d, w, b, tm):
    n, msp, cexp_p = x3d.shape
    cout_p = w.shape[1]
    kern = functools.partial(_project_pool_kernel, inv_hw=1.0 / float(msp))
    return pl.pallas_call(
        kern,
        out_shape=(jax.ShapeDtypeStruct((n, msp, cout_p), jnp.bfloat16),
                   jax.ShapeDtypeStruct((n, 1, cout_p), jnp.float32)),
        grid=(n, msp // tm),
        in_specs=[
            pl.BlockSpec((1, tm, cexp_p), lambda i, t: (i, t, 0)),
            pl.BlockSpec((cexp_p, cout_p), lambda i, t: (0, 0)),
            pl.BlockSpec((1, cout_p), lambda i, t: (0, 0)),
        ],
        out_specs=(pl.BlockSpec((1, tm, cout_p), lambda i, t: (i, t, 0)),
                   pl.BlockSpec((1, 1, cout_p), lambda i, t: (i, 0, 0))),  # accumulator
        compiler_params=_cparams("parallel", "arbitrary"),
    )(x3d, w, b)


# ---------------- SE gate (squeeze -> excite): tiny FCs, plain XLA ----------------
def se_gate(pooled, w1, b1, w2, b2):
    # Two (n x <=128 x <=128) matmuls: a dedicated kernel launch costs more than the math.
    p = pooled[:, 0, :]
    h = _relu(p @ w1 + b1)
    g = _hsigmoid(h @ w2 + b2)
    return g[:, None, :]


# -------- kernels 4: SE scale + (fused shortcut 1x1 conv | identity | nothing) --------
def _fuse_shortcut_kernel(y_ref, g_ref, x_ref, w_ref, b_ref, o_ref):
    short = jnp.dot(x_ref[0], w_ref[...], preferred_element_type=jnp.float32) + b_ref[...]
    o_ref[0] = (y_ref[0].astype(jnp.float32) * g_ref[0] + short).astype(o_ref.dtype)


def _fuse_identity_kernel(y_ref, g_ref, x_ref, o_ref):
    o_ref[0] = (y_ref[0].astype(jnp.float32) * g_ref[0]
                + x_ref[0].astype(jnp.float32)).astype(o_ref.dtype)


def _fuse_plain_kernel(y_ref, g_ref, o_ref):
    o_ref[0] = (y_ref[0].astype(jnp.float32) * g_ref[0]).astype(o_ref.dtype)


def se_scale_shortcut_add(out3, gate, x3d, wsc, bsc, tm):
    n, msp, cout_p = out3.shape
    cin = x3d.shape[-1]                       # un-padded shortcut K dim
    return pl.pallas_call(
        _fuse_shortcut_kernel,
        out_shape=jax.ShapeDtypeStruct((n, msp, cout_p), jnp.bfloat16),
        grid=(n, msp // tm),
        in_specs=[
            pl.BlockSpec((1, tm, cout_p), lambda i, t: (i, t, 0)),
            pl.BlockSpec((1, 1, cout_p), lambda i, t: (i, 0, 0)),
            pl.BlockSpec((1, tm, cin), lambda i, t: (i, t, 0)),
            pl.BlockSpec((cin, cout_p), lambda i, t: (0, 0)),
            pl.BlockSpec((1, cout_p), lambda i, t: (0, 0)),
        ],
        out_specs=pl.BlockSpec((1, tm, cout_p), lambda i, t: (i, t, 0)),
        compiler_params=_cparams("parallel", "parallel"),
    )(out3, gate, x3d, wsc, bsc)


def se_scale_identity_add(out3, gate, x3d, tm):
    n, msp, cout_p = out3.shape
    return pl.pallas_call(
        _fuse_identity_kernel,
        out_shape=jax.ShapeDtypeStruct((n, msp, cout_p), jnp.bfloat16),
        grid=(n, msp // tm),
        in_specs=[
            pl.BlockSpec((1, tm, cout_p), lambda i, t: (i, t, 0)),
            pl.BlockSpec((1, 1, cout_p), lambda i, t: (i, 0, 0)),
            pl.BlockSpec((1, tm, cout_p), lambda i, t: (i, t, 0)),
        ],
        out_specs=pl.BlockSpec((1, tm, cout_p), lambda i, t: (i, t, 0)),
        compiler_params=_cparams("parallel", "parallel"),
    )(out3, gate, x3d)


def se_scale(out3, gate, tm):
    n, msp, cout_p = out3.shape
    return pl.pallas_call(
        _fuse_plain_kernel,
        out_shape=jax.ShapeDtypeStruct((n, msp, cout_p), jnp.bfloat16),
        grid=(n, msp // tm),
        in_specs=[
            pl.BlockSpec((1, tm, cout_p), lambda i, t: (i, t, 0)),
            pl.BlockSpec((1, 1, cout_p), lambda i, t: (i, 0, 0)),
        ],
        out_specs=pl.BlockSpec((1, tm, cout_p), lambda i, t: (i, t, 0)),
        compiler_params=_cparams("parallel", "parallel"),
    )(out3, gate)


# ---------------- parameters (deterministic, synthetic) ----------------
def _fold_bn(gamma, beta, mean, var, eps=1e-5):
    scale = gamma / jnp.sqrt(var + eps)
    bias = beta - mean * scale
    return scale, bias


def init_params(key, cin, cexp, cout, ksize, reduction=4):
    cred = max(1, cout // reduction)
    keys = jax.random.split(key, 12)

    def conv(k, shape):
        return 0.1 * jax.random.normal(k, shape, jnp.float32)

    def bn(k, c):
        k1, k2, k3, k4 = jax.random.split(k, 4)
        gamma = 1.0 + 0.1 * jax.random.normal(k1, (c,), jnp.float32)
        beta = 0.1 * jax.random.normal(k2, (c,), jnp.float32)
        mean = 0.1 * jax.random.normal(k3, (c,), jnp.float32)
        var = 1.0 + 0.1 * jnp.abs(jax.random.normal(k4, (c,), jnp.float32))
        return _fold_bn(gamma, beta, mean, var)

    p = {}
    p["w1"] = conv(keys[0], (cin, cexp))                 # expand 1x1
    p["s1"], p["b1"] = bn(keys[1], cexp)
    p["wdw"] = conv(keys[2], (ksize, ksize, cexp))       # depthwise kxk
    p["s2"], p["b2"] = bn(keys[3], cexp)
    p["w3"] = conv(keys[4], (cexp, cout))                # project 1x1
    p["s3"], p["b3"] = bn(keys[5], cout)
    p["wse1"] = conv(keys[6], (cout, cred))              # SE squeeze
    p["sse1"], p["bse1"] = bn(keys[7], cred)
    p["wse2"] = conv(keys[8], (cred, cout))              # SE excite
    p["sse2"], p["bse2"] = bn(keys[9], cout)
    p["wsc"] = conv(keys[10], (cin, cout))               # shortcut 1x1
    p["ssc"], p["bsc"] = bn(keys[11], cout)
    return p


def fold_and_pad_params(p):
    """Fold BN scales into conv weights. Pad only N-side channel dims (cexp/cout/cred)
    to lane width; small K dims (cin) stay un-padded so kernels don't read 16x the
    HBM bytes of x. Padded columns/biases are exactly zero (keeps SE gate harmless)."""
    cin, cexp = p["w1"].shape
    cout = p["w3"].shape[1]
    cred = p["wse1"].shape[1]
    cexp_p, cout_p, cred_p = (_round_up(c, LANE) for c in (cexp, cout, cred))

    def padw(w, r, c):
        return jnp.pad(w, ((0, r - w.shape[0]), (0, c - w.shape[1])))

    def padb(v, c):
        return jnp.pad(v, (0, c - v.shape[0])).reshape(1, c)

    fp = {}
    fp["w1"] = padw(p["w1"] * p["s1"][None, :], cin, cexp_p).astype(jnp.bfloat16)
    fp["b1"] = padb(p["b1"], cexp_p)
    fp["wdw"] = jnp.pad(p["wdw"] * p["s2"][None, None, :],
                        ((0, 0), (0, 0), (0, cexp_p - cexp)))
    fp["b2"] = padb(p["b2"], cexp_p)
    fp["w3"] = padw(p["w3"] * p["s3"][None, :], cexp_p, cout_p).astype(jnp.bfloat16)
    fp["b3"] = padb(p["b3"], cout_p)
    fp["wse1"] = padw(p["wse1"] * p["sse1"][None, :], cout_p, cred_p)
    fp["bse1"] = padb(p["bse1"], cred_p)
    fp["wse2"] = padw(p["wse2"] * p["sse2"][None, :], cred_p, cout_p)
    fp["bse2"] = padb(p["bse2"], cout_p)
    fp["wsc"] = padw(p["wsc"] * p["ssc"][None, :], cin, cout_p).astype(jnp.bfloat16)
    fp["bsc"] = padb(p["bsc"], cout_p)
    return fp


# ---------------- Block forward (Pallas) ----------------
def block_forward(x_nchw, fp, *, cout, ksize=3, stride=1):
    # TODO(synk): in a full network keep activations NHWC end-to-end; the transpose is
    #             only here because the PyTorch module boundary is NCHW.
    x = jnp.transpose(x_nchw, (0, 2, 3, 1)).astype(jnp.float32)   # NCHW -> NHWC
    n, h, w, cin = x.shape
    cexp_p = fp["w1"].shape[1]
    cout_p = fp["w3"].shape[1]

    xb = x.astype(jnp.bfloat16)        # bf16 activations; cin NOT padded (small K dim)

    # conv1 (1x1 expand) + bn1 + hswish
    m = n * h * w
    tm1 = _pick_tile(m)
    out1 = expand_conv(xb.reshape(m, cin), fp["w1"], fp["b1"], tm1)
    out1 = out1.reshape(n, h, w, cexp_p)

    # conv2 (depthwise kxk, stride) + bn2 + hswish
    out2 = depthwise_conv(out1, fp["wdw"], fp["b2"], ksize, stride)
    _, ho, wo, _ = out2.shape
    msp = ho * wo
    tm2 = _pick_tile(msp)

    # conv3 (1x1 project) + bn3, fused with the SE global-average pool
    out3, pooled = project_conv_pool(out2.reshape(n, msp, cexp_p), fp["w3"], fp["b3"], tm2)

    # SE squeeze/excite gate (tiny -> plain XLA)
    gate = se_gate(pooled, fp["wse1"], fp["bse1"], fp["wse2"], fp["bse2"])

    # SE scale + residual; shortcut 1x1 conv fused into the same kernel
    if stride == 1:
        if cin == cout:
            x3d = jnp.pad(xb, ((0, 0), (0, 0), (0, 0), (0, cout_p - cin)))
            out = se_scale_identity_add(out3, gate, x3d.reshape(n, h * w, cout_p), tm2)
        else:
            out = se_scale_shortcut_add(out3, gate, xb.reshape(n, h * w, cin),
                                        fp["wsc"], fp["bsc"], tm2)
    else:
        out = se_scale(out3, gate, tm2)

    out = out.reshape(n, ho, wo, cout_p)[..., :cout]     # strip channel padding
    return jnp.transpose(out, (0, 3, 1, 2)).astype(jnp.float32)   # NHWC -> NCHW


# ---------------- pure-JAX reference (same math, f32) ----------------
def reference_forward(x_nchw, p, ksize=3, stride=1):
    x = jnp.transpose(x_nchw, (0, 2, 3, 1)).astype(jnp.float32)
    n, h, w, cin = x.shape
    cout = p["w3"].shape[1]
    out1 = _hswish(jnp.einsum("nhwc,ce->nhwe", x, p["w1"]) * p["s1"] + p["b1"])
    pad = ksize // 2
    xp = jnp.pad(out1, ((0, 0), (pad, pad), (pad, pad), (0, 0)))
    ho = (h + 2 * pad - ksize) // stride + 1
    wo = (w + 2 * pad - ksize) // stride + 1
    acc = jnp.zeros((n, ho, wo, out1.shape[-1]), jnp.float32)
    for ky in range(ksize):
        for kx in range(ksize):
            patch = xp[:, ky:ky + (ho - 1) * stride + 1:stride,
                       kx:kx + (wo - 1) * stride + 1:stride, :]
            acc = acc + patch * p["wdw"][ky, kx]
    out2 = _hswish(acc * p["s2"] + p["b2"])
    out3 = jnp.einsum("nhwc,ce->nhwe", out2, p["w3"]) * p["s3"] + p["b3"]
    pooled = out3.mean(axis=(1, 2))
    hidden = _relu(pooled @ p["wse1"] * p["sse1"] + p["bse1"])
    gate = _hsigmoid(hidden @ p["wse2"] * p["sse2"] + p["bse2"])
    out = out3 * gate[:, None, None, :]
    if stride == 1:
        if cin == cout:
            out = out + x
        else:
            out = out + (jnp.einsum("nhwc,ce->nhwe", x, p["wsc"]) * p["ssc"] + p["bsc"])
    return jnp.transpose(out, (0, 3, 1, 2))


if __name__ == "__main__":
    N, Cin, H, W = 2, 8, 16, 16
    Cexp, Cout, K, STRIDE = 16, 12, 3, 1

    key = jax.random.PRNGKey(0)
    kx, kp = jax.random.split(key)
    x = jax.random.normal(kx, (N, Cin, H, W), jnp.float32)   # PyTorch-style NCHW input
    params = init_params(kp, Cin, Cexp, Cout, K)
    fparams = fold_and_pad_params(params)

    fwd = jax.jit(functools.partial(block_forward, cout=Cout, ksize=K, stride=STRIDE))
    out = jax.block_until_ready(fwd(x, fparams))
    ref = jax.block_until_ready(reference_forward(x, params, ksize=K, stride=STRIDE))

    assert out.shape == (N, Cout, H, W), out.shape
    if not jnp.allclose(out, ref, atol=5e-2, rtol=5e-2):
        raise AssertionError(
            f"mismatch vs reference, max abs err {float(jnp.max(jnp.abs(out - ref)))}"
        )
    print("KERNEL_OK")
</pallas_src>

<mosaic_0001>
module attributes {stable_mosaic.version = 11 : i64} {
  func.func @_dwconv_kernel(%arg0: i32, %arg1: i32, %arg2: memref<1x16x16x128xbf16, #tpu.memory_space<vmem>>, %arg3: memref<3x3x128xf32, #tpu.memory_space<vmem>>, %arg4: memref<1x128xf32, #tpu.memory_space<vmem>>, %arg5: memref<1x16x16x128xbf16, #tpu.memory_space<vmem>>, %arg6: memref<18x18x128xbf16, #tpu.memory_space<vmem>>) attributes {dimension_semantics = [#tpu.dimension_semantics<parallel>, #tpu.dimension_semantics<parallel>], iteration_bounds = array<i64: 2, 1>, scalar_prefetch = 0 : i64, scratch_operands = 1 : i64, tpu.core_type = #tpu.core_type<tc>, window_params = [{transform_indices = @transform_0, window_bounds = array<i64: 1, 16, 16, 128>}, {transform_indices = @transform_1, window_bounds = array<i64: 3, 3, 128>}, {transform_indices = @transform_2, window_bounds = array<i64: 1, 128>}, {transform_indices = @transform_3, window_bounds = array<i64: 1, 16, 16, 128>}]} {
    %cst = arith.constant 0.000000e+00 : bf16
    %0 = vector.broadcast %cst : bf16 to vector<1x18x128xbf16>
    %c0 = arith.constant 0 : index
    %c0_0 = arith.constant 0 : index
    %c0_1 = arith.constant 0 : index
    %1 = vector.load %arg6[%c0, %c0_0, %c0_1] : memref<18x18x128xbf16, #tpu.memory_space<vmem>>, vector<1x18x128xbf16>
    tpu.vector_store %arg6[%c0, %c0_0, %c0_1], %0 {strides = array<i32>} : memref<18x18x128xbf16, #tpu.memory_space<vmem>>, vector<1x18x128xbf16>,
    %c17 = arith.constant 17 : index
    %c0_2 = arith.constant 0 : index
    %c0_3 = arith.constant 0 : index
    %2 = vector.load %arg6[%c17, %c0_2, %c0_3] : memref<18x18x128xbf16, #tpu.memory_space<vmem>>, vector<1x18x128xbf16>
    tpu.vector_store %arg6[%c17, %c0_2, %c0_3], %0 {strides = array<i32>} : memref<18x18x128xbf16, #tpu.memory_space<vmem>>, vector<1x18x128xbf16>,
    %cst_4 = arith.constant 0.000000e+00 : bf16
    %3 = vector.broadcast %cst_4 : bf16 to vector<16x1x128xbf16>
    %c1 = arith.constant 1 : index
    %c0_5 = arith.constant 0 : index
    %c0_6 = arith.constant 0 : index
    %4 = vector.load %arg6[%c1, %c0_5, %c0_6] : memref<18x18x128xbf16, #tpu.memory_space<vmem>>, vector<16x1x128xbf16>
    tpu.vector_store %arg6[%c1, %c0_5, %c0_6], %3 {strides = array<i32>} : memref<18x18x128xbf16, #tpu.memory_space<vmem>>, vector<16x1x128xbf16>,
    %c1_7 = arith.constant 1 : index
    %c17_8 = arith.constant 17 : index
    %c0_9 = arith.constant 0 : index
    %5 = vector.load %arg6[%c1_7, %c17_8, %c0_9] : memref<18x18x128xbf16, #tpu.memory_space<vmem>>, vector<16x1x128xbf16>
    tpu.vector_store %arg6[%c1_7, %c17_8, %c0_9], %3 {strides = array<i32>} : memref<18x18x128xbf16, #tpu.memory_space<vmem>>, vector<16x1x128xbf16>,
    %c0_10 = arith.constant 0 : index
    %c0_11 = arith.constant 0 : index
    %c0_12 = arith.constant 0 : index
    %c0_13 = arith.constant 0 : index
    %6 = vector.load %arg2[%c0_10, %c0_11, %c0_12, %c0_13] : memref<1x16x16x128xbf16, #tpu.memory_space<vmem>>, vector<1x16x16x128xbf16>
    %7 = vector.shape_cast %6 : vector<1x16x16x128xbf16> to vector<16x16x128xbf16>
    %c1_14 = arith.constant 1 : index
    %c1_15 = arith.constant 1 : index
    %c0_16 = arith.constant 0 : index
    %8 = vector.load %arg6[%c1_14, %c1_15, %c0_16] : memref<18x18x128xbf16, #tpu.memory_space<vmem>>, vector<16x16x128xbf16>
    tpu.vector_store %arg6[%c1_14, %c1_15, %c0_16], %7 {strides = array<i32>} : memref<18x18x128xbf16, #tpu.memory_space<vmem>>, vector<16x16x128xbf16>,
    %c0_17 = arith.constant 0 : index
    %c0_18 = arith.constant 0 : index
    %c0_19 = arith.constant 0 : index
    %9 = vector.load %arg3[%c0_17, %c0_18, %c0_19] : memref<3x3x128xf32, #tpu.memory_space<vmem>>, vector<3x3x128xf32>
    %c0_20 = arith.constant 0 : index
    %c0_21 = arith.constant 0 : index
    %10 = vector.load %arg4[%c0_20, %c0_21] : memref<1x128xf32, #tpu.memory_space<vmem>>, vector<1x128xf32>
    %c0_22 = arith.constant 0 : index
    %c0_23 = arith.constant 0 : index
    %c0_24 = arith.constant 0 : index
    %11 = vector.load %arg6[%c0_22, %c0_23, %c0_24] : memref<18x18x128xbf16, #tpu.memory_space<vmem>>, vector<8x18x128xbf16>
    %12 = arith.extf %11 : vector<8x18x128xbf16> to vector<8x18x128xf32>
    %13 = vector.extract_strided_slice %12 {offsets = [0, 0, 0], sizes = [8, 16, 128], strides = [1, 1, 1]} : vector<8x18x128xf32> to vector<8x16x128xf32>
    %14 = vector.extract_strided_slice %9 {offsets = [0, 0, 0], sizes = [1, 1, 128], strides = [1, 1, 1]} : vector<3x3x128xf32> to vector<1x1x128xf32>
    %15 = vector.shape_cast %14 : vector<1x1x128xf32> to vector<128xf32>
    %16 = vector.shape_cast %15 : vector<128xf32> to vector<1x1x128xf32>
    %17 = vector.broadcast %16 : vector<1x1x128xf32> to vector<8x16x128xf32>
    %18 = arith.mulf %13, %17 : vector<8x16x128xf32>
    %19 = vector.extract_strided_slice %12 {offsets = [0, 1, 0], sizes = [8, 16, 128], strides = [1, 1, 1]} : vector<8x18x128xf32> to vector<8x16x128xf32>
    %20 = vector.extract_strided_slice %9 {offsets = [0, 1, 0], sizes = [1, 1, 128], strides = [1, 1, 1]} : vector<3x3x128xf32> to vector<1x1x128xf32>
    %21 = vector.shape_cast %20 : vector<1x1x128xf32> to vector<128xf32>
    %22 = vector.shape_cast %21 : vector<128xf32> to vector<1x1x128xf32>
    %23 = vector.broadcast %22 : vector<1x1x128xf32> to vector<8x16x128xf32>
    %24 = arith.mulf %19, %23 : vector<8x16x128xf32>
    %25 = arith.addf %18, %24 : vector<8x16x128xf32>
    %26 = vector.extract_strided_slice %12 {offsets = [0, 2, 0], sizes = [8, 16, 128], strides = [1, 1, 1]} : vector<8x18x128xf32> to vector<8x16x128xf32>
    %27 = vector.extract_strided_slice %9 {offsets = [0, 2, 0], sizes = [1, 1, 128], strides = [1, 1, 1]} : vector<3x3x128xf32> to vector<1x1x128xf32>
    %28 = vector.shape_cast %27 : vector<1x1x128xf32> to vector<128xf32>
    %29 = vector.shape_cast %28 : vector<128xf32> to vector<1x1x128xf32>
    %30 = vector.broadcast %29 : vector<1x1x128xf32> to vector<8x16x128xf32>
    %31 = arith.mulf %26, %30 : vector<8x16x128xf32>
    %32 = arith.addf %25, %31 : vector<8x16x128xf32>
    %c1_25 = arith.constant 1 : index
    %c0_26 = arith.constant 0 : index
    %c0_27 = arith.constant 0 : index
    %33 = vector.load %arg6[%c1_25, %c0_26, %c0_27] : memref<18x18x128xbf16, #tpu.memory_space<vmem>>, vector<8x18x128xbf16>
    %34 = arith.extf %33 : vector<8x18x128xbf16> to vector<8x18x128xf32>
    %35 = vector.extract_strided_slice %34 {offsets = [0, 0, 0], sizes = [8, 16, 128], strides = [1, 1, 1]} : vector<8x18x128xf32> to vector<8x16x128xf32>
    %36 = vector.extract_strided_slice %9 {offsets = [1, 0, 0], sizes = [1, 1, 128], strides = [1, 1, 1]} : vector<3x3x128xf32> to vector<1x1x128xf32>
    %37 = vector.shape_cast %36 : vector<1x1x128xf32> to vector<128xf32>
    %38 = vector.shape_cast %37 : vector<128xf32> to vector<1x1x128xf32>
    %39 = vector.broadcast %38 : vector<1x1x128xf32> to vector<8x16x128xf32>
    %40 = arith.mulf %35, %39 : vector<8x16x128xf32>
    %41 = arith.addf %32, %40 : vector<8x16x128xf32>
    %42 = vector.extract_strided_slice %34 {offsets = [0, 1, 0], sizes = [8, 16, 128], strides = [1, 1, 1]} : vector<8x18x128xf32> to vector<8x16x128xf32>
    %43 = vector.extract_strided_slice %9 {offsets = [1, 1, 0], sizes = [1, 1, 128], strides = [1, 1, 1]} : vector<3x3x128xf32> to vector<1x1x128xf32>
    %44 = vector.shape_cast %43 : vector<1x1x128xf32> to vector<128xf32>
    %45 = vector.shape_cast %44 : vector<128xf32> to vector<1x1x128xf32>
    %46 = vector.broadcast %45 : vector<1x1x128xf32> to vector<8x16x128xf32>
    %47 = arith.mulf %42, %46 : vector<8x16x128xf32>
    %48 = arith.addf %41, %47 : vector<8x16x128xf32>
    %49 = vector.extract_strided_slice %34 {offsets = [0, 2, 0], sizes = [8, 16, 128], strides = [1, 1, 1]} : vector<8x18x128xf32> to vector<8x16x128xf32>
    %50 = vector.extract_strided_slice %9 {offsets = [1, 2, 0], sizes = [1, 1, 128], strides = [1, 1, 1]} : vector<3x3x128xf32> to vector<1x1x128xf32>
    %51 = vector.shape_cast %50 : vector<1x1x128xf32> to vector<128xf32>
    %52 = vector.shape_cast %51 : vector<128xf32> to vector<1x1x128xf32>
    %53 = vector.broadcast %52 : vector<1x1x128xf32> to vector<8x16x128xf32>
    %54 = arith.mulf %49, %53 : vector<8x16x128xf32>
    %55 = arith.addf %48, %54 : vector<8x16x128xf32>
    %c2 = arith.constant 2 : index
    %c0_28 = arith.constant 0 : index
    %c0_29 = arith.constant 0 : index
    %56 = vector.load %arg6[%c2, %c0_28, %c0_29] : memref<18x18x128xbf16, #tpu.memory_space<vmem>>, vector<8x18x128xbf16>
    %57 = arith.extf %56 : vector<8x18x128xbf16> to vector<8x18x128xf32>
    %58 = vector.extract_strided_slice %57 {offsets = [0, 0, 0], sizes = [8, 16, 128], strides = [1, 1, 1]} : vector<8x18x128xf32> to vector<8x16x128xf32>
    %59 = vector.extract_strided_slice %9 {offsets = [2, 0, 0], sizes = [1, 1, 128], strides = [1, 1, 1]} : vector<3x3x128xf32> to vector<1x1x128xf32>
    %60 = vector.shape_cast %59 : vector<1x1x128xf32> to vector<128xf32>
    %61 = vector.shape_cast %60 : vector<128xf32> to vector<1x1x128xf32>
    %62 = vector.broadcast %61 : vector<1x1x128xf32> to vector<8x16x128xf32>
    %63 = arith.mulf %58, %62 : vector<8x16x128xf32>
    %64 = arith.addf %55, %63 : vector<8x16x128xf32>
    %65 = vector.extract_strided_slice %57 {offsets = [0, 1, 0], sizes = [8, 16, 128], strides = [1, 1, 1]} : vector<8x18x128xf32> to vector<8x16x128xf32>
    %66 = vector.extract_strided_slice %9 {offsets = [2, 1, 0], sizes = [1, 1, 128], strides = [1, 1, 1]} : vector<3x3x128xf32> to vector<1x1x128xf32>
    %67 = vector.shape_cast %66 : vector<1x1x128xf32> to vector<128xf32>
    %68 = vector.shape_cast %67 : vector<128xf32> to vector<1x1x128xf32>
    %69 = vector.broadcast %68 : vector<1x1x128xf32> to vector<8x16x128xf32>
    %70 = arith.mulf %65, %69 : vector<8x16x128xf32>
    %71 = arith.addf %64, %70 : vector<8x16x128xf32>
    %72 = vector.extract_strided_slice %57 {offsets = [0, 2, 0], sizes = [8, 16, 128], strides = [1, 1, 1]} : vector<8x18x128xf32> to vector<8x16x128xf32>
    %73 = vector.extract_strided_slice %9 {offsets = [2, 2, 0], sizes = [1, 1, 128], strides = [1, 1, 1]} : vector<3x3x128xf32> to vector<1x1x128xf32>
    %74 = vector.shape_cast %73 : vector<1x1x128xf32> to vector<128xf32>
    %75 = vector.shape_cast %74 : vector<128xf32> to vector<1x1x128xf32>
    %76 = vector.broadcast %75 : vector<1x1x128xf32> to vector<8x16x128xf32>
    %77 = arith.mulf %72, %76 : vector<8x16x128xf32>
    %78 = arith.addf %71, %77 : vector<8x16x128xf32>
    %79 = vector.shape_cast %10 : vector<1x128xf32> to vector<1x1x128xf32>
    %80 = vector.broadcast %79 : vector<1x1x128xf32> to vector<8x16x128xf32>
    %81 = arith.addf %78, %80 : vector<8x16x128xf32>
    %cst_30 = arith.constant 3.000000e+00 : f32
    %82 = vector.broadcast %cst_30 : f32 to vector<8x16x128xf32>
    %83 = arith.addf %81, %82 : vector<8x16x128xf32>
    %cst_31 = arith.constant 0.000000e+00 : f32
    %cst_32 = arith.constant 6.000000e+00 : f32
    %84 = vector.broadcast %cst_31 : f32 to vector<8x16x128xf32>
    %85 = arith.maximumf %84, %83 : vector<8x16x128xf32>
    %86 = vector.broadcast %cst_32 : f32 to vector<8x16x128xf32>
    %87 = arith.minimumf %86, %85 : vector<8x16x128xf32>
    %88 = arith.mulf %81, %87 : vector<8x16x128xf32>
    %cst_33 = arith.constant 0.166666672 : f32
    %89 = vector.broadcast %cst_33 : f32 to vector<8x16x128xf32>
    %90 = arith.mulf %88, %89 : vector<8x16x128xf32>
    %91 = arith.truncf %90 : vector<8x16x128xf32> to vector<8x16x128xbf16>
    %c0_34 = arith.constant 0 : index
    %c0_35 = arith.constant 0 : index
    %c0_36 = arith.constant 0 : index
    %c0_37 = arith.constant 0 : index
    %92 = vector.load %arg5[%c0_34, %c0_35, %c0_36, %c0_37] : memref<1x16x16x128xbf16, #tpu.memory_space<vmem>>, vector<1x8x16x128xbf16>
    %93 = vector.shape_cast %92 : vector<1x8x16x128xbf16> to vector<8x16x128xbf16>
    %94 = vector.shape_cast %91 : vector<8x16x128xbf16> to vector<1x8x16x128xbf16>
    tpu.vector_store %arg5[%c0_34, %c0_35, %c0_36, %c0_37], %94 {strides = array<i32>} : memref<1x16x16x128xbf16, #tpu.memory_space<vmem>>, vector<1x8x16x128xbf16>,
    %c8 = arith.constant 8 : index
    %c0_38 = arith.constant 0 : index
    %c0_39 = arith.constant 0 : index
    %95 = vector.load %arg6[%c8, %c0_38, %c0_39] : memref<18x18x128xbf16, #tpu.memory_space<vmem>>, vector<8x18x128xbf16>
    %96 = arith.extf %95 : vector<8x18x128xbf16> to vector<8x18x128xf32>
    %97 = vector.extract_strided_slice %96 {offsets = [0, 0, 0], sizes = [8, 16, 128], strides = [1, 1, 1]} : vector<8x18x128xf32> to vector<8x16x128xf32>
    %98 = vector.extract_strided_slice %9 {offsets = [0, 0, 0], sizes = [1, 1, 128], strides = [1, 1, 1]} : vector<3x3x128xf32> to vector<1x1x128xf32>
    %99 = vector.shape_cast %98 : vector<1x1x128xf32> to vector<128xf32>
    %100 = vector.shape_cast %99 : vector<128xf32> to vector<1x1x128xf32>
    %101 = vector.broadcast %100 : vector<1x1x128xf32> to vector<8x16x128xf32>
    %102 = arith.mulf %97, %101 : vector<8x16x128xf32>
    %103 = vector.extract_strided_slice %96 {offsets = [0, 1, 0], sizes = [8, 16, 128], strides = [1, 1, 1]} : vector<8x18x128xf32> to vector<8x16x128xf32>
    %104 = vector.extract_strided_slice %9 {offsets = [0, 1, 0], sizes = [1, 1, 128], strides = [1, 1, 1]} : vector<3x3x128xf32> to vector<1x1x128xf32>
    %105 = vector.shape_cast %104 : vector<1x1x128xf32> to vector<128xf32>
    %106 = vector.shape_cast %105 : vector<128xf32> to vector<1x1x128xf32>
    %107 = vector.broadcast %106 : vector<1x1x128xf32> to vector<8x16x128xf32>
    %108 = arith.mulf %103, %107 : vector<8x16x128xf32>
    %109 = arith.addf %102, %108 : vector<8x16x128xf32>
    %110 = vector.extract_strided_slice %96 {offsets = [0, 2, 0], sizes = [8, 16, 128], strides = [1, 1, 1]} : vector<8x18x128xf32> to vector<8x16x128xf32>
    %111 = vector.extract_strided_slice %9 {offsets = [0, 2, 0], sizes = [1, 1, 128], strides = [1, 1, 1]} : vector<3x3x128xf32> to vector<1x1x128xf32>
    %112 = vector.shape_cast %111 : vector<1x1x128xf32> to vector<128xf32>
    %113 = vector.shape_cast %112 : vector<128xf32> to vector<1x1x128xf32>
    %114 = vector.broadcast %113 : vector<1x1x128xf32> to vector<8x16x128xf32>
    %115 = arith.mulf %110, %114 : vector<8x16x128xf32>
    %116 = arith.addf %109, %115 : vector<8x16x128xf32>
    %c9 = arith.constant 9 : index
    %c0_40 = arith.constant 0 : index
    %c0_41 = arith.constant 0 : index
    %117 = vector.load %arg6[%c9, %c0_40, %c0_41] : memref<18x18x128xbf16, #tpu.memory_space<vmem>>, vector<8x18x128xbf16>
    %118 = arith.extf %117 : vector<8x18x128xbf16> to vector<8x18x128xf32>
    %119 = vector.extract_strided_slice %118 {offsets = [0, 0, 0], sizes = [8, 16, 128], strides = [1, 1, 1]} : vector<8x18x128xf32> to vector<8x16x128xf32>
    %120 = vector.extract_strided_slice %9 {offsets = [1, 0, 0], sizes = [1, 1, 128], strides = [1, 1, 1]} : vector<3x3x128xf32> to vector<1x1x128xf32>
    %121 = vector.shape_cast %120 : vector<1x1x128xf32> to vector<128xf32>
    %122 = vector.shape_cast %121 : vector<128xf32> to vector<1x1x128xf32>
    %123 = vector.broadcast %122 : vector<1x1x128xf32> to vector<8x16x128xf32>
    %124 = arith.mulf %119, %123 : vector<8x16x128xf32>
    %125 = arith.addf %116, %124 : vector<8x16x128xf32>
    %126 = vector.extract_strided_slice %118 {offsets = [0, 1, 0], sizes = [8, 16, 128], strides = [1, 1, 1]} : vector<8x18x128xf32> to vector<8x16x128xf32>
    %127 = vector.extract_strided_slice %9 {offsets = [1, 1, 0], sizes = [1, 1, 128], strides = [1, 1, 1]} : vector<3x3x128xf32> to vector<1x1x128xf32>
    %128 = vector.shape_cast %127 : vector<1x1x128xf32> to vector<128xf32>
    %129 = vector.shape_cast %128 : vector<128xf32> to vector<1x1x128xf32>
    %130 = vector.broadcast %129 : vector<1x1x128xf32> to vector<8x16x128xf32>
    %131 = arith.mulf %126, %130 : vector<8x16x128xf32>
    %132 = arith.addf %125, %131 : vector<8x16x128xf32>
    %133 = vector.extract_strided_slice %118 {offsets = [0, 2, 0], sizes = [8, 16, 128], strides = [1, 1, 1]} : vector<8x18x128xf32> to vector<8x16x128xf32>
    %134 = vector.extract_strided_slice %9 {offsets = [1, 2, 0], sizes = [1, 1, 128], strides = [1, 1, 1]} : vector<3x3x128xf32> to vector<1x1x128xf32>
    %135 = vector.shape_cast %134 : vector<1x1x128xf32> to vector<128xf32>
    %136 = vector.shape_cast %135 : vector<128xf32> to vector<1x1x128xf32>
    %137 = vector.broadcast %136 : vector<1x1x128xf32> to vector<8x16x128xf32>
    %138 = arith.mulf %133, %137 : vector<8x16x128xf32>
    %139 = arith.addf %132, %138 : vector<8x16x128xf32>
    %c10 = arith.constant 10 : index
    %c0_42 = arith.constant 0 : index
    %c0_43 = arith.constant 0 : index
    %140 = vector.load %arg6[%c10, %c0_42, %c0_43] : memref<18x18x128xbf16, #tpu.memory_space<vmem>>, vector<8x18x128xbf16>
    %141 = arith.extf %140 : vector<8x18x128xbf16> to vector<8x18x128xf32>
    %142 = vector.extract_strided_slice %141 {offsets = [0, 0, 0], sizes = [8, 16, 128], strides = [1, 1, 1]} : vector<8x18x128xf32> to vector<8x16x128xf32>
    %143 = vector.extract_strided_slice %9 {offsets = [2, 0, 0], sizes = [1, 1, 128], strides = [1, 1, 1]} : vector<3x3x128xf32> to vector<1x1x128xf32>
    %144 = vector.shape_cast %143 : vector<1x1x128xf32> to vector<128xf32>
    %145 = vector.shape_cast %144 : vector<128xf32> to vector<1x1x128xf32>
    %146 = vector.broadcast %145 : vector<1x1x128xf32> to vector<8x16x128xf32>
    %147 = arith.mulf %142, %146 : vector<8x16x128xf32>
    %148 = arith.addf %139, %147 : vector<8x16x128xf32>
    %149 = vector.extract_strided_slice %141 {offsets = [0, 1, 0], sizes = [8, 16, 128], strides = [1, 1, 1]} : vector<8x18x128xf32> to vector<8x16x128xf32>
    %150 = vector.extract_strided_slice %9 {offsets = [2, 1, 0], sizes = [1, 1, 128], strides = [1, 1, 1]} : vector<3x3x128xf32> to vector<1x1x128xf32>
    %151 = vector.shape_cast %150 : vector<1x1x128xf32> to vector<128xf32>
    %152 = vector.shape_cast %151 : vector<128xf32> to vector<1x1x128xf32>
    %153 = vector.broadcast %152 : vector<1x1x128xf32> to vector<8x16x128xf32>
    %154 = arith.mulf %149, %153 : vector<8x16x128xf32>
    %155 = arith.addf %148, %154 : vector<8x16x128xf32>
    %156 = vector.extract_strided_slice %141 {offsets = [0, 2, 0], sizes = [8, 16, 128], strides = [1, 1, 1]} : vector<8x18x128xf32> to vector<8x16x128xf32>
    %157 = vector.extract_strided_slice %9 {offsets = [2, 2, 0], sizes = [1, 1, 128], strides = [1, 1, 1]} : vector<3x3x128xf32> to vector<1x1x128xf32>
    %158 = vector.shape_cast %157 : vector<1x1x128xf32> to vector<128xf32>
    %159 = vector.shape_cast %158 : vector<128xf32> to vector<1x1x128xf32>
    %160 = vector.broadcast %159 : vector<1x1x128xf32> to vector<8x16x128xf32>
    %161 = arith.mulf %156, %160 : vector<8x16x128xf32>
    %162 = arith.addf %155, %161 : vector<8x16x128xf32>
    %163 = vector.shape_cast %10 : vector<1x128xf32> to vector<1x1x128xf32>
    %164 = vector.broadcast %163 : vector<1x1x128xf32> to vector<8x16x128xf32>
    %165 = arith.addf %162, %164 : vector<8x16x128xf32>
    %cst_44 = arith.constant 3.000000e+00 : f32
    %166 = vector.broadcast %cst_44 : f32 to vector<8x16x128xf32>
    %167 = arith.addf %165, %166 : vector<8x16x128xf32>
    %cst_45 = arith.constant 0.000000e+00 : f32
    %cst_46 = arith.constant 6.000000e+00 : f32
    %168 = vector.broadcast %cst_45 : f32 to vector<8x16x128xf32>
    %169 = arith.maximumf %168, %167 : vector<8x16x128xf32>
    %170 = vector.broadcast %cst_46 : f32 to vector<8x16x128xf32>
    %171 = arith.minimumf %170, %169 : vector<8x16x128xf32>
    %172 = arith.mulf %165, %171 : vector<8x16x128xf32>
    %cst_47 = arith.constant 0.166666672 : f32
    %173 = vector.broadcast %cst_47 : f32 to vector<8x16x128xf32>
    %174 = arith.mulf %172, %173 : vector<8x16x128xf32>
    %175 = arith.truncf %174 : vector<8x16x128xf32> to vector<8x16x128xbf16>
    %c0_48 = arith.constant 0 : index
    %c8_49 = arith.constant 8 : index
    %c0_50 = arith.constant 0 : index
    %c0_51 = arith.constant 0 : index
    %176 = vector.load %arg5[%c0_48, %c8_49, %c0_50, %c0_51] : memref<1x16x16x128xbf16, #tpu.memory_space<vmem>>, vector<1x8x16x128xbf16>
    %177 = vector.shape_cast %176 : vector<1x8x16x128xbf16> to vector<8x16x128xbf16>
    %178 = vector.shape_cast %175 : vector<8x16x128xbf16> to vector<1x8x16x128xbf16>
    tpu.vector_store %arg5[%c0_48, %c8_49, %c0_50, %c0_51], %178 {strides = array<i32>} : memref<1x16x16x128xbf16, #tpu.memory_space<vmem>>, vector<1x8x16x128xbf16>,
    return
  }
  func.func @transform_0(%arg0: i32, %arg1: i32) -> (i32, i32, i32, i32) {
    %c0_i32 = arith.constant 0 : i32
    %c0_i32_0 = arith.constant 0 : i32
    %c0_i32_1 = arith.constant 0 : i32
    return %arg0, %c0_i32, %c0_i32_0, %arg1 : i32, i32, i32, i32
  }
  func.func @transform_1(%arg0: i32, %arg1: i32) -> (i32, i32, i32) {
    %c0_i32 = arith.constant 0 : i32
    %c0_i32_0 = arith.constant 0 : i32
    %c0_i32_1 = arith.constant 0 : i32
    return %c0_i32, %c0_i32_0, %arg1 : i32, i32, i32
  }
  func.func @transform_2(%arg0: i32, %arg1: i32) -> (i32, i32) {
    %c0_i32 = arith.constant 0 : i32
    %c0_i32_0 = arith.constant 0 : i32
    return %c0_i32, %arg1 : i32, i32
  }
  func.func @transform_3(%arg0: i32, %arg1: i32) -> (i32, i32, i32, i32) {
    %c0_i32 = arith.constant 0 : i32
    %c0_i32_0 = arith.constant 0 : i32
    %c0_i32_1 = arith.constant 0 : i32
    return %arg0, %c0_i32, %c0_i32_0, %arg1 : i32, i32, i32, i32
  }
}

module attributes {stable_mosaic.version = 11 : i64} {
  func.func @_expand_kernel(%arg0: i32, %arg1: memref<512x8xbf16, #tpu.memory_space<vmem>>, %arg2: memref<8x128xbf16, #tpu.memory_space<vmem>>, %arg3: memref<1x128xf32, #tpu.memory_space<vmem>>, %arg4: memref<512x128xbf16, #tpu.memory_space<vmem>>) attributes {dimension_semantics = [#tpu.dimension_semantics<parallel>], iteration_bounds = array<i64: 1>, scalar_prefetch = 0 : i64, scratch_operands = 0 : i64, tpu.core_type = #tpu.core_type<tc>, window_params = [{transform_indices = @transform_0, window_bounds = array<i64: 512, 8>}, {pipeline_mode = #tpu.pipeline_mode<synchronous>, transform_indices = @transform_1, window_bounds = array<i64: 8, 128>}, {pipeline_mode = #tpu.pipeline_mode<synchronous>, transform_indices = @transform_2, window_bounds = array<i64: 1, 128>}, {transform_indices = @transform_3, window_bounds = array<i64: 512, 128>}]} {
    %c0 = arith.constant 0 : index
    %c0_0 = arith.constant 0 : index
    %0 = vector.load %arg1[%c0, %c0_0] : memref<512x8xbf16, #tpu.memory_space<vmem>>, vector<512x8xbf16>
    %c0_1 = arith.constant 0 : index
    %c0_2 = arith.constant 0 : index
    %1 = vector.load %arg2[%c0_1, %c0_2] : memref<8x128xbf16, #tpu.memory_space<vmem>>, vector<8x128xbf16>
    %cst = arith.constant dense<0.000000e+00> : vector<512x128xf32>
    %2 = tpu.matmul %0, %1, %cst {dimension_numbers = #tpu.dot_dimension_numbers<[1], [0], [0], [1], [0, 0, 1, 1], [], []>} : vector<512x8xbf16>, vector<8x128xbf16>, vector<512x128xf32> -> vector<512x128xf32>
    %c0_3 = arith.constant 0 : index
    %c0_4 = arith.constant 0 : index
    %3 = vector.load %arg3[%c0_3, %c0_4] : memref<1x128xf32, #tpu.memory_space<vmem>>, vector<1x128xf32>
    %4 = vector.broadcast %3 : vector<1x128xf32> to vector<512x128xf32>
    %5 = arith.addf %2, %4 : vector<512x128xf32>
    %cst_5 = arith.constant 3.000000e+00 : f32
    %6 = vector.broadcast %cst_5 : f32 to vector<512x128xf32>
    %7 = arith.addf %5, %6 : vector<512x128xf32>
    %cst_6 = arith.constant 0.000000e+00 : f32
    %cst_7 = arith.constant 6.000000e+00 : f32
    %8 = vector.broadcast %cst_6 : f32 to vector<512x128xf32>
    %9 = arith.maximumf %8, %7 : vector<512x128xf32>
    %10 = vector.broadcast %cst_7 : f32 to vector<512x128xf32>
    %11 = arith.minimumf %10, %9 : vector<512x128xf32>
    %12 = arith.mulf %5, %11 : vector<512x128xf32>
    %cst_8 = arith.constant 0.166666672 : f32
    %13 = vector.broadcast %cst_8 : f32 to vector<512x128xf32>
    %14 = arith.mulf %12, %13 : vector<512x128xf32>
    %15 = arith.truncf %14 : vector<512x128xf32> to vector<512x128xbf16>
    %c0_9 = arith.constant 0 : index
    %c0_10 = arith.constant 0 : index
    %16 = vector.load %arg4[%c0_9, %c0_10] : memref<512x128xbf16, #tpu.memory_space<vmem>>, vector<512x128xbf16>
    tpu.vector_store %arg4[%c0_9, %c0_10], %15 {strides = array<i32>} : memref<512x128xbf16, #tpu.memory_space<vmem>>, vector<512x128xbf16>,
    return
  }
  func.func @transform_0(%arg0: i32) -> (i32, i32) {
    %c0_i32 = arith.constant 0 : i32
    %c0_i32_0 = arith.constant 0 : i32
    return %arg0, %c0_i32 : i32, i32
  }
  func.func @transform_1(%arg0: i32) -> (i32, i32) {
    %c0_i32 = arith.constant 0 : i32
    %c0_i32_0 = arith.constant 0 : i32
    %c0_i32_1 = arith.constant 0 : i32
    return %c0_i32, %c0_i32_0 : i32, i32
  }
  func.func @transform_2(%arg0: i32) -> (i32, i32) {
    %c0_i32 = arith.constant 0 : i32
    %c0_i32_0 = arith.constant 0 : i32
    %c0_i32_1 = arith.constant 0 : i32
    return %c0_i32, %c0_i32_0 : i32, i32
  }
  func.func @transform_3(%arg0: i32) -> (i32, i32) {
    %c0_i32 = arith.constant 0 : i32
    %c0_i32_0 = arith.constant 0 : i32
    return %arg0, %c0_i32 : i32, i32
  }
}

module attributes {stable_mosaic.version = 11 : i64} {
  func.func @_project_pool_kernel(%arg0: i32, %arg1: i32, %arg2: memref<1x256x128xbf16, #tpu.memory_space<vmem>>, %arg3: memref<128x128xbf16, #tpu.memory_space<vmem>>, %arg4: memref<1x128xf32, #tpu.memory_space<vmem>>, %arg5: memref<1x256x128xbf16, #tpu.memory_space<vmem>>, %arg6: memref<1x1x128xf32, #tpu.memory_space<vmem>>) attributes {dimension_semantics = [#tpu.dimension_semantics<parallel>, #tpu.dimension_semantics<arbitrary>], iteration_bounds = array<i64: 2, 1>, scalar_prefetch = 0 : i64, scratch_operands = 0 : i64, tpu.core_type = #tpu.core_type<tc>, window_params = [{transform_indices = @transform_0, window_bounds = array<i64: 1, 256, 128>}, {pipeline_mode = #tpu.pipeline_mode<synchronous>, transform_indices = @transform_1, window_bounds = array<i64: 128, 128>}, {pipeline_mode = #tpu.pipeline_mode<synchronous>, transform_indices = @transform_2, window_bounds = array<i64: 1, 128>}, {transform_indices = @transform_3, window_bounds = array<i64: 1, 256, 128>}, {transform_indices = @transform_4, window_bounds = array<i64: 1, 1, 128>}]} {
    %c0 = arith.constant 0 : index
    %c0_0 = arith.constant 0 : index
    %c0_1 = arith.constant 0 : index
    %0 = vector.load %arg2[%c0, %c0_0, %c0_1] : memref<1x256x128xbf16, #tpu.memory_space<vmem>>, vector<1x256x128xbf16>
    %1 = vector.shape_cast %0 : vector<1x256x128xbf16> to vector<256x128xbf16>
    %c0_2 = arith.constant 0 : index
    %c0_3 = arith.constant 0 : index
    %2 = vector.load %arg3[%c0_2, %c0_3] : memref<128x128xbf16, #tpu.memory_space<vmem>>, vector<128x128xbf16>
    %cst = arith.constant dense<0.000000e+00> : vector<256x128xf32>
    %3 = tpu.matmul %1, %2, %cst {dimension_numbers = #tpu.dot_dimension_numbers<[1], [0], [0], [1], [0, 0, 1, 1], [], []>} : vector<256x128xbf16>, vector<128x128xbf16>, vector<256x128xf32> -> vector<256x128xf32>
    %c0_4 = arith.constant 0 : index
    %c0_5 = arith.constant 0 : index
    %4 = vector.load %arg4[%c0_4, %c0_5] : memref<1x128xf32, #tpu.memory_space<vmem>>, vector<1x128xf32>
    %5 = vector.broadcast %4 : vector<1x128xf32> to vector<256x128xf32>
    %6 = arith.addf %3, %5 : vector<256x128xf32>
    %7 = arith.truncf %6 : vector<256x128xf32> to vector<256x128xbf16>
    %c0_6 = arith.constant 0 : index
    %c0_7 = arith.constant 0 : index
    %c0_8 = arith.constant 0 : index
    %8 = vector.load %arg5[%c0_6, %c0_7, %c0_8] : memref<1x256x128xbf16, #tpu.memory_space<vmem>>, vector<1x256x128xbf16>
    %9 = vector.shape_cast %8 : vector<1x256x128xbf16> to vector<256x128xbf16>
    %10 = vector.shape_cast %7 : vector<256x128xbf16> to vector<1x256x128xbf16>
    tpu.vector_store %arg5[%c0_6, %c0_7, %c0_8], %10 {strides = array<i32>} : memref<1x256x128xbf16, #tpu.memory_space<vmem>>, vector<1x256x128xbf16>,
    %c0_i32 = arith.constant 0 : i32
    %11 = arith.cmpi eq, %arg1, %c0_i32 : i32
    %12 = arith.extui %11 : i1 to i32
    %c0_i32_9 = arith.constant 0 : i32
    %13 = arith.cmpi ne, %12, %c0_i32_9 : i32
    scf.if %13 {
      %cst_18 = arith.constant 0.000000e+00 : f32
      %22 = vector.broadcast %cst_18 : f32 to vector<1x1x128xf32>
      %c0_19 = arith.constant 0 : index
      %c0_20 = arith.constant 0 : index
      %c0_21 = arith.constant 0 : index
      %23 = vector.load %arg6[%c0_19, %c0_20, %c0_21] : memref<1x1x128xf32, #tpu.memory_space<vmem>>, vector<1x1x128xf32>
      tpu.vector_store %arg6[%c0_19, %c0_20, %c0_21], %22 {strides = array<i32>} : memref<1x1x128xf32, #tpu.memory_space<vmem>>, vector<1x1x128xf32>,
    } else {
    }
    %c0_10 = arith.constant 0 : index
    %c0_11 = arith.constant 0 : index
    %c0_12 = arith.constant 0 : index
    %14 = vector.load %arg6[%c0_10, %c0_11, %c0_12] : memref<1x1x128xf32, #tpu.memory_space<vmem>>, vector<1x1x128xf32>
    %cst_13 = arith.constant dense<0.000000e+00> : vector<128xf32>
    %15 = vector.multi_reduction <add>, %6, %cst_13 [0] : vector<256x128xf32> to vector<128xf32>
    %16 = vector.shape_cast %15 : vector<128xf32> to vector<1x128xf32>
    %cst_14 = arith.constant 3.906250e-03 : f32
    %17 = vector.broadcast %cst_14 : f32 to vector<1x128xf32>
    %18 = arith.mulf %16, %17 : vector<1x128xf32>
    %19 = vector.shape_cast %18 : vector<1x128xf32> to vector<1x1x128xf32>
    %20 = arith.addf %14, %19 : vector<1x1x128xf32>
    %c0_15 = arith.constant 0 : index
    %c0_16 = arith.constant 0 : index
    %c0_17 = arith.constant 0 : index
    %21 = vector.load %arg6[%c0_15, %c0_16, %c0_17] : memref<1x1x128xf32, #tpu.memory_space<vmem>>, vector<1x1x128xf32>
    tpu.vector_store %arg6[%c0_15, %c0_16, %c0_17], %20 {strides = array<i32>} : memref<1x1x128xf32, #tpu.memory_space<vmem>>, vector<1x1x128xf32>,
    return
  }
  func.func @transform_0(%arg0: i32, %arg1: i32) -> (i32, i32, i32) {
    %c0_i32 = arith.constant 0 : i32
    %c0_i32_0 = arith.constant 0 : i32
    return %arg0, %arg1, %c0_i32 : i32, i32, i32
  }
  func.func @transform_1(%arg0: i32, %arg1: i32) -> (i32, i32) {
    %c0_i32 = arith.constant 0 : i32
    %c0_i32_0 = arith.constant 0 : i32
    %c0_i32_1 = arith.constant 0 : i32
    return %c0_i32, %c0_i32_0 : i32, i32
  }
  func.func @transform_2(%arg0: i32, %arg1: i32) -> (i32, i32) {
    %c0_i32 = arith.constant 0 : i32
    %c0_i32_0 = arith.constant 0 : i32
    %c0_i32_1 = arith.constant 0 : i32
    return %c0_i32, %c0_i32_0 : i32, i32
  }
  func.func @transform_3(%arg0: i32, %arg1: i32) -> (i32, i32, i32) {
    %c0_i32 = arith.constant 0 : i32
    %c0_i32_0 = arith.constant 0 : i32
    return %arg0, %arg1, %c0_i32 : i32, i32, i32
  }
  func.func @transform_4(%arg0: i32, %arg1: i32) -> (i32, i32, i32) {
    %c0_i32 = arith.constant 0 : i32
    %c0_i32_0 = arith.constant 0 : i32
    %c0_i32_1 = arith.constant 0 : i32
    return %arg0, %c0_i32, %c0_i32_0 : i32, i32, i32
  }
}

module attributes {stable_mosaic.version = 11 : i64} {
  func.func @_fuse_shortcut_kernel(%arg0: i32, %arg1: i32, %arg2: memref<1x256x128xbf16, #tpu.memory_space<vmem>>, %arg3: memref<1x1x128xf32, #tpu.memory_space<vmem>>, %arg4: memref<1x256x8xbf16, #tpu.memory_space<vmem>>, %arg5: memref<8x128xbf16, #tpu.memory_space<vmem>>, %arg6: memref<1x128xf32, #tpu.memory_space<vmem>>, %arg7: memref<1x256x128xbf16, #tpu.memory_space<vmem>>) attributes {dimension_semantics = [#tpu.dimension_semantics<parallel>, #tpu.dimension_semantics<parallel>], iteration_bounds = array<i64: 2, 1>, scalar_prefetch = 0 : i64, scratch_operands = 0 : i64, tpu.core_type = #tpu.core_type<tc>, window_params = [{transform_indices = @transform_0, window_bounds = array<i64: 1, 256, 128>}, {transform_indices = @transform_1, window_bounds = array<i64: 1, 1, 128>}, {transform_indices = @transform_2, window_bounds = array<i64: 1, 256, 8>}, {pipeline_mode = #tpu.pipeline_mode<synchronous>, transform_indices = @transform_3, window_bounds = array<i64: 8, 128>}, {pipeline_mode = #tpu.pipeline_mode<synchronous>, transform_indices = @transform_4, window_bounds = array<i64: 1, 128>}, {transform_indices = @transform_5, window_bounds = array<i64: 1, 256, 128>}]} {
    %c0 = arith.constant 0 : index
    %c0_0 = arith.constant 0 : index
    %c0_1 = arith.constant 0 : index
    %0 = vector.load %arg4[%c0, %c0_0, %c0_1] : memref<1x256x8xbf16, #tpu.memory_space<vmem>>, vector<1x256x8xbf16>
    %1 = vector.shape_cast %0 : vector<1x256x8xbf16> to vector<256x8xbf16>
    %c0_2 = arith.constant 0 : index
    %c0_3 = arith.constant 0 : index
    %2 = vector.load %arg5[%c0_2, %c0_3] : memref<8x128xbf16, #tpu.memory_space<vmem>>, vector<8x128xbf16>
    %cst = arith.constant dense<0.000000e+00> : vector<256x128xf32>
    %3 = tpu.matmul %1, %2, %cst {dimension_numbers = #tpu.dot_dimension_numbers<[1], [0], [0], [1], [0, 0, 1, 1], [], []>} : vector<256x8xbf16>, vector<8x128xbf16>, vector<256x128xf32> -> vector<256x128xf32>
    %c0_4 = arith.constant 0 : index
    %c0_5 = arith.constant 0 : index
    %4 = vector.load %arg6[%c0_4, %c0_5] : memref<1x128xf32, #tpu.memory_space<vmem>>, vector<1x128xf32>
    %5 = vector.broadcast %4 : vector<1x128xf32> to vector<256x128xf32>
    %6 = arith.addf %3, %5 : vector<256x128xf32>
    %c0_6 = arith.constant 0 : index
    %c0_7 = arith.constant 0 : index
    %c0_8 = arith.constant 0 : index
    %7 = vector.load %arg2[%c0_6, %c0_7, %c0_8] : memref<1x256x128xbf16, #tpu.memory_space<vmem>>, vector<1x256x128xbf16>
    %8 = vector.shape_cast %7 : vector<1x256x128xbf16> to vector<256x128xbf16>
    %9 = arith.extf %8 : vector<256x128xbf16> to vector<256x128xf32>
    %c0_9 = arith.constant 0 : index
    %c0_10 = arith.constant 0 : index
    %c0_11 = arith.constant 0 : index
    %10 = vector.load %arg3[%c0_9, %c0_10, %c0_11] : memref<1x1x128xf32, #tpu.memory_space<vmem>>, vector<1x1x128xf32>
    %11 = vector.shape_cast %10 : vector<1x1x128xf32> to vector<1x128xf32>
    %12 = vector.broadcast %11 : vector<1x128xf32> to vector<256x128xf32>
    %13 = arith.mulf %9, %12 : vector<256x128xf32>
    %14 = arith.addf %13, %6 : vector<256x128xf32>
    %15 = arith.truncf %14 : vector<256x128xf32> to vector<256x128xbf16>
    %c0_12 = arith.constant 0 : index
    %c0_13 = arith.constant 0 : index
    %c0_14 = arith.constant 0 : index
    %16 = vector.load %arg7[%c0_12, %c0_13, %c0_14] : memref<1x256x128xbf16, #tpu.memory_space<vmem>>, vector<1x256x128xbf16>
    %17 = vector.shape_cast %16 : vector<1x256x128xbf16> to vector<256x128xbf16>
    %18 = vector.shape_cast %15 : vector<256x128xbf16> to vector<1x256x128xbf16>
    tpu.vector_store %arg7[%c0_12, %c0_13, %c0_14], %18 {strides = array<i32>} : memref<1x256x128xbf16, #tpu.memory_space<vmem>>, vector<1x256x128xbf16>,
    return
  }
  func.func @transform_0(%arg0: i32, %arg1: i32) -> (i32, i32, i32) {
    %c0_i32 = arith.constant 0 : i32
    %c0_i32_0 = arith.constant 0 : i32
    return %arg0, %arg1, %c0_i32 : i32, i32, i32
  }
  func.func @transform_1(%arg0: i32, %arg1: i32) -> (i32, i32, i32) {
    %c0_i32 = arith.constant 0 : i32
    %c0_i32_0 = arith.constant 0 : i32
    %c0_i32_1 = arith.constant 0 : i32
    return %arg0, %c0_i32, %c0_i32_0 : i32, i32, i32
  }
  func.func @transform_2(%arg0: i32, %arg1: i32) -> (i32, i32, i32) {
    %c0_i32 = arith.constant 0 : i32
    %c0_i32_0 = arith.constant 0 : i32
    return %arg0, %arg1, %c0_i32 : i32, i32, i32
  }
  func.func @transform_3(%arg0: i32, %arg1: i32) -> (i32, i32) {
    %c0_i32 = arith.constant 0 : i32
    %c0_i32_0 = arith.constant 0 : i32
    %c0_i32_1 = arith.constant 0 : i32
    return %c0_i32, %c0_i32_0 : i32, i32
  }
  func.func @transform_4(%arg0: i32, %arg1: i32) -> (i32, i32) {
    %c0_i32 = arith.constant 0 : i32
    %c0_i32_0 = arith.constant 0 : i32
    %c0_i32_1 = arith.constant 0 : i32
    return %c0_i32, %c0_i32_0 : i32, i32
  }
  func.func @transform_5(%arg0: i32, %arg1: i32) -> (i32, i32, i32) {
    %c0_i32 = arith.constant 0 : i32
    %c0_i32_0 = arith.constant 0 : i32
    return %arg0, %arg1, %c0_i32 : i32, i32, i32
  }
}

</mosaic_0001>

<llo_original>
// kernel: block_forward.4
$region0: #{block_forward.4}
  #allocation0 [shape = 'u32[]', space=smem, size = 0x4, offset = 0x4, fixed_abs, tag = 'smem constant byte address 0x4 - core index']
  #allocation1 [shape = 'u32[144,128]{1,0:T(1,128)}', space=vmem, size = 0x12000, scoped, tag = 'internal scratch']
  %s0 = inlined_call_operand.vmem [shape: bf16[512,8], index: 0, kind: input, shape index: {}]
  %s1 = inlined_call_operand.vmem [shape: bf16[8,128], index: 1, kind: input, shape index: {}]
  %s2 = inlined_call_operand.vmem [shape: f32[1,128], index: 2, kind: input, shape index: {}]
  %s3 = inlined_call_operand.vmem [shape: bf16[512,128], index: 3, kind: output, shape index: {}]
  %s4 = sld [smem:[#allocation0]]
  $region22: #{block_forward.4} parent=0
    _
  %s6 = ssub.s32 1, %s4
  %s7 = scalar_select 0, %s6, %s4
  // Predicated region
  $region2: #{block_forward.4} parent=0 // pred_check
    _
  $region3: #{block_forward.4} parent=0 // pred_check_branch
    %9 = sbr.rel (0) target = $region5
  $region4: #{block_forward.4} parent=0 // pred_region
    _
  $region5: #{block_forward.4} parent=0 // pred_fallthru
    _
  // Predicated region
  $region6: #{block_forward.4} parent=0 // pred_check
    _
  $region7: #{block_forward.4} parent=0 // pred_check_branch
    %11 = sbr.rel (0) target = $region9
  $region8: #{block_forward.4} parent=0 // pred_region
    _
  $region9: #{block_forward.4} parent=0 // pred_fallthru
    _
  // Predicated region
  $region10: #{block_forward.4} parent=0 // pred_check
    _
  $region11: #{block_forward.4} parent=0 // pred_check_branch
    %13 = sbr.rel (0) target = $region13
  $region12: #{block_forward.4} parent=0 // pred_region
    _
  $region13: #{block_forward.4} parent=0 // pred_fallthru
    _
  %v15 = vld [vmem:[%s0] sm:$0xf]
  %v16 = vld [vmem:[%s0 + $0x4] sm:$0xf]
  %v17 = vld [vmem:[%s0 + $0x8] sm:$0xf]
  %v18 = vld [vmem:[%s0 + $0xc] sm:$0xf]
  %v19 = vld [vmem:[%s0 + $0x10] sm:$0xf]
  %v20 = vld [vmem:[%s0 + $0x14] sm:$0xf]
  %v21 = vld [vmem:[%s0 + $0x18] sm:$0xf]
  %v22 = vld [vmem:[%s0 + $0x1c] sm:$0xf]
  %v23 = vld [vmem:[%s0 + $0x20] sm:$0xf]
  %v24 = vld [vmem:[%s0 + $0x24] sm:$0xf]
  %v25 = vld [vmem:[%s0 + $0x28] sm:$0xf]
  %v26 = vld [vmem:[%s0 + $0x2c] sm:$0xf]
  %v27 = vld [vmem:[%s0 + $0x30] sm:$0xf]
  %v28 = vld [vmem:[%s0 + $0x34] sm:$0xf]
  %v29 = vld [vmem:[%s0 + $0x38] sm:$0xf]
  %v30 = vld [vmem:[%s0 + $0x3c] sm:$0xf]
  %v31 = vld [vmem:[%s0 + $0x40] sm:$0xf]
  %v32 = vld [vmem:[%s0 + $0x44] sm:$0xf]
  %v33 = vld [vmem:[%s0 + $0x48] sm:$0xf]
  %v34 = vld [vmem:[%s0 + $0x4c] sm:$0xf]
  %v35 = vld [vmem:[%s0 + $0x50] sm:$0xf]
  %v36 = vld [vmem:[%s0 + $0x54] sm:$0xf]
  %v37 = vld [vmem:[%s0 + $0x58] sm:$0xf]
  %v38 = vld [vmem:[%s0 + $0x5c] sm:$0xf]
  %v39 = vld [vmem:[%s0 + $0x60] sm:$0xf]
  %v40 = vld [vmem:[%s0 + $0x64] sm:$0xf]
  %v41 = vld [vmem:[%s0 + $0x68] sm:$0xf]
  %v42 = vld [vmem:[%s0 + $0x6c] sm:$0xf]
  %v43 = vld [vmem:[%s0 + $0x70] sm:$0xf]
  %v44 = vld [vmem:[%s0 + $0x74] sm:$0xf]
  %v45 = vld [vmem:[%s0 + $0x78] sm:$0xf]
  %v46 = vld [vmem:[%s0 + $0x7c] sm:$0xf]
  %v47 = vld [vmem:[%s0 + $0x80] sm:$0xf]
  %v48 = vld [vmem:[%s0 + $0x84] sm:$0xf]
  %v49 = vld [vmem:[%s0 + $0x88] sm:$0xf]
  %v50 = vld [vmem:[%s0 + $0x8c] sm:$0xf]
  %v51 = vld [vmem:[%s0 + $0x90] sm:$0xf]
  %v52 = vld [vmem:[%s0 + $0x94] sm:$0xf]
  %v53 = vld [vmem:[%s0 + $0x98] sm:$0xf]
  %v54 = vld [vmem:[%s0 + $0x9c] sm:$0xf]
  %v55 = vld [vmem:[%s0 + $0xa0] sm:$0xf]
  %v56 = vld [vmem:[%s0 + $0xa4] sm:$0xf]
  %v57 = vld [vmem:[%s0 + $0xa8] sm:$0xf]
  %v58 = vld [vmem:[%s0 + $0xac] sm:$0xf]
  %v59 = vld [vmem:[%s0 + $0xb0] sm:$0xf]
  %v60 = vld [vmem:[%s0 + $0xb4] sm:$0xf]
  %v61 = vld [vmem:[%s0 + $0xb8] sm:$0xf]
  %v62 = vld [vmem:[%s0 + $0xbc] sm:$0xf]
  %v63 = vld [vmem:[%s0 + $0xc0] sm:$0xf]
  %v64 = vld [vmem:[%s0 + $0xc4] sm:$0xf]
  %v65 = vld [vmem:[%s0 + $0xc8] sm:$0xf]
  %v66 = vld [vmem:[%s0 + $0xcc] sm:$0xf]
  %v67 = vld [vmem:[%s0 + $0xd0] sm:$0xf]
  %v68 = vld [vmem:[%s0 + $0xd4] sm:$0xf]
  %v69 = vld [vmem:[%s0 + $0xd8] sm:$0xf]
  %v70 = vld [vmem:[%s0 + $0xdc] sm:$0xf]
  %v71 = vld [vmem:[%s0 + $0xe0] sm:$0xf]
  %v72 = vld [vmem:[%s0 + $0xe4] sm:$0xf]
  %v73 = vld [vmem:[%s0 + $0xe8] sm:$0xf]
  %v74 = vld [vmem:[%s0 + $0xec] sm:$0xf]
  %v75 = vld [vmem:[%s0 + $0xf0] sm:$0xf]
  %v76 = vld [vmem:[%s0 + $0xf4] sm:$0xf]
  %v77 = vld [vmem:[%s0 + $0xf8] sm:$0xf]
  %v78 = vld [vmem:[%s0 + $0xfc] sm:$0xf]
  %v79 = vld [vmem:[%s1] sm:$0xf]
  %v80 = vld [vmem:[%s2] sm:$0x1]
  %v82 = vlaneseq
  %v83 = vshrl.u32 %v82, 7
  %v84 = vsub.s32 0, %v83
  %v85 = vrot.slane %v80, %v84
  %v151 = vunpack.c.l.b16 %v15
  %v152 = vunpack.c.l.b16 %v16
  %v153 = vunpack.c.l.b16 %v17
  %v154 = vunpack.c.l.b16 %v18
  %v155 = vunpack.c.l.b16 %v19
  %v156 = vunpack.c.l.b16 %v20
  %v157 = vunpack.c.l.b16 %v21
  %v158 = vunpack.c.l.b16 %v22
  %v159 = vunpack.c.l.b16 %v23
  %v160 = vunpack.c.l.b16 %v24
  %v161 = vunpack.c.l.b16 %v25
  %v162 = vunpack.c.l.b16 %v26
  %v163 = vunpack.c.l.b16 %v27
  %v164 = vunpack.c.l.b16 %v28
  %v165 = vunpack.c.l.b16 %v29
  %v166 = vunpack.c.l.b16 %v30
  %v167 = vunpack.c.l.b16 %v31
  %v168 = vunpack.c.l.b16 %v32
  %v169 = vunpack.c.l.b16 %v33
  %v170 = vunpack.c.l.b16 %v34
  %v171 = vunpack.c.l.b16 %v35
  %v172 = vunpack.c.l.b16 %v36
  %v173 = vunpack.c.l.b16 %v37
  %v174 = vunpack.c.l.b16 %v38
  %v175 = vunpack.c.l.b16 %v39
  %v176 = vunpack.c.l.b16 %v40
  %v177 = vunpack.c.l.b16 %v41
  %v178 = vunpack.c.l.b16 %v42
  %v179 = vunpack.c.l.b16 %v43
  %v180 = vunpack.c.l.b16 %v44
  %v181 = vunpack.c.l.b16 %v45
  %v182 = vunpack.c.l.b16 %v46
  %v183 = vunpack.c.l.b16 %v47
  %v184 = vunpack.c.l.b16 %v48
  %v185 = vunpack.c.l.b16 %v49
  %v186 = vunpack.c.l.b16 %v50
  %v187 = vunpack.c.l.b16 %v51
  %v188 = vunpack.c.l.b16 %v52
  %v189 = vunpack.c.l.b16 %v53
  %v190 = vunpack.c.l.b16 %v54
  %v191 = vunpack.c.l.b16 %v55
  %v192 = vunpack.c.l.b16 %v56
  %v193 = vunpack.c.l.b16 %v57
  %v194 = vunpack.c.l.b16 %v58
  %v195 = vunpack.c.l.b16 %v59
  %v196 = vunpack.c.l.b16 %v60
  %v197 = vunpack.c.l.b16 %v61
  %v198 = vunpack.c.l.b16 %v62
  %v199 = vunpack.c.l.b16 %v63
  %v200 = vunpack.c.l.b16 %v64
  %v201 = vunpack.c.l.b16 %v65
  %v202 = vunpack.c.l.b16 %v66
  %v203 = vunpack.c.l.b16 %v67
  %v204 = vunpack.c.l.b16 %v68
  %v205 = vunpack.c.l.b16 %v69
  %v206 = vunpack.c.l.b16 %v70
  %v207 = vunpack.c.l.b16 %v71
  %v208 = vunpack.c.l.b16 %v72
  %v209 = vunpack.c.l.b16 %v73
  %v210 = vunpack.c.l.b16 %v74
  %v211 = vunpack.c.l.b16 %v75
  %v212 = vunpack.c.l.b16 %v76
  %v213 = vunpack.c.l.b16 %v77
  %v214 = vunpack.c.l.b16 %v78
  %v215 = vpack.c.b16 %v152, %v151
  %v216 = vpack.c.b16 %v154, %v153
  %v217 = vpack.c.b16 %v156, %v155
  %v218 = vpack.c.b16 %v158, %v157
  %v219 = vpack.c.b16 %v160, %v159
  %v220 = vpack.c.b16 %v162, %v161
  %v221 = vpack.c.b16 %v164, %v163
  %v222 = vpack.c.b16 %v166, %v165
  %v223 = vpack.c.b16 %v168, %v167
  %v224 = vpack.c.b16 %v170, %v169
  %v225 = vpack.c.b16 %v172, %v171
  %v226 = vpack.c.b16 %v174, %v173
  %v227 = vpack.c.b16 %v176, %v175
  %v228 = vpack.c.b16 %v178, %v177
  %v229 = vpack.c.b16 %v180, %v179
  %v230 = vpack.c.b16 %v182, %v181
  %v231 = vpack.c.b16 %v184, %v183
  %v232 = vpack.c.b16 %v186, %v185
  %v233 = vpack.c.b16 %v188, %v187
  %v234 = vpack.c.b16 %v190, %v189
  %v235 = vpack.c.b16 %v192, %v191
  %v236 = vpack.c.b16 %v194, %v193
  %v237 = vpack.c.b16 %v196, %v195
  %v238 = vpack.c.b16 %v198, %v197
  %v239 = vpack.c.b16 %v200, %v199
  %v240 = vpack.c.b16 %v202, %v201
  %v241 = vpack.c.b16 %v204, %v203
  %v242 = vpack.c.b16 %v206, %v205
  %v243 = vpack.c.b16 %v208, %v207
  %v244 = vpack.c.b16 %v210, %v209
  %v245 = vpack.c.b16 %v212, %v211
  %v246 = vpack.c.b16 %v214, %v213
  %vm247 = vcmask 64512
  %v249 = vsel %vm247, %v215, 0
  %v252 = vsel %vm247, %v216, 0
  %v255 = vsel %vm247, %v217, 0
  %v258 = vsel %vm247, %v218, 0
  %v261 = vsel %vm247, %v219, 0
  %v264 = vsel %vm247, %v220, 0
  %v267 = vsel %vm247, %v221, 0
  %v270 = vsel %vm247, %v222, 0
  %v273 = vsel %vm247, %v223, 0
  %v276 = vsel %vm247, %v224, 0
  %v279 = vsel %vm247, %v225, 0
  %v282 = vsel %vm247, %v226, 0
  %v285 = vsel %vm247, %v227, 0
  %v288 = vsel %vm247, %v228, 0
  %v291 = vsel %vm247, %v229, 0
  %v294 = vsel %vm247, %v230, 0
  %v297 = vsel %vm247, %v231, 0
  %v300 = vsel %vm247, %v232, 0
  %v303 = vsel %vm247, %v233, 0
  %v306 = vsel %vm247, %v234, 0
  %v309 = vsel %vm247, %v235, 0
  %v312 = vsel %vm247, %v236, 0
  %v315 = vsel %vm247, %v237, 0
  %v318 = vsel %vm247, %v238, 0
  %v321 = vsel %vm247, %v239, 0
  %v324 = vsel %vm247, %v240, 0
  %v327 = vsel %vm247, %v241, 0
  %v330 = vsel %vm247, %v242, 0
  %v333 = vsel %vm247, %v243, 0
  %v336 = vsel %vm247, %v244, 0
  %v339 = vsel %vm247, %v245, 0
  %v342 = vsel %vm247, %v246, 0
  %vm344 = vcmask 1043456
  %v346 = vsel %vm344, %v79, 0
  %348 = vmatprep.subr.bf16.mxu0 0
  %349 = vmatpush1.bf16.msra.mxu0 0
  %350 = vmatprep.subr.bf16.mxu0 0
  %351 = vmatpush1.bf16.msra.mxu0 0
  %352 = vmatprep.subr.bf16.mxu0 0
  %353 = vmatpush1.bf16.msra.mxu0 0
  %354 = vmatprep.subr.bf16.mxu0 0
  %355 = vmatpush1.bf16.msra.mxu0 0
  %356 = vmatprep.subr.bf16.mxu0 0
  %357 = vmatpush1.bf16.msra.mxu0 0
  %358 = vmatprep.subr.bf16.mxu0 0
  %359 = vmatpush1.bf16.msra.mxu0 0
  %360 = vmatprep.subr.bf16.mxu0 0
  %361 = vmatpush1.bf16.msra.mxu0 0
  %362 = vmatprep.subr.bf16.mxu0 0
  %363 = vmatpush1.bf16.msra.mxu0 %v346
  %364 = vmatprep.subr.bf16.mxu0 0
  %365 = vmatpush2.bf16.msra.mxu0 0
  %366 = vmatprep.subr.bf16.mxu0 0
  %367 = vmatpush2.bf16.msra.mxu0 0
  %368 = vmatprep.subr.bf16.mxu0 0
  %369 = vmatpush2.bf16.msra.mxu0 0
  %370 = vmatprep.subr.bf16.mxu0 0
  %371 = vmatpush2.bf16.msra.mxu0 0
  %372 = vmatprep.subr.bf16.mxu0 0
  %373 = vmatpush2.bf16.msra.mxu0 0
  %374 = vmatprep.subr.bf16.mxu0 0
  %375 = vmatpush2.bf16.msra.mxu0 0
  %376 = vmatprep.subr.bf16.mxu0 0
  %377 = vmatpush2.bf16.msra.mxu0 0
  %378 = vmatprep.subr.bf16.mxu0 0
  %379 = vmatpush2.bf16.msra.mxu0 0
  %380 = vmatprep.mubr.bf16.mxu0 0
  %381 = vmatmul.mubr.bf16.gmra.mxu0 %v249
  %v382 = vpop.f32.mrf.mxu0
  %v383 = vadd.f32 %v85, %v382
  %v384 = vpop.f32.mrf.mxu0
  %v385 = vpop.f32.mrf.mxu0
  %v386 = vadd.f32 %v85, %v385
  %v387 = vpop.f32.mrf.mxu0
  %388 = vmatprep.mubr.bf16.mxu0 0
  %389 = vmatmul.mubr.bf16.gmra.mxu0 %v252
  %v390 = vpop.f32.mrf.mxu0
  %v391 = vadd.f32 %v85, %v390
  %v392 = vpop.f32.mrf.mxu0
  %v393 = vpop.f32.mrf.mxu0
  %v394 = vadd.f32 %v85, %v393
  %v395 = vpop.f32.mrf.mxu0
  %396 = vmatprep.mubr.bf16.mxu0 0
  %397 = vmatmul.mubr.bf16.gmra.mxu0 %v255
  %v398 = vpop.f32.mrf.mxu0
  %v399 = vadd.f32 %v85, %v398
  %v400 = vpop.f32.mrf.mxu0
  %v401 = vpop.f32.mrf.mxu0
  %v402 = vadd.f32 %v85, %v401
  %v403 = vpop.f32.mrf.mxu0
  %404 = vmatprep.mubr.bf16.mxu0 0
  %405 = vmatmul.mubr.bf16.gmra.mxu0 %v258
  %v406 = vpop.f32.mrf.mxu0
  %v407 = vadd.f32 %v85, %v406
  %v408 = vpop.f32.mrf.mxu0
  %v409 = vpop.f32.mrf.mxu0
  %v410 = vadd.f32 %v85, %v409
  %v411 = vpop.f32.mrf.mxu0
  %412 = vmatprep.mubr.bf16.mxu0 0
  %413 = vmatmul.mubr.bf16.gmra.mxu0 %v261
  %v414 = vpop.f32.mrf.mxu0
  %v415 = vadd.f32 %v85, %v414
  %v416 = vpop.f32.mrf.mxu0
  %v417 = vpop.f32.mrf.mxu0
  %v418 = vadd.f32 %v85, %v417
  %v419 = vpop.f32.mrf.mxu0
  %420 = vmatprep.mubr.bf16.mxu0 0
  %421 = vmatmul.mubr.bf16.gmra.mxu0 %v264
  %v422 = vpop.f32.mrf.mxu0
  %v423 = vadd.f32 %v85, %v422
  %v424 = vpop.f32.mrf.mxu0
  %v425 = vpop.f32.mrf.mxu0
  %v426 = vadd.f32 %v85, %v425
  %v427 = vpop.f32.mrf.mxu0
  %428 = vmatprep.mubr.bf16.mxu0 0
  %429 = vmatmul.mubr.bf16.gmra.mxu0 %v267
  %v430 = vpop.f32.mrf.mxu0
  %v431 = vadd.f32 %v85, %v430
  %v432 = vpop.f32.mrf.mxu0
  %v433 = vpop.f32.mrf.mxu0
  %v434 = vadd.f32 %v85, %v433
  %v435 = vpop.f32.mrf.mxu0
  %436 = vmatprep.mubr.bf16.mxu0 0
  %437 = vmatmul.mubr.bf16.gmra.mxu0 %v270
  %v438 = vpop.f32.mrf.mxu0
  %v439 = vadd.f32 %v85, %v438
  %v440 = vpop.f32.mrf.mxu0
  %v441 = vpop.f32.mrf.mxu0
  %v442 = vadd.f32 %v85, %v441
  %v443 = vpop.f32.mrf.mxu0
  %444 = vmatprep.mubr.bf16.mxu0 0
  %445 = vmatmul.mubr.bf16.gmra.mxu0 %v273
  %v446 = vpop.f32.mrf.mxu0
  %v447 = vadd.f32 %v85, %v446
  %v448 = vpop.f32.mrf.mxu0
  %v449 = vpop.f32.mrf.mxu0
  %v450 = vadd.f32 %v85, %v449
  %v451 = vpop.f32.mrf.mxu0
  %452 = vmatprep.mubr.bf16.mxu0 0
  %453 = vmatmul.mubr.bf16.gmra.mxu0 %v276
  %v454 = vpop.f32.mrf.mxu0
  %v455 = vadd.f32 %v85, %v454
  %v456 = vpop.f32.mrf.mxu0
  %v457 = vpop.f32.mrf.mxu0
  %v458 = vadd.f32 %v85, %v457
  %v459 = vpop.f32.mrf.mxu0
  %460 = vmatprep.mubr.bf16.mxu0 0
  %461 = vmatmul.mubr.bf16.gmra.mxu0 %v279
  %v462 = vpop.f32.mrf.mxu0
  %v463 = vadd.f32 %v85, %v462
  %v464 = vpop.f32.mrf.mxu0
  %v465 = vpop.f32.mrf.mxu0
  %v466 = vadd.f32 %v85, %v465
  %v467 = vpop.f32.mrf.mxu0
  %468 = vmatprep.mubr.bf16.mxu0 0
  %469 = vmatmul.mubr.bf16.gmra.mxu0 %v282
  %v470 = vpop.f32.mrf.mxu0
  %v471 = vadd.f32 %v85, %v470
  %v472 = vpop.f32.mrf.mxu0
  %v473 = vpop.f32.mrf.mxu0
  %v474 = vadd.f32 %v85, %v473
  %v475 = vpop.f32.mrf.mxu0
  %476 = vmatprep.mubr.bf16.mxu0 0
  %477 = vmatmul.mubr.bf16.gmra.mxu0 %v285
  %v478 = vpop.f32.mrf.mxu0
  %v479 = vadd.f32 %v85, %v478
  %v480 = vpop.f32.mrf.mxu0
  %v481 = vpop.f32.mrf.mxu0
  %v482 = vadd.f32 %v85, %v481
  %v483 = vpop.f32.mrf.mxu0
  %484 = vmatprep.mubr.bf16.mxu0 0
  %485 = vmatmul.mubr.bf16.gmra.mxu0 %v288
  %v486 = vpop.f32.mrf.mxu0
  %v487 = vadd.f32 %v85, %v486
  %v488 = vpop.f32.mrf.mxu0
  %v489 = vpop.f32.mrf.mxu0
  %v490 = vadd.f32 %v85, %v489
  %v491 = vpop.f32.mrf.mxu0
  %492 = vmatprep.mubr.bf16.mxu0 0
  %493 = vmatmul.mubr.bf16.gmra.mxu0 %v291
  %v494 = vpop.f32.mrf.mxu0
  %v495 = vadd.f32 %v85, %v494
  %v496 = vpop.f32.mrf.mxu0
  %v497 = vpop.f32.mrf.mxu0
  %v498 = vadd.f32 %v85, %v497
  %v499 = vpop.f32.mrf.mxu0
  %500 = vmatprep.mubr.bf16.mxu0 0
  %501 = vmatmul.mubr.bf16.gmra.mxu0 %v294
  %v502 = vpop.f32.mrf.mxu0
  %v503 = vadd.f32 %v85, %v502
  %v504 = vpop.f32.mrf.mxu0
  %v505 = vpop.f32.mrf.mxu0
  %v506 = vadd.f32 %v85, %v505
  %v507 = vpop.f32.mrf.mxu0
  %508 = vmatprep.mubr.bf16.mxu0 0
  %509 = vmatmul.mubr.bf16.gmra.mxu0 %v297
  %v510 = vpop.f32.mrf.mxu0
  %v511 = vadd.f32 %v85, %v510
  %v512 = vpop.f32.mrf.mxu0
  %v513 = vpop.f32.mrf.mxu0
  %v514 = vadd.f32 %v85, %v513
  %v515 = vpop.f32.mrf.mxu0
  %516 = vmatprep.mubr.bf16.mxu0 0
  %517 = vmatmul.mubr.bf16.gmra.mxu0 %v300
  %v518 = vpop.f32.mrf.mxu0
  %v519 = vadd.f32 %v85, %v518
  %v520 = vpop.f32.mrf.mxu0
  %v521 = vpop.f32.mrf.mxu0
  %v522 = vadd.f32 %v85, %v521
  %v523 = vpop.f32.mrf.mxu0
  %524 = vmatprep.mubr.bf16.mxu0 0
  %525 = vmatmul.mubr.bf16.gmra.mxu0 %v303
  %v526 = vpop.f32.mrf.mxu0
  %v527 = vadd.f32 %v85, %v526
  %v528 = vpop.f32.mrf.mxu0
  %v529 = vpop.f32.mrf.mxu0
  %v530 = vadd.f32 %v85, %v529
  %v531 = vpop.f32.mrf.mxu0
  %532 = vmatprep.mubr.bf16.mxu0 0
  %533 = vmatmul.mubr.bf16.gmra.mxu0 %v306
  %v534 = vpop.f32.mrf.mxu0
  %v535 = vadd.f32 %v85, %v534
  %v536 = vpop.f32.mrf.mxu0
  %v537 = vpop.f32.mrf.mxu0
  %v538 = vadd.f32 %v85, %v537
  %v539 = vpop.f32.mrf.mxu0
  %540 = vmatprep.mubr.bf16.mxu0 0
  %541 = vmatmul.mubr.bf16.gmra.mxu0 %v309
  %v542 = vpop.f32.mrf.mxu0
  %v543 = vadd.f32 %v85, %v542
  %v544 = vpop.f32.mrf.mxu0
  %v545 = vpop.f32.mrf.mxu0
  %v546 = vadd.f32 %v85, %v545
  %v547 = vpop.f32.mrf.mxu0
  %548 = vmatprep.mubr.bf16.mxu0 0
  %549 = vmatmul.mubr.bf16.gmra.mxu0 %v312
  %v550 = vpop.f32.mrf.mxu0
  %v551 = vadd.f32 %v85, %v550
  %v552 = vpop.f32.mrf.mxu0
  %v553 = vpop.f32.mrf.mxu0
  %v554 = vadd.f32 %v85, %v553
  %v555 = vpop.f32.mrf.mxu0
  %556 = vmatprep.mubr.bf16.mxu0 0
  %557 = vmatmul.mubr.bf16.gmra.mxu0 %v315
  %v558 = vpop.f32.mrf.mxu0
  %v559 = vadd.f32 %v85, %v558
  %v560 = vpop.f32.mrf.mxu0
  %v561 = vpop.f32.mrf.mxu0
  %v562 = vadd.f32 %v85, %v561
  %v563 = vpop.f32.mrf.mxu0
  %564 = vmatprep.mubr.bf16.mxu0 0
  %565 = vmatmul.mubr.bf16.gmra.mxu0 %v318
  %v566 = vpop.f32.mrf.mxu0
  %v567 = vadd.f32 %v85, %v566
  %v568 = vpop.f32.mrf.mxu0
  %v569 = vpop.f32.mrf.mxu0
  %v570 = vadd.f32 %v85, %v569
  %v571 = vpop.f32.mrf.mxu0
  %572 = vmatprep.mubr.bf16.mxu0 0
  %573 = vmatmul.mubr.bf16.gmra.mxu0 %v321
  %v574 = vpop.f32.mrf.mxu0
  %v575 = vadd.f32 %v85, %v574
  %v576 = vpop.f32.mrf.mxu0
  %v577 = vpop.f32.mrf.mxu0
  %v578 = vadd.f32 %v85, %v577
  %v579 = vpop.f32.mrf.mxu0
  %580 = vmatprep.mubr.bf16.mxu0 0
  %581 = vmatmul.mubr.bf16.gmra.mxu0 %v324
  %v582 = vpop.f32.mrf.mxu0
  %v583 = vadd.f32 %v85, %v582
  %v584 = vpop.f32.mrf.mxu0
  %v585 = vpop.f32.mrf.mxu0
  %v586 = vadd.f32 %v85, %v585
  %v587 = vpop.f32.mrf.mxu0
  %588 = vmatprep.mubr.bf16.mxu0 0
  %589 = vmatmul.mubr.bf16.gmra.mxu0 %v327
  %v590 = vpop.f32.mrf.mxu0
  %v591 = vadd.f32 %v85, %v590
  %v592 = vpop.f32.mrf.mxu0
  %v593 = vpop.f32.mrf.mxu0
  %v594 = vadd.f32 %v85, %v593
  %v595 = vpop.f32.mrf.mxu0
  %596 = vmatprep.mubr.bf16.mxu0 0
  %597 = vmatmul.mubr.bf16.gmra.mxu0 %v330
  %v598 = vpop.f32.mrf.mxu0
  %v599 = vadd.f32 %v85, %v598
  %v600 = vpop.f32.mrf.mxu0
  %v601 = vpop.f32.mrf.mxu0
  %v602 = vadd.f32 %v85, %v601
  %v603 = vpop.f32.mrf.mxu0
  %604 = vmatprep.mubr.bf16.mxu0 0
  %605 = vmatmul.mubr.bf16.gmra.mxu0 %v333
  %v606 = vpop.f32.mrf.mxu0
  %v607 = vadd.f32 %v85, %v606
  %v608 = vpop.f32.mrf.mxu0
  %v609 = vpop.f32.mrf.mxu0
  %v610 = vadd.f32 %v85, %v609
  %v611 = vpop.f32.mrf.mxu0
  %612 = vmatprep.mubr.bf16.mxu0 0
  %613 = vmatmul.mubr.bf16.gmra.mxu0 %v336
  %v614 = vpop.f32.mrf.mxu0
  %v615 = vadd.f32 %v85, %v614
  %v616 = vpop.f32.mrf.mxu0
  %v617 = vpop.f32.mrf.mxu0
  %v618 = vadd.f32 %v85, %v617
  %v619 = vpop.f32.mrf.mxu0
  %620 = vmatprep.mubr.bf16.mxu0 0
  %621 = vmatmul.mubr.bf16.gmra.mxu0 %v339
  %v622 = vpop.f32.mrf.mxu0
  %v623 = vadd.f32 %v85, %v622
  %v624 = vpop.f32.mrf.mxu0
  %v625 = vpop.f32.mrf.mxu0
  %v626 = vadd.f32 %v85, %v625
  %v627 = vpop.f32.mrf.mxu0
  %628 = vmatprep.mubr.bf16.mxu0 0
  %629 = vmatmul.mubr.bf16.gmra.mxu0 %v342
  %v630 = vpop.f32.mrf.mxu0
  %v631 = vadd.f32 %v85, %v630
  %v632 = vpop.f32.mrf.mxu0
  %v633 = vpop.f32.mrf.mxu0
  %v634 = vadd.f32 %v85, %v633
  %v635 = vpop.f32.mrf.mxu0
  %636 = vdwg.mxu0
  %v637 = vadd.f32 %v383, 3.0
  %v638 = vadd.f32 %v386, 3.0
  %v639 = vadd.f32 %v391, 3.0
  %v640 = vadd.f32 %v394, 3.0
  %v641 = vadd.f32 %v399, 3.0
  %v642 = vadd.f32 %v402, 3.0
  %v643 = vadd.f32 %v407, 3.0
  %v644 = vadd.f32 %v410, 3.0
  %v645 = vadd.f32 %v415, 3.0
  %v646 = vadd.f32 %v418, 3.0
  %v647 = vadd.f32 %v423, 3.0
  %v648 = vadd.f32 %v426, 3.0
  %v649 = vadd.f32 %v431, 3.0
  %v650 = vadd.f32 %v434, 3.0
  %v651 = vadd.f32 %v439, 3.0
  %v652 = vadd.f32 %v442, 3.0
  %v653 = vadd.f32 %v447, 3.0
  %v654 = vadd.f32 %v450, 3.0
  %v655 = vadd.f32 %v455, 3.0
  %v656 = vadd.f32 %v458, 3.0
  %v657 = vadd.f32 %v463, 3.0
  %v658 = vadd.f32 %v466, 3.0
  %v659 = vadd.f32 %v471, 3.0
  %v660 = vadd.f32 %v474, 3.0
  %v661 = vadd.f32 %v479, 3.0
  %v662 = vadd.f32 %v482, 3.0
  %v663 = vadd.f32 %v487, 3.0
  %v664 = vadd.f32 %v490, 3.0
  %v665 = vadd.f32 %v495, 3.0
  %v666 = vadd.f32 %v498, 3.0
  %v667 = vadd.f32 %v503, 3.0
  %v668 = vadd.f32 %v506, 3.0
  %v669 = vadd.f32 %v511, 3.0
  %v670 = vadd.f32 %v514, 3.0
  %v671 = vadd.f32 %v519, 3.0
  %v672 = vadd.f32 %v522, 3.0
  %v673 = vadd.f32 %v527, 3.0
  %v674 = vadd.f32 %v530, 3.0
  %v675 = vadd.f32 %v535, 3.0
  %v676 = vadd.f32 %v538, 3.0
  %v677 = vadd.f32 %v543, 3.0
  %v678 = vadd.f32 %v546, 3.0
  %v679 = vadd.f32 %v551, 3.0
  %v680 = vadd.f32 %v554, 3.0
  %v681 = vadd.f32 %v559, 3.0
  %v682 = vadd.f32 %v562, 3.0
  %v683 = vadd.f32 %v567, 3.0
  %v684 = vadd.f32 %v570, 3.0
  %v685 = vadd.f32 %v575, 3.0
  %v686 = vadd.f32 %v578, 3.0
  %v687 = vadd.f32 %v583, 3.0
  %v688 = vadd.f32 %v586, 3.0
  %v689 = vadd.f32 %v591, 3.0
  %v690 = vadd.f32 %v594, 3.0
  %v691 = vadd.f32 %v599, 3.0
  %v692 = vadd.f32 %v602, 3.0
  %v693 = vadd.f32 %v607, 3.0
  %v694 = vadd.f32 %v610, 3.0
  %v695 = vadd.f32 %v615, 3.0
  %v696 = vadd.f32 %v618, 3.0
  %v697 = vadd.f32 %v623, 3.0
  %v698 = vadd.f32 %v626, 3.0
  %v699 = vadd.f32 %v631, 3.0
  %v700 = vadd.f32 %v634, 3.0
  %v701 = vmax.f32 %v637, 0.0
  %v702 = vmax.f32 %v638, 0.0
  %v703 = vmax.f32 %v639, 0.0
  %v704 = vmax.f32 %v640, 0.0
  %v705 = vmax.f32 %v641, 0.0
  %v706 = vmax.f32 %v642, 0.0
  %v707 = vmax.f32 %v643, 0.0
  %v708 = vmax.f32 %v644, 0.0
  %v709 = vmax.f32 %v645, 0.0
  %v710 = vmax.f32 %v646, 0.0
  %v711 = vmax.f32 %v647, 0.0
  %v712 = vmax.f32 %v648, 0.0
  %v713 = vmax.f32 %v649, 0.0
  %v714 = vmax.f32 %v650, 0.0
  %v715 = vmax.f32 %v651, 0.0
  %v716 = vmax.f32 %v652, 0.0
  %v717 = vmax.f32 %v653, 0.0
  %v718 = vmax.f32 %v654, 0.0
  %v719 = vmax.f32 %v655, 0.0
  %v720 = vmax.f32 %v656, 0.0
  %v721 = vmax.f32 %v657, 0.0
  %v722 = vmax.f32 %v658, 0.0
  %v723 = vmax.f32 %v659, 0.0
  %v724 = vmax.f32 %v660, 0.0
  %v725 = vmax.f32 %v661, 0.0
  %v726 = vmax.f32 %v662, 0.0
  %v727 = vmax.f32 %v663, 0.0
  %v728 = vmax.f32 %v664, 0.0
  %v729 = vmax.f32 %v665, 0.0
  %v730 = vmax.f32 %v666, 0.0
  %v731 = vmax.f32 %v667, 0.0
  %v732 = vmax.f32 %v668, 0.0
  %v733 = vmax.f32 %v669, 0.0
  %v734 = vmax.f32 %v670, 0.0
  %v735 = vmax.f32 %v671, 0.0
  %v736 = vmax.f32 %v672, 0.0
  %v737 = vmax.f32 %v673, 0.0
  %v738 = vmax.f32 %v674, 0.0
  %v739 = vmax.f32 %v675, 0.0
  %v740 = vmax.f32 %v676, 0.0
  %v741 = vmax.f32 %v677, 0.0
  %v742 = vmax.f32 %v678, 0.0
  %v743 = vmax.f32 %v679, 0.0
  %v744 = vmax.f32 %v680, 0.0
  %v745 = vmax.f32 %v681, 0.0
  %v746 = vmax.f32 %v682, 0.0
  %v747 = vmax.f32 %v683, 0.0
  %v748 = vmax.f32 %v684, 0.0
  %v749 = vmax.f32 %v685, 0.0
  %v750 = vmax.f32 %v686, 0.0
  %v751 = vmax.f32 %v687, 0.0
  %v752 = vmax.f32 %v688, 0.0
  %v753 = vmax.f32 %v689, 0.0
  %v754 = vmax.f32 %v690, 0.0
  %v755 = vmax.f32 %v691, 0.0
  %v756 = vmax.f32 %v692, 0.0
  %v757 = vmax.f32 %v693, 0.0
  %v758 = vmax.f32 %v694, 0.0
  %v759 = vmax.f32 %v695, 0.0
  %v760 = vmax.f32 %v696, 0.0
  %v761 = vmax.f32 %v697, 0.0
  %v762 = vmax.f32 %v698, 0.0
  %v763 = vmax.f32 %v699, 0.0
  %v764 = vmax.f32 %v700, 0.0
  %v765 = vmin.f32 %v701, 6.0
  %v766 = vmin.f32 %v702, 6.0
  %v767 = vmin.f32 %v703, 6.0
  %v768 = vmin.f32 %v704, 6.0
  %v769 = vmin.f32 %v705, 6.0
  %v770 = vmin.f32 %v706, 6.0
  %v771 = vmin.f32 %v707, 6.0
  %v772 = vmin.f32 %v708, 6.0
  %v773 = vmin.f32 %v709, 6.0
  %v774 = vmin.f32 %v710, 6.0
  %v775 = vmin.f32 %v711, 6.0
  %v776 = vmin.f32 %v712, 6.0
  %v777 = vmin.f32 %v713, 6.0
  %v778 = vmin.f32 %v714, 6.0
  %v779 = vmin.f32 %v715, 6.0
  %v780 = vmin.f32 %v716, 6.0
  %v781 = vmin.f32 %v717, 6.0
  %v782 = vmin.f32 %v718, 6.0
  %v783 = vmin.f32 %v719, 6.0
  %v784 = vmin.f32 %v720, 6.0
  %v785 = vmin.f32 %v721, 6.0
  %v786 = vmin.f32 %v722, 6.0
  %v787 = vmin.f32 %v723, 6.0
  %v788 = vmin.f32 %v724, 6.0
  %v789 = vmin.f32 %v725, 6.0
  %v790 = vmin.f32 %v726, 6.0
  %v791 = vmin.f32 %v727, 6.0
  %v792 = vmin.f32 %v728, 6.0
  %v793 = vmin.f32 %v729, 6.0
  %v794 = vmin.f32 %v730, 6.0
  %v795 = vmin.f32 %v731, 6.0
  %v796 = vmin.f32 %v732, 6.0
  %v797 = vmin.f32 %v733, 6.0
  %v798 = vmin.f32 %v734, 6.0
  %v799 = vmin.f32 %v735, 6.0
  %v800 = vmin.f32 %v736, 6.0
  %v801 = vmin.f32 %v737, 6.0
  %v802 = vmin.f32 %v738, 6.0
  %v803 = vmin.f32 %v739, 6.0
  %v804 = vmin.f32 %v740, 6.0
  %v805 = vmin.f32 %v741, 6.0
  %v806 = vmin.f32 %v742, 6.0
  %v807 = vmin.f32 %v743, 6.0
  %v808 = vmin.f32 %v744, 6.0
  %v809 = vmin.f32 %v745, 6.0
  %v810 = vmin.f32 %v746, 6.0
  %v811 = vmin.f32 %v747, 6.0
  %v812 = vmin.f32 %v748, 6.0
  %v813 = vmin.f32 %v749, 6.0
  %v814 = vmin.f32 %v750, 6.0
  %v815 = vmin.f32 %v751, 6.0
  %v816 = vmin.f32 %v752, 6.0
  %v817 = vmin.f32 %v753, 6.0
  %v818 = vmin.f32 %v754, 6.0
  %v819 = vmin.f32 %v755, 6.0
  %v820 = vmin.f32 %v756, 6.0
  %v821 = vmin.f32 %v757, 6.0
  %v822 = vmin.f32 %v758, 6.0
  %v823 = vmin.f32 %v759, 6.0
  %v824 = vmin.f32 %v760, 6.0
  %v825 = vmin.f32 %v761, 6.0
  %v826 = vmin.f32 %v762, 6.0
  %v827 = vmin.f32 %v763, 6.0
  %v828 = vmin.f32 %v764, 6.0
  %v829 = vmul.f32 %v383, %v765
  %v830 = vmul.f32 %v386, %v766
  %v831 = vmul.f32 %v391, %v767
  %v832 = vmul.f32 %v394, %v768
  %v833 = vmul.f32 %v399, %v769
  %v834 = vmul.f32 %v402, %v770
  %v835 = vmul.f32 %v407, %v771
  %v836 = vmul.f32 %v410, %v772
  %v837 = vmul.f32 %v415, %v773
  %v838 = vmul.f32 %v418, %v774
  %v839 = vmul.f32 %v423, %v775
  %v840 = vmul.f32 %v426, %v776
  %v841 = vmul.f32 %v431, %v777
  %v842 = vmul.f32 %v434, %v778
  %v843 = vmul.f32 %v439, %v779
  %v844 = vmul.f32 %v442, %v780
  %v845 = vmul.f32 %v447, %v781
  %v846 = vmul.f32 %v450, %v782
  %v847 = vmul.f32 %v455, %v783
  %v848 = vmul.f32 %v458, %v784
  %v849 = vmul.f32 %v463, %v785
  %v850 = vmul.f32 %v466, %v786
  %v851 = vmul.f32 %v471, %v787
  %v852 = vmul.f32 %v474, %v788
  %v853 = vmul.f32 %v479, %v789
  %v854 = vmul.f32 %v482, %v790
  %v855 = vmul.f32 %v487, %v791
  %v856 = vmul.f32 %v490, %v792
  %v857 = vmul.f32 %v495, %v793
  %v858 = vmul.f32 %v498, %v794
  %v859 = vmul.f32 %v503, %v795
  %v860 = vmul.f32 %v506, %v796
  %v861 = vmul.f32 %v511, %v797
  %v862 = vmul.f32 %v514, %v798
  %v863 = vmul.f32 %v519, %v799
  %v864 = vmul.f32 %v522, %v800
  %v865 = vmul.f32 %v527, %v801
  %v866 = vmul.f32 %v530, %v802
  %v867 = vmul.f32 %v535, %v803
  %v868 = vmul.f32 %v538, %v804
  %v869 = vmul.f32 %v543, %v805
  %v870 = vmul.f32 %v546, %v806
  %v871 = vmul.f32 %v551, %v807
  %v872 = vmul.f32 %v554, %v808
  %v873 = vmul.f32 %v559, %v809
  %v874 = vmul.f32 %v562, %v810
  %v875 = vmul.f32 %v567, %v811
  %v876 = vmul.f32 %v570, %v812
  %v877 = vmul.f32 %v575, %v813
  %v878 = vmul.f32 %v578, %v814
  %v879 = vmul.f32 %v583, %v815
  %v880 = vmul.f32 %v586, %v816
  %v881 = vmul.f32 %v591, %v817
  %v882 = vmul.f32 %v594, %v818
  %v883 = vmul.f32 %v599, %v819
  %v884 = vmul.f32 %v602, %v820
  %v885 = vmul.f32 %v607, %v821
  %v886 = vmul.f32 %v610, %v822
  %v887 = vmul.f32 %v615, %v823
  %v888 = vmul.f32 %v618, %v824
  %v889 = vmul.f32 %v623, %v825
  %v890 = vmul.f32 %v626, %v826
  %v891 = vmul.f32 %v631, %v827
  %v892 = vmul.f32 %v634, %v828
  %v893 = vmul.f32 %v829, 0.16666667
  %v894 = vmul.f32 %v830, 0.16666667
  %v895 = vmul.f32 %v831, 0.16666667
  %v896 = vmul.f32 %v832, 0.16666667
  %v897 = vmul.f32 %v833, 0.16666667
  %v898 = vmul.f32 %v834, 0.16666667
  %v899 = vmul.f32 %v835, 0.16666667
  %v900 = vmul.f32 %v836, 0.16666667
  %v901 = vmul.f32 %v837, 0.16666667
  %v902 = vmul.f32 %v838, 0.16666667
  %v903 = vmul.f32 %v839, 0.16666667
  %v904 = vmul.f32 %v840, 0.16666667
  %v905 = vmul.f32 %v841, 0.16666667
  %v906 = vmul.f32 %v842, 0.16666667
  %v907 = vmul.f32 %v843, 0.16666667
  %v908 = vmul.f32 %v844, 0.16666667
  %v909 = vmul.f32 %v845, 0.16666667
  %v910 = vmul.f32 %v846, 0.16666667
  %v911 = vmul.f32 %v847, 0.16666667
  %v912 = vmul.f32 %v848, 0.16666667
  %v913 = vmul.f32 %v849, 0.16666667
  %v914 = vmul.f32 %v850, 0.16666667
  %v915 = vmul.f32 %v851, 0.16666667
  %v916 = vmul.f32 %v852, 0.16666667
  %v917 = vmul.f32 %v853, 0.16666667
  %v918 = vmul.f32 %v854, 0.16666667
  %v919 = vmul.f32 %v855, 0.16666667
  %v920 = vmul.f32 %v856, 0.16666667
  %v921 = vmul.f32 %v857, 0.16666667
  %v922 = vmul.f32 %v858, 0.16666667
  %v923 = vmul.f32 %v859, 0.16666667
  %v924 = vmul.f32 %v860, 0.16666667
  %v925 = vmul.f32 %v861, 0.16666667
  %v926 = vmul.f32 %v862, 0.16666667
  %v927 = vmul.f32 %v863, 0.16666667
  %v928 = vmul.f32 %v864, 0.16666667
  %v929 = vmul.f32 %v865, 0.16666667
  %v930 = vmul.f32 %v866, 0.16666667
  %v931 = vmul.f32 %v867, 0.16666667
  %v932 = vmul.f32 %v868, 0.16666667
  %v933 = vmul.f32 %v869, 0.16666667
  %v934 = vmul.f32 %v870, 0.16666667
  %v935 = vmul.f32 %v871, 0.16666667
  %v936 = vmul.f32 %v872, 0.16666667
  %v937 = vmul.f32 %v873, 0.16666667
  %v938 = vmul.f32 %v874, 0.16666667
  %v939 = vmul.f32 %v875, 0.16666667
  %v940 = vmul.f32 %v876, 0.16666667
  %v941 = vmul.f32 %v877, 0.16666667
  %v942 = vmul.f32 %v878, 0.16666667
  %v943 = vmul.f32 %v879, 0.16666667
  %v944 = vmul.f32 %v880, 0.16666667
  %v945 = vmul.f32 %v881, 0.16666667
  %v946 = vmul.f32 %v882, 0.16666667
  %v947 = vmul.f32 %v883, 0.16666667
  %v948 = vmul.f32 %v884, 0.16666667
  %v949 = vmul.f32 %v885, 0.16666667
  %v950 = vmul.f32 %v886, 0.16666667
  %v951 = vmul.f32 %v887, 0.16666667
  %v952 = vmul.f32 %v888, 0.16666667
  %v953 = vmul.f32 %v889, 0.16666667
  %v954 = vmul.f32 %v890, 0.16666667
  %v955 = vmul.f32 %v891, 0.16666667
  %v956 = vmul.f32 %v892, 0.16666667
  %v957 = vpack.c.bf16 %v894, %v893
  %v958 = vpack.c.bf16 %v896, %v895
  %v959 = vpack.c.bf16 %v898, %v897
  %v960 = vpack.c.bf16 %v900, %v899
  %v961 = vpack.c.bf16 %v902, %v901
  %v962 = vpack.c.bf16 %v904, %v903
  %v963 = vpack.c.bf16 %v906, %v905
  %v964 = vpack.c.bf16 %v908, %v907
  %v965 = vpack.c.bf16 %v910, %v909
  %v966 = vpack.c.bf16 %v912, %v911
  %v967 = vpack.c.bf16 %v914, %v913
  %v968 = vpack.c.bf16 %v916, %v915
  %v969 = vpack.c.bf16 %v918, %v917
  %v970 = vpack.c.bf16 %v920, %v919
  %v971 = vpack.c.bf16 %v922, %v921
  %v972 = vpack.c.bf16 %v924, %v923
  %v973 = vpack.c.bf16 %v926, %v925
  %v974 = vpack.c.bf16 %v928, %v927
  %v975 = vpack.c.bf16 %v930, %v929
  %v976 = vpack.c.bf16 %v932, %v931
  %v977 = vpack.c.bf16 %v934, %v933
  %v978 = vpack.c.bf16 %v936, %v935
  %v979 = vpack.c.bf16 %v938, %v937
  %v980 = vpack.c.bf16 %v940, %v939
  %v981 = vpack.c.bf16 %v942, %v941
  %v982 = vpack.c.bf16 %v944, %v943
  %v983 = vpack.c.bf16 %v946, %v945
  %v984 = vpack.c.bf16 %v948, %v947
  %v985 = vpack.c.bf16 %v950, %v949
  %v986 = vpack.c.bf16 %v952, %v951
  %v987 = vpack.c.bf16 %v954, %v953
  %v988 = vpack.c.bf16 %v956, %v955
  %v1021 = vunpack.c.l.b16 %v957
  %v1022 = vunpack.c.h.b16 %v957
  %v1023 = vunpack.c.l.b16 %v958
  %v1024 = vunpack.c.h.b16 %v958
  %v1025 = vunpack.c.l.b16 %v959
  %v1026 = vunpack.c.h.b16 %v959
  %v1027 = vunpack.c.l.b16 %v960
  %v1028 = vunpack.c.h.b16 %v960
  %v1029 = vunpack.c.l.b16 %v961
  %v1030 = vunpack.c.h.b16 %v961
  %v1031 = vunpack.c.l.b16 %v962
  %v1032 = vunpack.c.h.b16 %v962
  %v1033 = vunpack.c.l.b16 %v963
  %v1034 = vunpack.c.h.b16 %v963
  %v1035 = vunpack.c.l.b16 %v964
  %v1036 = vunpack.c.h.b16 %v964
  %v1037 = vunpack.c.l.b16 %v965
  %v1038 = vunpack.c.h.b16 %v965
  %v1039 = vunpack.c.l.b16 %v966
  %v1040 = vunpack.c.h.b16 %v966
  %v1041 = vunpack.c.l.b16 %v967
  %v1042 = vunpack.c.h.b16 %v967
  %v1043 = vunpack.c.l.b16 %v968
  %v1044 = vunpack.c.h.b16 %v968
  %v1045 = vunpack.c.l.b16 %v969
  %v1046 = vunpack.c.h.b16 %v969
  %v1047 = vunpack.c.l.b16 %v970
  %v1048 = vunpack.c.h.b16 %v970
  %v1049 = vunpack.c.l.b16 %v971
  %v1050 = vunpack.c.h.b16 %v971
  %v1051 = vunpack.c.l.b16 %v972
  %v1052 = vunpack.c.h.b16 %v972
  %v1053 = vunpack.c.l.b16 %v973
  %v1054 = vunpack.c.h.b16 %v973
  %v1055 = vunpack.c.l.b16 %v974
  %v1056 = vunpack.c.h.b16 %v974
  %v1057 = vunpack.c.l.b16 %v975
  %v1058 = vunpack.c.h.b16 %v975
  %v1059 = vunpack.c.l.b16 %v976
  %v1060 = vunpack.c.h.b16 %v976
  %v1061 = vunpack.c.l.b16 %v977
  %v1062 = vunpack.c.h.b16 %v977
  %v1063 = vunpack.c.l.b16 %v978
  %v1064 = vunpack.c.h.b16 %v978
  %v1065 = vunpack.c.l.b16 %v979
  %v1066 = vunpack.c.h.b16 %v979
  %v1067 = vunpack.c.l.b16 %v980
  %v1068 = vunpack.c.h.b16 %v980
  %v1069 = vunpack.c.l.b16 %v981
  %v1070 = vunpack.c.h.b16 %v981
  %v1071 = vunpack.c.l.b16 %v982
  %v1072 = vunpack.c.h.b16 %v982
  %v1073 = vunpack.c.l.b16 %v983
  %v1074 = vunpack.c.h.b16 %v983
  %v1075 = vunpack.c.l.b16 %v984
  %v1076 = vunpack.c.h.b16 %v984
  %v1077 = vunpack.c.l.b16 %v985
  %v1078 = vunpack.c.h.b16 %v985
  %v1079 = vunpack.c.l.b16 %v986
  %v1080 = vunpack.c.h.b16 %v986
  %v1081 = vunpack.c.l.b16 %v987
  %v1082 = vunpack.c.h.b16 %v987
  %v1083 = vunpack.c.l.b16 %v988
  %v1084 = vunpack.c.h.b16 %v988
  %v1085 = vpack.c.b16 %v1021, %v1021
  %v1086 = vpack.c.b16 %v1022, %v1022
  %v1087 = vpack.c.b16 %v1023, %v1023
  %v1088 = vpack.c.b16 %v1024, %v1024
  %v1089 = vpack.c.b16 %v1025, %v1025
  %v1090 = vpack.c.b16 %v1026, %v1026
  %v1091 = vpack.c.b16 %v1027, %v1027
  %v1092 = vpack.c.b16 %v1028, %v1028
  %v1093 = vpack.c.b16 %v1029, %v1029
  %v1094 = vpack.c.b16 %v1030, %v1030
  %v1095 = vpack.c.b16 %v1031, %v1031
  %v1096 = vpack.c.b16 %v1032, %v1032
  %v1097 = vpack.c.b16 %v1033, %v1033
  %v1098 = vpack.c.b16 %v1034, %v1034
  %v1099 = vpack.c.b16 %v1035, %v1035
  %v1100 = vpack.c.b16 %v1036, %v1036
  %v1101 = vpack.c.b16 %v1037, %v1037
  %v1102 = vpack.c.b16 %v1038, %v1038
  %v1103 = vpack.c.b16 %v1039, %v1039
  %v1104 = vpack.c.b16 %v1040, %v1040
  %v1105 = vpack.c.b16 %v1041, %v1041
  %v1106 = vpack.c.b16 %v1042, %v1042
  %v1107 = vpack.c.b16 %v1043, %v1043
  %v1108 = vpack.c.b16 %v1044, %v1044
  %v1109 = vpack.c.b16 %v1045, %v1045
  %v1110 = vpack.c.b16 %v1046, %v1046
  %v1111 = vpack.c.b16 %v1047, %v1047
  %v1112 = vpack.c.b16 %v1048, %v1048
  %v1113 = vpack.c.b16 %v1049, %v1049
  %v1114 = vpack.c.b16 %v1050, %v1050
  %v1115 = vpack.c.b16 %v1051, %v1051
  %v1116 = vpack.c.b16 %v1052, %v1052
  %v1117 = vpack.c.b16 %v1053, %v1053
  %v1118 = vpack.c.b16 %v1054, %v1054
  %v1119 = vpack.c.b16 %v1055, %v1055
  %v1120 = vpack.c.b16 %v1056, %v1056
  %v1121 = vpack.c.b16 %v1057, %v1057
  %v1122 = vpack.c.b16 %v1058, %v1058
  %v1123 = vpack.c.b16 %v1059, %v1059
  %v1124 = vpack.c.b16 %v1060, %v1060
  %v1125 = vpack.c.b16 %v1061, %v1061
  %v1126 = vpack.c.b16 %v1062, %v1062
  %v1127 = vpack.c.b16 %v1063, %v1063
  %v1128 = vpack.c.b16 %v1064, %v1064
  %v1129 = vpack.c.b16 %v1065, %v1065
  %v1130 = vpack.c.b16 %v1066, %v1066
  %v1131 = vpack.c.b16 %v1067, %v1067
  %v1132 = vpack.c.b16 %v1068, %v1068
  %v1133 = vpack.c.b16 %v1069, %v1069
  %v1134 = vpack.c.b16 %v1070, %v1070
  %v1135 = vpack.c.b16 %v1071, %v1071
  %v1136 = vpack.c.b16 %v1072, %v1072
  %v1137 = vpack.c.b16 %v1073, %v1073
  %v1138 = vpack.c.b16 %v1074, %v1074
  %v1139 = vpack.c.b16 %v1075, %v1075
  %v1140 = vpack.c.b16 %v1076, %v1076
  %v1141 = vpack.c.b16 %v1077, %v1077
  %v1142 = vpack.c.b16 %v1078, %v1078
  %v1143 = vpack.c.b16 %v1079, %v1079
  %v1144 = vpack.c.b16 %v1080, %v1080
  %v1145 = vpack.c.b16 %v1081, %v1081
  %v1146 = vpack.c.b16 %v1082, %v1082
  %v1147 = vpack.c.b16 %v1083, %v1083
  %v1148 = vpack.c.b16 %v1084, %v1084
  %1213 = vst [vmem:[%s3] sm:$0xf] %v1085
  %1214 = vst [vmem:[%s3 + $0x4] sm:$0xf] %v1086
  %1215 = vst [vmem:[%s3 + $0x8] sm:$0xf] %v1087
  %1216 = vst [vmem:[%s3 + $0xc] sm:$0xf] %v1088
  %1217 = vst [vmem:[%s3 + $0x10] sm:$0xf] %v1089
  %1218 = vst [vmem:[%s3 + $0x14] sm:$0xf] %v1090
  %1219 = vst [vmem:[%s3 + $0x18] sm:$0xf] %v1091
  %1220 = vst [vmem:[%s3 + $0x1c] sm:$0xf] %v1092
  %1221 = vst [vmem:[%s3 + $0x20] sm:$0xf] %v1093
  %1222 = vst [vmem:[%s3 + $0x24] sm:$0xf] %v1094
  %1223 = vst [vmem:[%s3 + $0x28] sm:$0xf] %v1095
  %1224 = vst [vmem:[%s3 + $0x2c] sm:$0xf] %v1096
  %1225 = vst [vmem:[%s3 + $0x30] sm:$0xf] %v1097
  %1226 = vst [vmem:[%s3 + $0x34] sm:$0xf] %v1098
  %1227 = vst [vmem:[%s3 + $0x38] sm:$0xf] %v1099
  %1228 = vst [vmem:[%s3 + $0x3c] sm:$0xf] %v1100
  %1229 = vst [vmem:[%s3 + $0x40] sm:$0xf] %v1101
  %1230 = vst [vmem:[%s3 + $0x44] sm:$0xf] %v1102
  %1231 = vst [vmem:[%s3 + $0x48] sm:$0xf] %v1103
  %1232 = vst [vmem:[%s3 + $0x4c] sm:$0xf] %v1104
  %1233 = vst [vmem:[%s3 + $0x50] sm:$0xf] %v1105
  %1234 = vst [vmem:[%s3 + $0x54] sm:$0xf] %v1106
  %1235 = vst [vmem:[%s3 + $0x58] sm:$0xf] %v1107
  %1236 = vst [vmem:[%s3 + $0x5c] sm:$0xf] %v1108
  %1237 = vst [vmem:[%s3 + $0x60] sm:$0xf] %v1109
  %1238 = vst [vmem:[%s3 + $0x64] sm:$0xf] %v1110
  %1239 = vst [vmem:[%s3 + $0x68] sm:$0xf] %v1111
  %1240 = vst [vmem:[%s3 + $0x6c] sm:$0xf] %v1112
  %1241 = vst [vmem:[%s3 + $0x70] sm:$0xf] %v1113
  %1242 = vst [vmem:[%s3 + $0x74] sm:$0xf] %v1114
  %1243 = vst [vmem:[%s3 + $0x78] sm:$0xf] %v1115
  %1244 = vst [vmem:[%s3 + $0x7c] sm:$0xf] %v1116
  %1245 = vst [vmem:[%s3 + $0x80] sm:$0xf] %v1117
  %1246 = vst [vmem:[%s3 + $0x84] sm:$0xf] %v1118
  %1247 = vst [vmem:[%s3 + $0x88] sm:$0xf] %v1119
  %1248 = vst [vmem:[%s3 + $0x8c] sm:$0xf] %v1120
  %1249 = vst [vmem:[%s3 + $0x90] sm:$0xf] %v1121
  %1250 = vst [vmem:[%s3 + $0x94] sm:$0xf] %v1122
  %1251 = vst [vmem:[%s3 + $0x98] sm:$0xf] %v1123
  %1252 = vst [vmem:[%s3 + $0x9c] sm:$0xf] %v1124
  %1253 = vst [vmem:[%s3 + $0xa0] sm:$0xf] %v1125
  %1254 = vst [vmem:[%s3 + $0xa4] sm:$0xf] %v1126
  %1255 = vst [vmem:[%s3 + $0xa8] sm:$0xf] %v1127
  %1256 = vst [vmem:[%s3 + $0xac] sm:$0xf] %v1128
  %1257 = vst [vmem:[%s3 + $0xb0] sm:$0xf] %v1129
  %1258 = vst [vmem:[%s3 + $0xb4] sm:$0xf] %v1130
  %1259 = vst [vmem:[%s3 + $0xb8] sm:$0xf] %v1131
  %1260 = vst [vmem:[%s3 + $0xbc] sm:$0xf] %v1132
  %1261 = vst [vmem:[%s3 + $0xc0] sm:$0xf] %v1133
  %1262 = vst [vmem:[%s3 + $0xc4] sm:$0xf] %v1134
  %1263 = vst [vmem:[%s3 + $0xc8] sm:$0xf] %v1135
  %1264 = vst [vmem:[%s3 + $0xcc] sm:$0xf] %v1136
  %1265 = vst [vmem:[%s3 + $0xd0] sm:$0xf] %v1137
  %1266 = vst [vmem:[%s3 + $0xd4] sm:$0xf] %v1138
  %1267 = vst [vmem:[%s3 + $0xd8] sm:$0xf] %v1139
  %1268 = vst [vmem:[%s3 + $0xdc] sm:$0xf] %v1140
  %1269 = vst [vmem:[%s3 + $0xe0] sm:$0xf] %v1141
  %1270 = vst [vmem:[%s3 + $0xe4] sm:$0xf] %v1142
  %1271 = vst [vmem:[%s3 + $0xe8] sm:$0xf] %v1143
  %1272 = vst [vmem:[%s3 + $0xec] sm:$0xf] %v1144
  %1273 = vst [vmem:[%s3 + $0xf0] sm:$0xf] %v1145
  %1274 = vst [vmem:[%s3 + $0xf4] sm:$0xf] %v1146
  %1275 = vst [vmem:[%s3 + $0xf8] sm:$0xf] %v1147
  %1276 = vst [vmem:[%s3 + $0xfc] sm:$0xf] %v1148
  // Predicated region
  $region14: #{block_forward.4} parent=0 // pred_check
    _
  $region15: #{block_forward.4} parent=0 // pred_check_branch
    %1278 = sbr.rel (0) target = $region17
  $region16: #{block_forward.4} parent=0 // pred_region
    _
  $region17: #{block_forward.4} parent=0 // pred_fallthru
    _
  // Predicated region
  $region18: #{block_forward.4} parent=0 // pred_check
    _
  $region19: #{block_forward.4} parent=0 // pred_check_branch
    %1280 = sbr.rel (0) target = $region21
  $region20: #{block_forward.4} parent=0 // pred_region
    _
  $region21: #{block_forward.4} parent=0 // pred_fallthru
    _

// kernel: block_forward.6
$region0: #{block_forward.6}
  #allocation0 [shape = 'u32[]', space=smem, size = 0x4, offset = 0x4, fixed_abs, tag = 'smem constant byte address 0x4 - core index']
  #allocation1 [shape = 'u32[144,128]{1,0:T(1,128)}', space=vmem, size = 0x12000, scoped, tag = 'internal scratch']
  %s0 = inlined_call_operand.vmem [shape: bf16[2,256,128], index: 0, kind: input, shape index: {}]
  %s1 = inlined_call_operand.vmem [shape: bf16[128,128], index: 1, kind: input, shape index: {}]
  %s2 = inlined_call_operand.vmem [shape: f32[1,128], index: 2, kind: input, shape index: {}]
  %s3 = inlined_call_operand.vmem [shape: bf16[2,256,128], index: 3, kind: output, shape index: {0}]
  %s4 = inlined_call_operand.vmem [shape: f32[2,1,128], index: 4, kind: output, shape index: {1}]
  %5 = xla_tuple %s3, %s4
  %s6 = sld [smem:[#allocation0]]
  $region57: #{block_forward.6} parent=0
    _
  %s8 = ssub.s32 1, %s6
  %s9 = scalar_select 0, %s8, %s6
  loop: start=0, step=1, limit=4
  $region2: #{block_forward.6} parent=0 // loop_pre_header
    _
  $region3: #{block_forward.6} parent=0 // loop_header
    %s11 = sphi 0, %s15
    %p12 = scmp.ge.s32.totalorder %s11, 4
    %s18 = sphi 0, %s30
    %s19 = sphi 0, %s26
    %s20 = sphi 0, %s18
    %s21 = sphi 0, %s19
    %s22 = sphi 0, %s20
    %s23 = sphi 0, %s21
    %s35 = sphi 0, %s37
    %s38 = sphi 0, %s35
    %s39 = sphi 0, %s38
    %s55 = sphi 0, %s39
    %s59 = sphi 0, %s59
    %s61 = sphi 0, %s59
    %s62 = sphi 0, %s61
    %s76 = sphi 0, %s62
    %s80 = sphi 0, %s80
    %s82 = sphi 0, %s80
    %s83 = sphi 0, %s82
    %s97 = sphi 0, %s83
    %s105 = sphi 0, %s107
    %s108 = sphi 0, %s105
    %s109 = sphi 0, %s108
    %s125 = sphi 0, %s109
    %s131 = sphi 0, %s133
    %s134 = sphi 0, %s131
    %s135 = sphi 0, %s134
    %s151 = sphi 0, %s135
  $region4: #{block_forward.6} parent=0 // loop_header_branch
    %14 = sbr.rel (%p12) target = $region8
  $region5: #{block_forward.6} parent=0 // loop_body
    %s16 = ssub.s32 %s11, 1
    %s17 = ssub.s32 %s11, 2
    %s24 = sadd.s32 1, %s19
    %p25 = scmp.ge.s32.totalorder %s24, 1
    %s26 = scalar_select %p25, 0, %s24
    %s27 = sadd.s32 1, %s18
    %s28 = scalar_select %p25, %s27, %s18
    %p29 = scmp.ge.s32.totalorder %s28, 2
    %s30 = scalar_select %p29, 0, %s28
    %s31 = ssub.s32 %s18, %s30
    %s32 = ssub.s32 %s19, %s26
    %s33 = sor.u32 %s31, %s32
    %p34 = scmp.eq.s32.totalorder %s33, 0
    %s36 = sadd.s32 %s35, 1
    %s37 = scalar_select %p34, %s35, %s36
    %p40 = pneg %p34
    %p41 = scmp.eq.s32.totalorder %s11, 1
    %p42 = por %p40, %p41
    %p43 = scmp.ne.s32.totalorder %s35, %s38
    %p44 = scmp.eq.s32.totalorder %s11, 0
    %p45 = por %p43, %p44
    %p46 = scmp.ne.s32.totalorder %s35, %s38
    %p47 = scmp.eq.s32.totalorder %s16, 1
    %p48 = por %p46, %p47
    %p49 = scmp.ne.s32.totalorder %s38, %s39
    %p50 = scmp.eq.s32.totalorder %s16, 0
    %p51 = por %p49, %p50
    %p52 = scmp.ne.s32.totalorder %s38, %s39
    %p53 = scmp.eq.s32.totalorder %s17, 1
    %p54 = por %p52, %p53
    %p56 = scmp.ne.s32.totalorder %s39, %s55
    %p57 = scmp.eq.s32.totalorder %s17, 0
    %p58 = por %p56, %p57
    %s60 = sadd.s32 %s59, 1
    %p63 = scmp.eq.s32.totalorder %s11, 1
    %p64 = scmp.ne.s32.totalorder %s59, %s61
    %p65 = scmp.eq.s32.totalorder %s11, 0
    %p66 = por %p64, %p65
    %p67 = scmp.ne.s32.totalorder %s59, %s61
    %p68 = scmp.eq.s32.totalorder %s16, 1
    %p69 = por %p67, %p68
    %p70 = scmp.ne.s32.totalorder %s61, %s62
    %p71 = scmp.eq.s32.totalorder %s16, 0
    %p72 = por %p70, %p71
    %p73 = scmp.ne.s32.totalorder %s61, %s62
    %p74 = scmp.eq.s32.totalorder %s17, 1
    %p75 = por %p73, %p74
    %p77 = scmp.ne.s32.totalorder %s62, %s76
    %p78 = scmp.eq.s32.totalorder %s17, 0
    %p79 = por %p77, %p78
    %s81 = sadd.s32 %s80, 1
    %p84 = scmp.eq.s32.totalorder %s11, 1
    %p85 = scmp.ne.s32.totalorder %s80, %s82
    %p86 = scmp.eq.s32.totalorder %s11, 0
    %p87 = por %p85, %p86
    %p88 = scmp.ne.s32.totalorder %s80, %s82
    %p89 = scmp.eq.s32.totalorder %s16, 1
    %p90 = por %p88, %p89
    %p91 = scmp.ne.s32.totalorder %s82, %s83
    %p92 = scmp.eq.s32.totalorder %s16, 0
    %p93 = por %p91, %p92
    %p94 = scmp.ne.s32.totalorder %s82, %s83
    %p95 = scmp.eq.s32.totalorder %s17, 1
    %p96 = por %p94, %p95
    %p98 = scmp.ne.s32.totalorder %s83, %s97
    %p99 = scmp.eq.s32.totalorder %s17, 0
    %p100 = por %p98, %p99
    %s101 = ssub.s32 %s18, %s30
    %s102 = ssub.s32 %s19, %s26
    %s103 = sor.u32 %s101, %s102
    %p104 = scmp.eq.s32.totalorder %s103, 0
    %s106 = sadd.s32 %s105, 1
    %s107 = scalar_select %p104, %s105, %s106
    %p110 = pneg %p104
    %p111 = scmp.eq.s32.totalorder %s11, 1
    %p112 = por %p110, %p111
    %p113 = scmp.ne.s32.totalorder %s105, %s108
    %p114 = scmp.eq.s32.totalorder %s11, 0
    %p115 = por %p113, %p114
    %p116 = scmp.ne.s32.totalorder %s105, %s108
    %p117 = scmp.eq.s32.totalorder %s16, 1
    %p118 = por %p116, %p117
    %p119 = scmp.ne.s32.totalorder %s108, %s109
    %p120 = scmp.eq.s32.totalorder %s16, 0
    %p121 = por %p119, %p120
    %p122 = scmp.ne.s32.totalorder %s108, %s109
    %p123 = scmp.eq.s32.totalorder %s17, 1
    %p124 = por %p122, %p123
    %p126 = scmp.ne.s32.totalorder %s109, %s125
    %p127 = scmp.eq.s32.totalorder %s17, 0
    %p128 = por %p126, %p127
    %s129 = ssub.s32 %s18, %s30
    %p130 = scmp.eq.s32.totalorder %s129, 0
    %s132 = sadd.s32 %s131, 1
    %s133 = scalar_select %p130, %s131, %s132
    %p136 = pneg %p130
    %p137 = scmp.eq.s32.totalorder %s11, 1
    %p138 = por %p136, %p137
    %p139 = scmp.ne.s32.totalorder %s131, %s134
    %p140 = scmp.eq.s32.totalorder %s11, 0
    %p141 = por %p139, %p140
    %p142 = scmp.ne.s32.totalorder %s131, %s134
    %p143 = scmp.eq.s32.totalorder %s16, 1
    %p144 = por %p142, %p143
    %p145 = scmp.ne.s32.totalorder %s134, %s135
    %p146 = scmp.eq.s32.totalorder %s16, 0
    %p147 = por %p145, %p146
    %p148 = scmp.ne.s32.totalorder %s134, %s135
    %p149 = scmp.eq.s32.totalorder %s17, 1
    %p150 = por %p148, %p149
    %p152 = scmp.ne.s32.totalorder %s135, %s151
    %p153 = scmp.eq.s32.totalorder %s17, 0
    %p154 = por %p152, %p153
    %p155 = scmp.le.s32.totalorder 1, %s11
    %p156 = scmp.lt.s32.totalorder %s11, 3
    %p157 = pnand %p155, %p156
    %p158 = pneg %p157
    // Predicated region
    $region9: #{block_forward.6} parent=5 // pred_check
      _
    $region10: #{block_forward.6} parent=5 // pred_check_branch
      %160 = sbr.rel (%p157) target = $region12
    $region11: #{block_forward.6} parent=5 // pred_region
      %s161 = ssub.s32 %s11, 1
      // Predicated region
      $region13: #{block_forward.6} parent=11 // pred_check
        %p162 = pneg %p72
      $region14: #{block_forward.6} parent=11 // pred_check_branch
        %164 = sbr.rel (%p162) target = $region16
      $region15: #{block_forward.6} parent=11 // pred_region
        _
      $region16: #{block_forward.6} parent=11 // pred_fallthru
        _
      // Predicated region
      $region17: #{block_forward.6} parent=11 // pred_check
        %p165 = pneg %p93
      $region18: #{block_forward.6} parent=11 // pred_check_branch
        %167 = sbr.rel (%p165) target = $region20
      $region19: #{block_forward.6} parent=11 // pred_region
        _
      $region20: #{block_forward.6} parent=11 // pred_fallthru
        _
    $region12: #{block_forward.6} parent=5 // pred_fallthru
      _
    %p168 = scmp.lt.s32.totalorder %s11, 2
    // Predicated region
    $region21: #{block_forward.6} parent=5 // pred_check
      %p169 = pneg %p168
    $region22: #{block_forward.6} parent=5 // pred_check_branch
      %171 = sbr.rel (%p169) target = $region24
    $region23: #{block_forward.6} parent=5 // pred_region
      // Predicated region
      $region25: #{block_forward.6} parent=23 // pred_check
        %p172 = pneg %p45
      $region26: #{block_forward.6} parent=23 // pred_check_branch
        %174 = sbr.rel (%p172) target = $region28
      $region27: #{block_forward.6} parent=23 // pred_region
        %s175 = smul.u32 32, %s19
        %p176 = scmp.lt.s32.totalorder %s18, 1
        %s177 = scalar_select %p176, %s18, 1
        %p178 = scmp.lt.s32.totalorder %s175, 31
        %s179 = scalar_select %p178, %s175, 31
        %s180 = smul.addr %s177, 32
        %s181 = sadd.s32 %s179, %s180
        %s182 = smul.addr %s181, 4
        %s183 = scalar_lea.vmem %s0, %s182
        %s184 = smul.u32 32, %s19
      $region28: #{block_forward.6} parent=23 // pred_fallthru
        _
    $region24: #{block_forward.6} parent=5 // pred_fallthru
      _
    %p185 = scmp.le.s32.totalorder 1, %s11
    %p186 = scmp.lt.s32.totalorder %s11, 3
    %p187 = pnand %p185, %p186
    %p188 = pneg %p187
    // Predicated region
    $region29: #{block_forward.6} parent=5 // pred_check
      _
    $region30: #{block_forward.6} parent=5 // pred_check_branch
      %190 = sbr.rel (%p187) target = $region32
    $region31: #{block_forward.6} parent=5 // pred_region
      %s191 = ssub.s32 %s11, 1
      %s192 = smul.u32 32, %s21
      %p193 = scmp.lt.s32.totalorder %s20, 1
      %s194 = scalar_select %p193, %s20, 1
      %p195 = scmp.lt.s32.totalorder %s192, 31
      %s196 = scalar_select %p195, %s192, 31
      %s197 = smul.addr %s194, 32
      %s198 = sadd.s32 %s196, %s197
      %s199 = smul.addr %s198, 4
      %s200 = scalar_lea.vmem %s0, %s199
      %p201 = pneg %p51
      %p202 = pneg %p48
      %p203 = pneg %p72
      %p204 = pneg %p69
      %p205 = pneg %p93
      %p206 = pneg %p90
      %p207 = pneg %p121
      %p208 = pneg %p118
      %s209 = smul.u32 32, %s21
      %p210 = scmp.lt.s32.totalorder %s20, 1
      %s211 = scalar_select %p210, %s20, 1
      %p212 = scmp.lt.s32.totalorder %s209, 31
      %s213 = scalar_select %p212, %s209, 31
      %s214 = smul.addr %s211, 32
      %s215 = sadd.s32 %s213, %s214
      %s216 = smul.addr %s215, 4
      %s217 = scalar_lea.vmem %s3, %s216
      %p218 = pneg %p147
      %p219 = pneg %p144
      %p220 = scmp.lt.s32.totalorder %s20, 1
      %s221 = scalar_select %p220, %s20, 1
      %s222 = scalar_lea.vmem %s4, %s221
      %s223 = smul.u32 32, %s21
      %p224 = scmp.lt.s32.totalorder %s20, 1
      %s225 = scalar_select %p224, %s20, 1
      %p226 = scmp.lt.s32.totalorder %s223, 31
      %s227 = scalar_select %p226, %s223, 31
      %s228 = smul.addr %s225, 32
      %s229 = sadd.s32 %s227, %s228
      %s230 = smul.addr %s229, 4
      %s231 = scalar_lea.vmem %s0, %s230
      %s232 = smul.u32 32, %s21
      %s233 = smul.u32 32, %s21
      %p234 = scmp.lt.s32.totalorder %s20, 1
      %s235 = scalar_select %p234, %s20, 1
      %p236 = scmp.lt.s32.totalorder %s233, 31
      %s237 = scalar_select %p236, %s233, 31
      %s238 = smul.addr %s235, 32
      %s239 = sadd.s32 %s237, %s238
      %s240 = smul.addr %s239, 4
      %s241 = scalar_lea.vmem %s3, %s240
      %s242 = smul.u32 32, %s21
      %p243 = scmp.lt.s32.totalorder %s20, 1
      %s244 = scalar_select %p243, %s20, 1
      %s245 = scalar_lea.vmem %s4, %s244
      %v247 = vld [vmem:[%s231] sm:$0xf]
      %v248 = vld [vmem:[%s231 + $0x4] sm:$0xf]
      %v249 = vld [vmem:[%s231 + $0x8] sm:$0xf]
      %v250 = vld [vmem:[%s231 + $0xc] sm:$0xf]
      %v251 = vld [vmem:[%s231 + $0x10] sm:$0xf]
      %v252 = vld [vmem:[%s231 + $0x14] sm:$0xf]
      %v253 = vld [vmem:[%s231 + $0x18] sm:$0xf]
      %v254 = vld [vmem:[%s231 + $0x1c] sm:$0xf]
      %v255 = vld [vmem:[%s231 + $0x20] sm:$0xf]
      %v256 = vld [vmem:[%s231 + $0x24] sm:$0xf]
      %v257 = vld [vmem:[%s231 + $0x28] sm:$0xf]
      %v258 = vld [vmem:[%s231 + $0x2c] sm:$0xf]
      %v259 = vld [vmem:[%s231 + $0x30] sm:$0xf]
      %v260 = vld [vmem:[%s231 + $0x34] sm:$0xf]
      %v261 = vld [vmem:[%s231 + $0x38] sm:$0xf]
      %v262 = vld [vmem:[%s231 + $0x3c] sm:$0xf]
      %v263 = vld [vmem:[%s231 + $0x40] sm:$0xf]
      %v264 = vld [vmem:[%s231 + $0x44] sm:$0xf]
      %v265 = vld [vmem:[%s231 + $0x48] sm:$0xf]
      %v266 = vld [vmem:[%s231 + $0x4c] sm:$0xf]
      %v267 = vld [vmem:[%s231 + $0x50] sm:$0xf]
      %v268 = vld [vmem:[%s231 + $0x54] sm:$0xf]
      %v269 = vld [vmem:[%s231 + $0x58] sm:$0xf]
      %v270 = vld [vmem:[%s231 + $0x5c] sm:$0xf]
      %v271 = vld [vmem:[%s231 + $0x60] sm:$0xf]
      %v272 = vld [vmem:[%s231 + $0x64] sm:$0xf]
      %v273 = vld [vmem:[%s231 + $0x68] sm:$0xf]
      %v274 = vld [vmem:[%s231 + $0x6c] sm:$0xf]
      %v275 = vld [vmem:[%s231 + $0x70] sm:$0xf]
      %v276 = vld [vmem:[%s231 + $0x74] sm:$0xf]
      %v277 = vld [vmem:[%s231 + $0x78] sm:$0xf]
      %v278 = vld [vmem:[%s231 + $0x7c] sm:$0xf]
      %v279 = vld [vmem:[%s1] sm:$0xf]
      %v280 = vld [vmem:[%s1 + $0x4] sm:$0xf]
      %v281 = vld [vmem:[%s1 + $0x8] sm:$0xf]
      %v282 = vld [vmem:[%s1 + $0xc] sm:$0xf]
      %v283 = vld [vmem:[%s1 + $0x10] sm:$0xf]
      %v284 = vld [vmem:[%s1 + $0x14] sm:$0xf]
      %v285 = vld [vmem:[%s1 + $0x18] sm:$0xf]
      %v286 = vld [vmem:[%s1 + $0x1c] sm:$0xf]
      %v287 = vld [vmem:[%s1 + $0x20] sm:$0xf]
      %v288 = vld [vmem:[%s1 + $0x24] sm:$0xf]
      %v289 = vld [vmem:[%s1 + $0x28] sm:$0xf]
      %v290 = vld [vmem:[%s1 + $0x2c] sm:$0xf]
      %v291 = vld [vmem:[%s1 + $0x30] sm:$0xf]
      %v292 = vld [vmem:[%s1 + $0x34] sm:$0xf]
      %v293 = vld [vmem:[%s1 + $0x38] sm:$0xf]
      %v294 = vld [vmem:[%s1 + $0x3c] sm:$0xf]
      %v295 = vld [vmem:[%s2] sm:$0x1]
      %v297 = vlaneseq
      %v298 = vshrl.u32 %v297, 7
      %v299 = vsub.s32 0, %v298
      %v300 = vrot.slane %v295, %v299
      %v334 = vunpack.c.l.b16 %v247
      %v335 = vunpack.c.l.b16 %v248
      %v336 = vunpack.c.l.b16 %v249
      %v337 = vunpack.c.l.b16 %v250
      %v338 = vunpack.c.l.b16 %v251
      %v339 = vunpack.c.l.b16 %v252
      %v340 = vunpack.c.l.b16 %v253
      %v341 = vunpack.c.l.b16 %v254
      %v342 = vunpack.c.l.b16 %v255
      %v343 = vunpack.c.l.b16 %v256
      %v344 = vunpack.c.l.b16 %v257
      %v345 = vunpack.c.l.b16 %v258
      %v346 = vunpack.c.l.b16 %v259
      %v347 = vunpack.c.l.b16 %v260
      %v348 = vunpack.c.l.b16 %v261
      %v349 = vunpack.c.l.b16 %v262
      %v350 = vunpack.c.l.b16 %v263
      %v351 = vunpack.c.l.b16 %v264
      %v352 = vunpack.c.l.b16 %v265
      %v353 = vunpack.c.l.b16 %v266
      %v354 = vunpack.c.l.b16 %v267
      %v355 = vunpack.c.l.b16 %v268
      %v356 = vunpack.c.l.b16 %v269
      %v357 = vunpack.c.l.b16 %v270
      %v358 = vunpack.c.l.b16 %v271
      %v359 = vunpack.c.l.b16 %v272
      %v360 = vunpack.c.l.b16 %v273
      %v361 = vunpack.c.l.b16 %v274
      %v362 = vunpack.c.l.b16 %v275
      %v363 = vunpack.c.l.b16 %v276
      %v364 = vunpack.c.l.b16 %v277
      %v365 = vunpack.c.l.b16 %v278
      %v366 = vpack.c.b16 %v335, %v334
      %v367 = vpack.c.b16 %v337, %v336
      %v368 = vpack.c.b16 %v339, %v338
      %v369 = vpack.c.b16 %v341, %v340
      %v370 = vpack.c.b16 %v343, %v342
      %v371 = vpack.c.b16 %v345, %v344
      %v372 = vpack.c.b16 %v347, %v346
      %v373 = vpack.c.b16 %v349, %v348
      %v374 = vpack.c.b16 %v351, %v350
      %v375 = vpack.c.b16 %v353, %v352
      %v376 = vpack.c.b16 %v355, %v354
      %v377 = vpack.c.b16 %v357, %v356
      %v378 = vpack.c.b16 %v359, %v358
      %v379 = vpack.c.b16 %v361, %v360
      %v380 = vpack.c.b16 %v363, %v362
      %v381 = vpack.c.b16 %v365, %v364
      %v414 = vunpack.c.l.b16 %v279
      %v415 = vunpack.c.l.b16 %v280
      %v416 = vunpack.c.l.b16 %v281
      %v417 = vunpack.c.l.b16 %v282
      %v418 = vunpack.c.l.b16 %v283
      %v419 = vunpack.c.l.b16 %v284
      %v420 = vunpack.c.l.b16 %v285
      %v421 = vunpack.c.l.b16 %v286
      %v422 = vunpack.c.l.b16 %v287
      %v423 = vunpack.c.l.b16 %v288
      %v424 = vunpack.c.l.b16 %v289
      %v425 = vunpack.c.l.b16 %v290
      %v426 = vunpack.c.l.b16 %v291
      %v427 = vunpack.c.l.b16 %v292
      %v428 = vunpack.c.l.b16 %v293
      %v429 = vunpack.c.l.b16 %v294
      %v430 = vpack.c.b16 %v415, %v414
      %v431 = vpack.c.b16 %v417, %v416
      %v432 = vpack.c.b16 %v419, %v418
      %v433 = vpack.c.b16 %v421, %v420
      %v434 = vpack.c.b16 %v423, %v422
      %v435 = vpack.c.b16 %v425, %v424
      %v436 = vpack.c.b16 %v427, %v426
      %v437 = vpack.c.b16 %v429, %v428
      %446 = vmatprep.subr.bf16.mxu0 0
      %447 = vmatpush1.bf16.msra.mxu0 %v437
      %448 = vmatprep.subr.bf16.mxu0 0
      %449 = vmatpush1.bf16.msra.mxu0 %v436
      %450 = vmatprep.subr.bf16.mxu0 0
      %451 = vmatpush1.bf16.msra.mxu0 %v435
      %452 = vmatprep.subr.bf16.mxu0 0
      %453 = vmatpush1.bf16.msra.mxu0 %v434
      %454 = vmatprep.subr.bf16.mxu0 0
      %455 = vmatpush1.bf16.msra.mxu0 %v433
      %456 = vmatprep.subr.bf16.mxu0 0
      %457 = vmatpush1.bf16.msra.mxu0 %v432
      %458 = vmatprep.subr.bf16.mxu0 0
      %459 = vmatpush1.bf16.msra.mxu0 %v431
      %460 = vmatprep.subr.bf16.mxu0 0
      %461 = vmatpush1.bf16.msra.mxu0 %v430
      %462 = vmatprep.subr.bf16.mxu0 0
      %463 = vmatpush2.bf16.msra.mxu0 0
      %464 = vmatprep.subr.bf16.mxu0 0
      %465 = vmatpush2.bf16.msra.mxu0 0
      %466 = vmatprep.subr.bf16.mxu0 0
      %467 = vmatpush2.bf16.msra.mxu0 0
      %468 = vmatprep.subr.bf16.mxu0 0
      %469 = vmatpush2.bf16.msra.mxu0 0
      %470 = vmatprep.subr.bf16.mxu0 0
      %471 = vmatpush2.bf16.msra.mxu0 0
      %472 = vmatprep.subr.bf16.mxu0 0
      %473 = vmatpush2.bf16.msra.mxu0 0
      %474 = vmatprep.subr.bf16.mxu0 0
      %475 = vmatpush2.bf16.msra.mxu0 0
      %476 = vmatprep.subr.bf16.mxu0 0
      %477 = vmatpush2.bf16.msra.mxu0 0
      %478 = vmatprep.mubr.bf16.mxu0 0
      %479 = vmatmul.mubr.bf16.gmra.mxu0 %v366
      %v480 = vpop.f32.mrf.mxu0
      %v481 = vadd.f32 %v300, %v480
      %v482 = vpop.f32.mrf.mxu0
      %v483 = vpop.f32.mrf.mxu0
      %v484 = vadd.f32 %v300, %v483
      %v485 = vpop.f32.mrf.mxu0
      %486 = vmatprep.mubr.bf16.mxu0 0
      %487 = vmatmul.mubr.bf16.gmra.mxu0 %v367
      %v488 = vpop.f32.mrf.mxu0
      %v489 = vadd.f32 %v300, %v488
      %v490 = vpop.f32.mrf.mxu0
      %v491 = vpop.f32.mrf.mxu0
      %v492 = vadd.f32 %v300, %v491
      %v493 = vpop.f32.mrf.mxu0
      %494 = vmatprep.mubr.bf16.mxu0 0
      %495 = vmatmul.mubr.bf16.gmra.mxu0 %v368
      %v496 = vpop.f32.mrf.mxu0
      %v497 = vadd.f32 %v300, %v496
      %v498 = vpop.f32.mrf.mxu0
      %v499 = vpop.f32.mrf.mxu0
      %v500 = vadd.f32 %v300, %v499
      %v501 = vpop.f32.mrf.mxu0
      %502 = vmatprep.mubr.bf16.mxu0 0
      %503 = vmatmul.mubr.bf16.gmra.mxu0 %v369
      %v504 = vpop.f32.mrf.mxu0
      %v505 = vadd.f32 %v300, %v504
      %v506 = vpop.f32.mrf.mxu0
      %v507 = vpop.f32.mrf.mxu0
      %v508 = vadd.f32 %v300, %v507
      %v509 = vpop.f32.mrf.mxu0
      %510 = vmatprep.mubr.bf16.mxu0 0
      %511 = vmatmul.mubr.bf16.gmra.mxu0 %v370
      %v512 = vpop.f32.mrf.mxu0
      %v513 = vadd.f32 %v300, %v512
      %v514 = vpop.f32.mrf.mxu0
      %v515 = vpop.f32.mrf.mxu0
      %v516 = vadd.f32 %v300, %v515
      %v517 = vpop.f32.mrf.mxu0
      %518 = vmatprep.mubr.bf16.mxu0 0
      %519 = vmatmul.mubr.bf16.gmra.mxu0 %v371
      %v520 = vpop.f32.mrf.mxu0
      %v521 = vadd.f32 %v300, %v520
      %v522 = vpop.f32.mrf.mxu0
      %v523 = vpop.f32.mrf.mxu0
      %v524 = vadd.f32 %v300, %v523
      %v525 = vpop.f32.mrf.mxu0
      %526 = vmatprep.mubr.bf16.mxu0 0
      %527 = vmatmul.mubr.bf16.gmra.mxu0 %v372
      %v528 = vpop.f32.mrf.mxu0
      %v529 = vadd.f32 %v300, %v528
      %v530 = vpop.f32.mrf.mxu0
      %v531 = vpop.f32.mrf.mxu0
      %v532 = vadd.f32 %v300, %v531
      %v533 = vpop.f32.mrf.mxu0
      %534 = vmatprep.mubr.bf16.mxu0 0
      %535 = vmatmul.mubr.bf16.gmra.mxu0 %v373
      %v536 = vpop.f32.mrf.mxu0
      %v537 = vadd.f32 %v300, %v536
      %v538 = vpop.f32.mrf.mxu0
      %v539 = vpop.f32.mrf.mxu0
      %v540 = vadd.f32 %v300, %v539
      %v541 = vpop.f32.mrf.mxu0
      %542 = vmatprep.mubr.bf16.mxu0 0
      %543 = vmatmul.mubr.bf16.gmra.mxu0 %v374
      %v544 = vpop.f32.mrf.mxu0
      %v545 = vadd.f32 %v300, %v544
      %v546 = vpop.f32.mrf.mxu0
      %v547 = vpop.f32.mrf.mxu0
      %v548 = vadd.f32 %v300, %v547
      %v549 = vpop.f32.mrf.mxu0
      %550 = vmatprep.mubr.bf16.mxu0 0
      %551 = vmatmul.mubr.bf16.gmra.mxu0 %v375
      %v552 = vpop.f32.mrf.mxu0
      %v553 = vadd.f32 %v300, %v552
      %v554 = vpop.f32.mrf.mxu0
      %v555 = vpop.f32.mrf.mxu0
      %v556 = vadd.f32 %v300, %v555
      %v557 = vpop.f32.mrf.mxu0
      %558 = vmatprep.mubr.bf16.mxu0 0
      %559 = vmatmul.mubr.bf16.gmra.mxu0 %v376
      %v560 = vpop.f32.mrf.mxu0
      %v561 = vadd.f32 %v300, %v560
      %v562 = vpop.f32.mrf.mxu0
      %v563 = vpop.f32.mrf.mxu0
      %v564 = vadd.f32 %v300, %v563
      %v565 = vpop.f32.mrf.mxu0
      %566 = vmatprep.mubr.bf16.mxu0 0
      %567 = vmatmul.mubr.bf16.gmra.mxu0 %v377
      %v568 = vpop.f32.mrf.mxu0
      %v569 = vadd.f32 %v300, %v568
      %v570 = vpop.f32.mrf.mxu0
      %v571 = vpop.f32.mrf.mxu0
      %v572 = vadd.f32 %v300, %v571
      %v573 = vpop.f32.mrf.mxu0
      %574 = vmatprep.mubr.bf16.mxu0 0
      %575 = vmatmul.mubr.bf16.gmra.mxu0 %v378
      %v576 = vpop.f32.mrf.mxu0
      %v577 = vadd.f32 %v300, %v576
      %v578 = vpop.f32.mrf.mxu0
      %v579 = vpop.f32.mrf.mxu0
      %v580 = vadd.f32 %v300, %v579
      %v581 = vpop.f32.mrf.mxu0
      %582 = vmatprep.mubr.bf16.mxu0 0
      %583 = vmatmul.mubr.bf16.gmra.mxu0 %v379
      %v584 = vpop.f32.mrf.mxu0
      %v585 = vadd.f32 %v300, %v584
      %v586 = vpop.f32.mrf.mxu0
      %v587 = vpop.f32.mrf.mxu0
      %v588 = vadd.f32 %v300, %v587
      %v589 = vpop.f32.mrf.mxu0
      %590 = vmatprep.mubr.bf16.mxu0 0
      %591 = vmatmul.mubr.bf16.gmra.mxu0 %v380
      %v592 = vpop.f32.mrf.mxu0
      %v593 = vadd.f32 %v300, %v592
      %v594 = vpop.f32.mrf.mxu0
      %v595 = vpop.f32.mrf.mxu0
      %v596 = vadd.f32 %v300, %v595
      %v597 = vpop.f32.mrf.mxu0
      %598 = vmatprep.mubr.bf16.mxu0 0
      %599 = vmatmul.mubr.bf16.gmra.mxu0 %v381
      %v600 = vpop.f32.mrf.mxu0
      %v601 = vadd.f32 %v300, %v600
      %v602 = vpop.f32.mrf.mxu0
      %v603 = vpop.f32.mrf.mxu0
      %v604 = vadd.f32 %v300, %v603
      %v605 = vpop.f32.mrf.mxu0
      %606 = vdwg.mxu0
      %v607 = vpack.c.bf16 %v484, %v481
      %v608 = vpack.c.bf16 %v492, %v489
      %v609 = vpack.c.bf16 %v500, %v497
      %v610 = vpack.c.bf16 %v508, %v505
      %v611 = vpack.c.bf16 %v516, %v513
      %v612 = vpack.c.bf16 %v524, %v521
      %v613 = vpack.c.bf16 %v532, %v529
      %v614 = vpack.c.bf16 %v540, %v537
      %v615 = vpack.c.bf16 %v548, %v545
      %v616 = vpack.c.bf16 %v556, %v553
      %v617 = vpack.c.bf16 %v564, %v561
      %v618 = vpack.c.bf16 %v572, %v569
      %v619 = vpack.c.bf16 %v580, %v577
      %v620 = vpack.c.bf16 %v588, %v585
      %v621 = vpack.c.bf16 %v596, %v593
      %v622 = vpack.c.bf16 %v604, %v601
      %v639 = vunpack.c.l.b16 %v607
      %v640 = vunpack.c.h.b16 %v607
      %v641 = vunpack.c.l.b16 %v608
      %v642 = vunpack.c.h.b16 %v608
      %v643 = vunpack.c.l.b16 %v609
      %v644 = vunpack.c.h.b16 %v609
      %v645 = vunpack.c.l.b16 %v610
      %v646 = vunpack.c.h.b16 %v610
      %v647 = vunpack.c.l.b16 %v611
      %v648 = vunpack.c.h.b16 %v611
      %v649 = vunpack.c.l.b16 %v612
      %v650 = vunpack.c.h.b16 %v612
      %v651 = vunpack.c.l.b16 %v613
      %v652 = vunpack.c.h.b16 %v613
      %v653 = vunpack.c.l.b16 %v614
      %v654 = vunpack.c.h.b16 %v614
      %v655 = vunpack.c.l.b16 %v615
      %v656 = vunpack.c.h.b16 %v615
      %v657 = vunpack.c.l.b16 %v616
      %v658 = vunpack.c.h.b16 %v616
      %v659 = vunpack.c.l.b16 %v617
      %v660 = vunpack.c.h.b16 %v617
      %v661 = vunpack.c.l.b16 %v618
      %v662 = vunpack.c.h.b16 %v618
      %v663 = vunpack.c.l.b16 %v619
      %v664 = vunpack.c.h.b16 %v619
      %v665 = vunpack.c.l.b16 %v620
      %v666 = vunpack.c.h.b16 %v620
      %v667 = vunpack.c.l.b16 %v621
      %v668 = vunpack.c.h.b16 %v621
      %v669 = vunpack.c.l.b16 %v622
      %v670 = vunpack.c.h.b16 %v622
      %v671 = vpack.c.b16 %v639, %v639
      %v672 = vpack.c.b16 %v640, %v640
      %v673 = vpack.c.b16 %v641, %v641
      %v674 = vpack.c.b16 %v642, %v642
      %v675 = vpack.c.b16 %v643, %v643
      %v676 = vpack.c.b16 %v644, %v644
      %v677 = vpack.c.b16 %v645, %v645
      %v678 = vpack.c.b16 %v646, %v646
      %v679 = vpack.c.b16 %v647, %v647
      %v680 = vpack.c.b16 %v648, %v648
      %v681 = vpack.c.b16 %v649, %v649
      %v682 = vpack.c.b16 %v650, %v650
      %v683 = vpack.c.b16 %v651, %v651
      %v684 = vpack.c.b16 %v652, %v652
      %v685 = vpack.c.b16 %v653, %v653
      %v686 = vpack.c.b16 %v654, %v654
      %v687 = vpack.c.b16 %v655, %v655
      %v688 = vpack.c.b16 %v656, %v656
      %v689 = vpack.c.b16 %v657, %v657
      %v690 = vpack.c.b16 %v658, %v658
      %v691 = vpack.c.b16 %v659, %v659
      %v692 = vpack.c.b16 %v660, %v660
      %v693 = vpack.c.b16 %v661, %v661
      %v694 = vpack.c.b16 %v662, %v662
      %v695 = vpack.c.b16 %v663, %v663
      %v696 = vpack.c.b16 %v664, %v664
      %v697 = vpack.c.b16 %v665, %v665
      %v698 = vpack.c.b16 %v666, %v666
      %v699 = vpack.c.b16 %v667, %v667
      %v700 = vpack.c.b16 %v668, %v668
      %v701 = vpack.c.b16 %v669, %v669
      %v702 = vpack.c.b16 %v670, %v670
      %735 = vst [vmem:[%s241] sm:$0xf] %v671
      %736 = vst [vmem:[%s241 + $0x4] sm:$0xf] %v672
      %737 = vst [vmem:[%s241 + $0x8] sm:$0xf] %v673
      %738 = vst [vmem:[%s241 + $0xc] sm:$0xf] %v674
      %739 = vst [vmem:[%s241 + $0x10] sm:$0xf] %v675
      %740 = vst [vmem:[%s241 + $0x14] sm:$0xf] %v676
      %741 = vst [vmem:[%s241 + $0x18] sm:$0xf] %v677
      %742 = vst [vmem:[%s241 + $0x1c] sm:$0xf] %v678
      %743 = vst [vmem:[%s241 + $0x20] sm:$0xf] %v679
      %744 = vst [vmem:[%s241 + $0x24] sm:$0xf] %v680
      %745 = vst [vmem:[%s241 + $0x28] sm:$0xf] %v681
      %746 = vst [vmem:[%s241 + $0x2c] sm:$0xf] %v682
      %747 = vst [vmem:[%s241 + $0x30] sm:$0xf] %v683
      %748 = vst [vmem:[%s241 + $0x34] sm:$0xf] %v684
      %749 = vst [vmem:[%s241 + $0x38] sm:$0xf] %v685
      %750 = vst [vmem:[%s241 + $0x3c] sm:$0xf] %v686
      %751 = vst [vmem:[%s241 + $0x40] sm:$0xf] %v687
      %752 = vst [vmem:[%s241 + $0x44] sm:$0xf] %v688
      %753 = vst [vmem:[%s241 + $0x48] sm:$0xf] %v689
      %754 = vst [vmem:[%s241 + $0x4c] sm:$0xf] %v690
      %755 = vst [vmem:[%s241 + $0x50] sm:$0xf] %v691
      %756 = vst [vmem:[%s241 + $0x54] sm:$0xf] %v692
      %757 = vst [vmem:[%s241 + $0x58] sm:$0xf] %v693
      %758 = vst [vmem:[%s241 + $0x5c] sm:$0xf] %v694
      %759 = vst [vmem:[%s241 + $0x60] sm:$0xf] %v695
      %760 = vst [vmem:[%s241 + $0x64] sm:$0xf] %v696
      %761 = vst [vmem:[%s241 + $0x68] sm:$0xf] %v697
      %762 = vst [vmem:[%s241 + $0x6c] sm:$0xf] %v698
      %763 = vst [vmem:[%s241 + $0x70] sm:$0xf] %v699
      %764 = vst [vmem:[%s241 + $0x74] sm:$0xf] %v700
      %765 = vst [vmem:[%s241 + $0x78] sm:$0xf] %v701
      %766 = vst [vmem:[%s241 + $0x7c] sm:$0xf] %v702
      %p767 = scmp.eq.s32.totalorder %s21, 0
      // Predicated region
      $region33: #{block_forward.6} parent=31 // pred_check
        %p768 = pneg %p767
      $region34: #{block_forward.6} parent=31 // pred_check_branch
        %770 = sbr.rel (%p768) target = $region36
      $region35: #{block_forward.6} parent=31 // pred_region
        %771 = vst [vmem:[%s245] sm:$0x1] 0.0
      $region36: #{block_forward.6} parent=31 // pred_fallthru
        _
      %v772 = vld [vmem:[%s245] sm:$0x1]
      %v773 = vadd.f32 %v481, %v484
      %v774 = vadd.f32 %v773, %v489
      %v775 = vadd.f32 %v774, %v492
      %v776 = vadd.f32 %v775, %v497
      %v777 = vadd.f32 %v776, %v500
      %v778 = vadd.f32 %v777, %v505
      %v779 = vadd.f32 %v778, %v508
      %v780 = vadd.f32 %v779, %v513
      %v781 = vadd.f32 %v780, %v516
      %v782 = vadd.f32 %v781, %v521
      %v783 = vadd.f32 %v782, %v524
      %v784 = vadd.f32 %v783, %v529
      %v785 = vadd.f32 %v784, %v532
      %v786 = vadd.f32 %v785, %v537
      %v787 = vadd.f32 %v786, %v540
      %v788 = vadd.f32 %v787, %v545
      %v789 = vadd.f32 %v788, %v548
      %v790 = vadd.f32 %v789, %v553
      %v791 = vadd.f32 %v790, %v556
      %v792 = vadd.f32 %v791, %v561
      %v793 = vadd.f32 %v792, %v564
      %v794 = vadd.f32 %v793, %v569
      %v795 = vadd.f32 %v794, %v572
      %v796 = vadd.f32 %v795, %v577
      %v797 = vadd.f32 %v796, %v580
      %v798 = vadd.f32 %v797, %v585
      %v799 = vadd.f32 %v798, %v588
      %v800 = vadd.f32 %v799, %v593
      %v801 = vadd.f32 %v800, %v596
      %v802 = vadd.f32 %v801, %v601
      %v803 = vadd.f32 %v802, %v604
      %v804 = vrot.slane %v803, 4
      %v805 = vadd.f32 %v803, %v804
      %v806 = vrot.slane %v805, 2
      %v807 = vadd.f32 %v805, %v806
      %v808 = vrot.slane %v807, 1
      %v809 = vadd.f32 %v807, %v808
      %v810 = vmul.f32 %v809, 0.00390625
      %v811 = vadd.f32 %v772, %v810
      %812 = vst [vmem:[%s245] sm:$0x1] %v811
      %s813 = smul.u32 32, %s21
      %p814 = scmp.lt.s32.totalorder %s20, 1
      %s815 = scalar_select %p814, %s20, 1
      %p816 = scmp.lt.s32.totalorder %s813, 31
      %s817 = scalar_select %p816, %s813, 31
      %s818 = smul.addr %s815, 32
      %s819 = sadd.s32 %s817, %s818
      %s820 = smul.addr %s819, 4
      %s821 = scalar_lea.vmem %s3, %s820
      %p822 = scmp.lt.s32.totalorder %s20, 1
      %s823 = scalar_select %p822, %s20, 1
      %s824 = scalar_lea.vmem %s4, %s823
      // Predicated region
      $region37: #{block_forward.6} parent=31 // pred_check
        %p825 = pneg %p118
      $region38: #{block_forward.6} parent=31 // pred_check_branch
        %827 = sbr.rel (%p825) target = $region40
      $region39: #{block_forward.6} parent=31 // pred_region
        %s828 = smul.u32 32, %s21
      $region40: #{block_forward.6} parent=31 // pred_fallthru
        _
      // Predicated region
      $region41: #{block_forward.6} parent=31 // pred_check
        %p829 = pneg %p144
      $region42: #{block_forward.6} parent=31 // pred_check_branch
        %831 = sbr.rel (%p829) target = $region44
      $region43: #{block_forward.6} parent=31 // pred_region
        _
      $region44: #{block_forward.6} parent=31 // pred_fallthru
        _
    $region32: #{block_forward.6} parent=5 // pred_fallthru
      _
    %p832 = scmp.le.s32.totalorder 2, %s11
    // Predicated region
    $region45: #{block_forward.6} parent=5 // pred_check
      %p833 = pneg %p832
    $region46: #{block_forward.6} parent=5 // pred_check_branch
      %835 = sbr.rel (%p833) target = $region48
    $region47: #{block_forward.6} parent=5 // pred_region
      %s836 = ssub.s32 %s11, 2
      // Predicated region
      $region49: #{block_forward.6} parent=47 // pred_check
        %p837 = pneg %p124
      $region50: #{block_forward.6} parent=47 // pred_check_branch
        %839 = sbr.rel (%p837) target = $region52
      $region51: #{block_forward.6} parent=47 // pred_region
        %s840 = smul.u32 32, %s23
        %p841 = scmp.lt.s32.totalorder %s22, 1
        %s842 = scalar_select %p841, %s22, 1
        %p843 = scmp.lt.s32.totalorder %s840, 31
        %s844 = scalar_select %p843, %s840, 31
        %s845 = smul.addr %s842, 32
        %s846 = sadd.s32 %s844, %s845
        %s847 = smul.addr %s846, 4
        %s848 = scalar_lea.vmem %s3, %s847
      $region52: #{block_forward.6} parent=47 // pred_fallthru
        _
      // Predicated region
      $region53: #{block_forward.6} parent=47 // pred_check
        %p849 = pneg %p150
      $region54: #{block_forward.6} parent=47 // pred_check_branch
        %851 = sbr.rel (%p849) target = $region56
      $region55: #{block_forward.6} parent=47 // pred_region
        %p852 = scmp.lt.s32.totalorder %s22, 1
        %s853 = scalar_select %p852, %s22, 1
        %s854 = scalar_lea.vmem %s4, %s853
      $region56: #{block_forward.6} parent=47 // pred_fallthru
        _
    $region48: #{block_forward.6} parent=5 // pred_fallthru
      _
  $region6: #{block_forward.6} parent=0 // loop_footer
    %s15 = sadd.s32 1, %s11
  $region7: #{block_forward.6} parent=0 // loop_footer_branch
    %10 = sbr.rel target = $region3
  $region8: #{block_forward.6} parent=0 // loop_exit
    _

// kernel: block_forward.7
$region0: #{block_forward.7}
  #allocation0 [shape = 'u32[]', space=smem, size = 0x4, offset = 0x4, fixed_abs, tag = 'smem constant byte address 0x4 - core index']
  #allocation1 [shape = 'u32[144,128]{1,0:T(1,128)}', space=vmem, size = 0x12000, scoped, tag = 'internal scratch']
  %s0 = inlined_call_operand.vmem [shape: bf16[2,256,128], index: 0, kind: input, shape index: {}]
  %s1 = inlined_call_operand.vmem [shape: f32[2,1,128], index: 1, kind: input, shape index: {}]
  %s2 = inlined_call_operand.vmem [shape: bf16[2,256,8], index: 2, kind: input, shape index: {}]
  %s3 = inlined_call_operand.vmem [shape: bf16[8,128], index: 3, kind: input, shape index: {}]
  %s4 = inlined_call_operand.vmem [shape: f32[1,128], index: 4, kind: input, shape index: {}]
  %s5 = inlined_call_operand.vmem [shape: bf16[2,256,128], index: 5, kind: output, shape index: {}]
  %s6 = sld [smem:[#allocation0]]
  $region53: #{block_forward.7} parent=0
    _
  %s8 = ssub.s32 1, %s6
  %s9 = scalar_select 0, %s8, %s6
  loop: start=0, step=1, limit=4
  $region2: #{block_forward.7} parent=0 // loop_pre_header
    _
  $region3: #{block_forward.7} parent=0 // loop_header
    %s11 = sphi 0, %s15
    %p12 = scmp.ge.s32.totalorder %s11, 4
    %s18 = sphi 0, %s30
    %s19 = sphi 0, %s26
    %s20 = sphi 0, %s18
    %s21 = sphi 0, %s19
    %s22 = sphi 0, %s20
    %s23 = sphi 0, %s21
    %s35 = sphi 0, %s37
    %s38 = sphi 0, %s35
    %s39 = sphi 0, %s38
    %s55 = sphi 0, %s39
    %s61 = sphi 0, %s63
    %s64 = sphi 0, %s61
    %s65 = sphi 0, %s64
    %s81 = sphi 0, %s65
    %s89 = sphi 0, %s91
    %s92 = sphi 0, %s89
    %s93 = sphi 0, %s92
    %s109 = sphi 0, %s93
    %s113 = sphi 0, %s113
    %s115 = sphi 0, %s113
    %s116 = sphi 0, %s115
    %s130 = sphi 0, %s116
    %s134 = sphi 0, %s134
    %s136 = sphi 0, %s134
    %s137 = sphi 0, %s136
    %s151 = sphi 0, %s137
    %s159 = sphi 0, %s161
    %s162 = sphi 0, %s159
    %s163 = sphi 0, %s162
    %s179 = sphi 0, %s163
  $region4: #{block_forward.7} parent=0 // loop_header_branch
    %14 = sbr.rel (%p12) target = $region8
  $region5: #{block_forward.7} parent=0 // loop_body
    %s16 = ssub.s32 %s11, 1
    %s17 = ssub.s32 %s11, 2
    %s24 = sadd.s32 1, %s19
    %p25 = scmp.ge.s32.totalorder %s24, 1
    %s26 = scalar_select %p25, 0, %s24
    %s27 = sadd.s32 1, %s18
    %s28 = scalar_select %p25, %s27, %s18
    %p29 = scmp.ge.s32.totalorder %s28, 2
    %s30 = scalar_select %p29, 0, %s28
    %s31 = ssub.s32 %s18, %s30
    %s32 = ssub.s32 %s19, %s26
    %s33 = sor.u32 %s31, %s32
    %p34 = scmp.eq.s32.totalorder %s33, 0
    %s36 = sadd.s32 %s35, 1
    %s37 = scalar_select %p34, %s35, %s36
    %p40 = pneg %p34
    %p41 = scmp.eq.s32.totalorder %s11, 1
    %p42 = por %p40, %p41
    %p43 = scmp.ne.s32.totalorder %s35, %s38
    %p44 = scmp.eq.s32.totalorder %s11, 0
    %p45 = por %p43, %p44
    %p46 = scmp.ne.s32.totalorder %s35, %s38
    %p47 = scmp.eq.s32.totalorder %s16, 1
    %p48 = por %p46, %p47
    %p49 = scmp.ne.s32.totalorder %s38, %s39
    %p50 = scmp.eq.s32.totalorder %s16, 0
    %p51 = por %p49, %p50
    %p52 = scmp.ne.s32.totalorder %s38, %s39
    %p53 = scmp.eq.s32.totalorder %s17, 1
    %p54 = por %p52, %p53
    %p56 = scmp.ne.s32.totalorder %s39, %s55
    %p57 = scmp.eq.s32.totalorder %s17, 0
    %p58 = por %p56, %p57
    %s59 = ssub.s32 %s18, %s30
    %p60 = scmp.eq.s32.totalorder %s59, 0
    %s62 = sadd.s32 %s61, 1
    %s63 = scalar_select %p60, %s61, %s62
    %p66 = pneg %p60
    %p67 = scmp.eq.s32.totalorder %s11, 1
    %p68 = por %p66, %p67
    %p69 = scmp.ne.s32.totalorder %s61, %s64
    %p70 = scmp.eq.s32.totalorder %s11, 0
    %p71 = por %p69, %p70
    %p72 = scmp.ne.s32.totalorder %s61, %s64
    %p73 = scmp.eq.s32.totalorder %s16, 1
    %p74 = por %p72, %p73
    %p75 = scmp.ne.s32.totalorder %s64, %s65
    %p76 = scmp.eq.s32.totalorder %s16, 0
    %p77 = por %p75, %p76
    %p78 = scmp.ne.s32.totalorder %s64, %s65
    %p79 = scmp.eq.s32.totalorder %s17, 1
    %p80 = por %p78, %p79
    %p82 = scmp.ne.s32.totalorder %s65, %s81
    %p83 = scmp.eq.s32.totalorder %s17, 0
    %p84 = por %p82, %p83
    %s85 = ssub.s32 %s18, %s30
    %s86 = ssub.s32 %s19, %s26
    %s87 = sor.u32 %s85, %s86
    %p88 = scmp.eq.s32.totalorder %s87, 0
    %s90 = sadd.s32 %s89, 1
    %s91 = scalar_select %p88, %s89, %s90
    %p94 = pneg %p88
    %p95 = scmp.eq.s32.totalorder %s11, 1
    %p96 = por %p94, %p95
    %p97 = scmp.ne.s32.totalorder %s89, %s92
    %p98 = scmp.eq.s32.totalorder %s11, 0
    %p99 = por %p97, %p98
    %p100 = scmp.ne.s32.totalorder %s89, %s92
    %p101 = scmp.eq.s32.totalorder %s16, 1
    %p102 = por %p100, %p101
    %p103 = scmp.ne.s32.totalorder %s92, %s93
    %p104 = scmp.eq.s32.totalorder %s16, 0
    %p105 = por %p103, %p104
    %p106 = scmp.ne.s32.totalorder %s92, %s93
    %p107 = scmp.eq.s32.totalorder %s17, 1
    %p108 = por %p106, %p107
    %p110 = scmp.ne.s32.totalorder %s93, %s109
    %p111 = scmp.eq.s32.totalorder %s17, 0
    %p112 = por %p110, %p111
    %s114 = sadd.s32 %s113, 1
    %p117 = scmp.eq.s32.totalorder %s11, 1
    %p118 = scmp.ne.s32.totalorder %s113, %s115
    %p119 = scmp.eq.s32.totalorder %s11, 0
    %p120 = por %p118, %p119
    %p121 = scmp.ne.s32.totalorder %s113, %s115
    %p122 = scmp.eq.s32.totalorder %s16, 1
    %p123 = por %p121, %p122
    %p124 = scmp.ne.s32.totalorder %s115, %s116
    %p125 = scmp.eq.s32.totalorder %s16, 0
    %p126 = por %p124, %p125
    %p127 = scmp.ne.s32.totalorder %s115, %s116
    %p128 = scmp.eq.s32.totalorder %s17, 1
    %p129 = por %p127, %p128
    %p131 = scmp.ne.s32.totalorder %s116, %s130
    %p132 = scmp.eq.s32.totalorder %s17, 0
    %p133 = por %p131, %p132
    %s135 = sadd.s32 %s134, 1
    %p138 = scmp.eq.s32.totalorder %s11, 1
    %p139 = scmp.ne.s32.totalorder %s134, %s136
    %p140 = scmp.eq.s32.totalorder %s11, 0
    %p141 = por %p139, %p140
    %p142 = scmp.ne.s32.totalorder %s134, %s136
    %p143 = scmp.eq.s32.totalorder %s16, 1
    %p144 = por %p142, %p143
    %p145 = scmp.ne.s32.totalorder %s136, %s137
    %p146 = scmp.eq.s32.totalorder %s16, 0
    %p147 = por %p145, %p146
    %p148 = scmp.ne.s32.totalorder %s136, %s137
    %p149 = scmp.eq.s32.totalorder %s17, 1
    %p150 = por %p148, %p149
    %p152 = scmp.ne.s32.totalorder %s137, %s151
    %p153 = scmp.eq.s32.totalorder %s17, 0
    %p154 = por %p152, %p153
    %s155 = ssub.s32 %s18, %s30
    %s156 = ssub.s32 %s19, %s26
    %s157 = sor.u32 %s155, %s156
    %p158 = scmp.eq.s32.totalorder %s157, 0
    %s160 = sadd.s32 %s159, 1
    %s161 = scalar_select %p158, %s159, %s160
    %p164 = pneg %p158
    %p165 = scmp.eq.s32.totalorder %s11, 1
    %p166 = por %p164, %p165
    %p167 = scmp.ne.s32.totalorder %s159, %s162
    %p168 = scmp.eq.s32.totalorder %s11, 0
    %p169 = por %p167, %p168
    %p170 = scmp.ne.s32.totalorder %s159, %s162
    %p171 = scmp.eq.s32.totalorder %s16, 1
    %p172 = por %p170, %p171
    %p173 = scmp.ne.s32.totalorder %s162, %s163
    %p174 = scmp.eq.s32.totalorder %s16, 0
    %p175 = por %p173, %p174
    %p176 = scmp.ne.s32.totalorder %s162, %s163
    %p177 = scmp.eq.s32.totalorder %s17, 1
    %p178 = por %p176, %p177
    %p180 = scmp.ne.s32.totalorder %s163, %s179
    %p181 = scmp.eq.s32.totalorder %s17, 0
    %p182 = por %p180, %p181
    %p183 = scmp.le.s32.totalorder 1, %s11
    %p184 = scmp.lt.s32.totalorder %s11, 3
    %p185 = pnand %p183, %p184
    %p186 = pneg %p185
    // Predicated region
    $region9: #{block_forward.7} parent=5 // pred_check
      _
    $region10: #{block_forward.7} parent=5 // pred_check_branch
      %188 = sbr.rel (%p185) target = $region12
    $region11: #{block_forward.7} parent=5 // pred_region
      %s189 = ssub.s32 %s11, 1
      // Predicated region
      $region13: #{block_forward.7} parent=11 // pred_check
        %p190 = pneg %p126
      $region14: #{block_forward.7} parent=11 // pred_check_branch
        %192 = sbr.rel (%p190) target = $region16
      $region15: #{block_forward.7} parent=11 // pred_region
        _
      $region16: #{block_forward.7} parent=11 // pred_fallthru
        _
      // Predicated region
      $region17: #{block_forward.7} parent=11 // pred_check
        %p193 = pneg %p147
      $region18: #{block_forward.7} parent=11 // pred_check_branch
        %195 = sbr.rel (%p193) target = $region20
      $region19: #{block_forward.7} parent=11 // pred_region
        _
      $region20: #{block_forward.7} parent=11 // pred_fallthru
        _
    $region12: #{block_forward.7} parent=5 // pred_fallthru
      _
    %p196 = scmp.lt.s32.totalorder %s11, 2
    // Predicated region
    $region21: #{block_forward.7} parent=5 // pred_check
      %p197 = pneg %p196
    $region22: #{block_forward.7} parent=5 // pred_check_branch
      %199 = sbr.rel (%p197) target = $region24
    $region23: #{block_forward.7} parent=5 // pred_region
      // Predicated region
      $region25: #{block_forward.7} parent=23 // pred_check
        %p200 = pneg %p45
      $region26: #{block_forward.7} parent=23 // pred_check_branch
        %202 = sbr.rel (%p200) target = $region28
      $region27: #{block_forward.7} parent=23 // pred_region
        %s203 = smul.u32 32, %s19
        %p204 = scmp.lt.s32.totalorder %s18, 1
        %s205 = scalar_select %p204, %s18, 1
        %p206 = scmp.lt.s32.totalorder %s203, 31
        %s207 = scalar_select %p206, %s203, 31
        %s208 = smul.addr %s205, 32
        %s209 = sadd.s32 %s207, %s208
        %s210 = smul.addr %s209, 4
        %s211 = scalar_lea.vmem %s0, %s210
        %s212 = smul.u32 32, %s19
      $region28: #{block_forward.7} parent=23 // pred_fallthru
        _
      // Predicated region
      $region29: #{block_forward.7} parent=23 // pred_check
        %p213 = pneg %p71
      $region30: #{block_forward.7} parent=23 // pred_check_branch
        %215 = sbr.rel (%p213) target = $region32
      $region31: #{block_forward.7} parent=23 // pred_region
        %p216 = scmp.lt.s32.totalorder %s18, 1
        %s217 = scalar_select %p216, %s18, 1
        %s218 = scalar_lea.vmem %s1, %s217
      $region32: #{block_forward.7} parent=23 // pred_fallthru
        _
      // Predicated region
      $region33: #{block_forward.7} parent=23 // pred_check
        %p219 = pneg %p99
      $region34: #{block_forward.7} parent=23 // pred_check_branch
        %221 = sbr.rel (%p219) target = $region36
      $region35: #{block_forward.7} parent=23 // pred_region
        %s222 = smul.u32 32, %s19
        %p223 = scmp.lt.s32.totalorder %s18, 1
        %s224 = scalar_select %p223, %s18, 1
        %p225 = scmp.lt.s32.totalorder %s222, 31
        %s226 = scalar_select %p225, %s222, 31
        %s227 = smul.addr %s224, 32
        %s228 = sadd.s32 %s226, %s227
        %s229 = smul.addr %s228, 4
        %s230 = scalar_lea.vmem %s2, %s229
        %s231 = smul.u32 32, %s19
      $region36: #{block_forward.7} parent=23 // pred_fallthru
        _
    $region24: #{block_forward.7} parent=5 // pred_fallthru
      _
    %p232 = scmp.le.s32.totalorder 1, %s11
    %p233 = scmp.lt.s32.totalorder %s11, 3
    %p234 = pnand %p232, %p233
    %p235 = pneg %p234
    // Predicated region
    $region37: #{block_forward.7} parent=5 // pred_check
      _
    $region38: #{block_forward.7} parent=5 // pred_check_branch
      %237 = sbr.rel (%p234) target = $region40
    $region39: #{block_forward.7} parent=5 // pred_region
      %s238 = ssub.s32 %s11, 1
      %s239 = smul.u32 32, %s21
      %p240 = scmp.lt.s32.totalorder %s20, 1
      %s241 = scalar_select %p240, %s20, 1
      %p242 = scmp.lt.s32.totalorder %s239, 31
      %s243 = scalar_select %p242, %s239, 31
      %s244 = smul.addr %s241, 32
      %s245 = sadd.s32 %s243, %s244
      %s246 = smul.addr %s245, 4
      %s247 = scalar_lea.vmem %s0, %s246
      %p248 = pneg %p51
      %p249 = pneg %p48
      %p250 = scmp.lt.s32.totalorder %s20, 1
      %s251 = scalar_select %p250, %s20, 1
      %s252 = scalar_lea.vmem %s1, %s251
      %p253 = pneg %p77
      %p254 = pneg %p74
      %s255 = smul.u32 32, %s21
      %p256 = scmp.lt.s32.totalorder %s20, 1
      %s257 = scalar_select %p256, %s20, 1
      %p258 = scmp.lt.s32.totalorder %s255, 31
      %s259 = scalar_select %p258, %s255, 31
      %s260 = smul.addr %s257, 32
      %s261 = sadd.s32 %s259, %s260
      %s262 = smul.addr %s261, 4
      %s263 = scalar_lea.vmem %s2, %s262
      %p264 = pneg %p105
      %p265 = pneg %p102
      %p266 = pneg %p126
      %p267 = pneg %p123
      %p268 = pneg %p147
      %p269 = pneg %p144
      %p270 = pneg %p175
      %p271 = pneg %p172
      %s272 = smul.u32 32, %s21
      %p273 = scmp.lt.s32.totalorder %s20, 1
      %s274 = scalar_select %p273, %s20, 1
      %p275 = scmp.lt.s32.totalorder %s272, 31
      %s276 = scalar_select %p275, %s272, 31
      %s277 = smul.addr %s274, 32
      %s278 = sadd.s32 %s276, %s277
      %s279 = smul.addr %s278, 4
      %s280 = scalar_lea.vmem %s5, %s279
      %s281 = smul.u32 32, %s21
      %p282 = scmp.lt.s32.totalorder %s20, 1
      %s283 = scalar_select %p282, %s20, 1
      %p284 = scmp.lt.s32.totalorder %s281, 31
      %s285 = scalar_select %p284, %s281, 31
      %s286 = smul.addr %s283, 32
      %s287 = sadd.s32 %s285, %s286
      %s288 = smul.addr %s287, 4
      %s289 = scalar_lea.vmem %s0, %s288
      %s290 = smul.u32 32, %s21
      %p291 = scmp.lt.s32.totalorder %s20, 1
      %s292 = scalar_select %p291, %s20, 1
      %s293 = scalar_lea.vmem %s1, %s292
      %s294 = smul.u32 32, %s21
      %p295 = scmp.lt.s32.totalorder %s20, 1
      %s296 = scalar_select %p295, %s20, 1
      %p297 = scmp.lt.s32.totalorder %s294, 31
      %s298 = scalar_select %p297, %s294, 31
      %s299 = smul.addr %s296, 32
      %s300 = sadd.s32 %s298, %s299
      %s301 = smul.addr %s300, 4
      %s302 = scalar_lea.vmem %s2, %s301
      %s303 = smul.u32 32, %s21
      %s304 = smul.u32 32, %s21
      %p305 = scmp.lt.s32.totalorder %s20, 1
      %s306 = scalar_select %p305, %s20, 1
      %p307 = scmp.lt.s32.totalorder %s304, 31
      %s308 = scalar_select %p307, %s304, 31
      %s309 = smul.addr %s306, 32
      %s310 = sadd.s32 %s308, %s309
      %s311 = smul.addr %s310, 4
      %s312 = scalar_lea.vmem %s5, %s311
      %s313 = smul.u32 32, %s21
      %v315 = vld [vmem:[%s302] sm:$0xf]
      %v316 = vld [vmem:[%s302 + $0x4] sm:$0xf]
      %v317 = vld [vmem:[%s302 + $0x8] sm:$0xf]
      %v318 = vld [vmem:[%s302 + $0xc] sm:$0xf]
      %v319 = vld [vmem:[%s302 + $0x10] sm:$0xf]
      %v320 = vld [vmem:[%s302 + $0x14] sm:$0xf]
      %v321 = vld [vmem:[%s302 + $0x18] sm:$0xf]
      %v322 = vld [vmem:[%s302 + $0x1c] sm:$0xf]
      %v323 = vld [vmem:[%s302 + $0x20] sm:$0xf]
      %v324 = vld [vmem:[%s302 + $0x24] sm:$0xf]
      %v325 = vld [vmem:[%s302 + $0x28] sm:$0xf]
      %v326 = vld [vmem:[%s302 + $0x2c] sm:$0xf]
      %v327 = vld [vmem:[%s302 + $0x30] sm:$0xf]
      %v328 = vld [vmem:[%s302 + $0x34] sm:$0xf]
      %v329 = vld [vmem:[%s302 + $0x38] sm:$0xf]
      %v330 = vld [vmem:[%s302 + $0x3c] sm:$0xf]
      %v331 = vld [vmem:[%s302 + $0x40] sm:$0xf]
      %v332 = vld [vmem:[%s302 + $0x44] sm:$0xf]
      %v333 = vld [vmem:[%s302 + $0x48] sm:$0xf]
      %v334 = vld [vmem:[%s302 + $0x4c] sm:$0xf]
      %v335 = vld [vmem:[%s302 + $0x50] sm:$0xf]
      %v336 = vld [vmem:[%s302 + $0x54] sm:$0xf]
      %v337 = vld [vmem:[%s302 + $0x58] sm:$0xf]
      %v338 = vld [vmem:[%s302 + $0x5c] sm:$0xf]
      %v339 = vld [vmem:[%s302 + $0x60] sm:$0xf]
      %v340 = vld [vmem:[%s302 + $0x64] sm:$0xf]
      %v341 = vld [vmem:[%s302 + $0x68] sm:$0xf]
      %v342 = vld [vmem:[%s302 + $0x6c] sm:$0xf]
      %v343 = vld [vmem:[%s302 + $0x70] sm:$0xf]
      %v344 = vld [vmem:[%s302 + $0x74] sm:$0xf]
      %v345 = vld [vmem:[%s302 + $0x78] sm:$0xf]
      %v346 = vld [vmem:[%s302 + $0x7c] sm:$0xf]
      %v347 = vld [vmem:[%s3] sm:$0xf]
      %v348 = vld [vmem:[%s4] sm:$0x1]
      %v350 = vlaneseq
      %v351 = vshrl.u32 %v350, 7
      %v352 = vsub.s32 0, %v351
      %v353 = vrot.slane %v348, %v352
      %v387 = vunpack.c.l.b16 %v315
      %v388 = vunpack.c.l.b16 %v316
      %v389 = vunpack.c.l.b16 %v317
      %v390 = vunpack.c.l.b16 %v318
      %v391 = vunpack.c.l.b16 %v319
      %v392 = vunpack.c.l.b16 %v320
      %v393 = vunpack.c.l.b16 %v321
      %v394 = vunpack.c.l.b16 %v322
      %v395 = vunpack.c.l.b16 %v323
      %v396 = vunpack.c.l.b16 %v324
      %v397 = vunpack.c.l.b16 %v325
      %v398 = vunpack.c.l.b16 %v326
      %v399 = vunpack.c.l.b16 %v327
      %v400 = vunpack.c.l.b16 %v328
      %v401 = vunpack.c.l.b16 %v329
      %v402 = vunpack.c.l.b16 %v330
      %v403 = vunpack.c.l.b16 %v331
      %v404 = vunpack.c.l.b16 %v332
      %v405 = vunpack.c.l.b16 %v333
      %v406 = vunpack.c.l.b16 %v334
      %v407 = vunpack.c.l.b16 %v335
      %v408 = vunpack.c.l.b16 %v336
      %v409 = vunpack.c.l.b16 %v337
      %v410 = vunpack.c.l.b16 %v338
      %v411 = vunpack.c.l.b16 %v339
      %v412 = vunpack.c.l.b16 %v340
      %v413 = vunpack.c.l.b16 %v341
      %v414 = vunpack.c.l.b16 %v342
      %v415 = vunpack.c.l.b16 %v343
      %v416 = vunpack.c.l.b16 %v344
      %v417 = vunpack.c.l.b16 %v345
      %v418 = vunpack.c.l.b16 %v346
      %v419 = vpack.c.b16 %v388, %v387
      %v420 = vpack.c.b16 %v390, %v389
      %v421 = vpack.c.b16 %v392, %v391
      %v422 = vpack.c.b16 %v394, %v393
      %v423 = vpack.c.b16 %v396, %v395
      %v424 = vpack.c.b16 %v398, %v397
      %v425 = vpack.c.b16 %v400, %v399
      %v426 = vpack.c.b16 %v402, %v401
      %v427 = vpack.c.b16 %v404, %v403
      %v428 = vpack.c.b16 %v406, %v405
      %v429 = vpack.c.b16 %v408, %v407
      %v430 = vpack.c.b16 %v410, %v409
      %v431 = vpack.c.b16 %v412, %v411
      %v432 = vpack.c.b16 %v414, %v413
      %v433 = vpack.c.b16 %v416, %v415
      %v434 = vpack.c.b16 %v418, %v417
      %vm435 = vcmask 64512
      %v437 = vsel %vm435, %v419, 0
      %v440 = vsel %vm435, %v420, 0
      %v443 = vsel %vm435, %v421, 0
      %v446 = vsel %vm435, %v422, 0
      %v449 = vsel %vm435, %v423, 0
      %v452 = vsel %vm435, %v424, 0
      %v455 = vsel %vm435, %v425, 0
      %v458 = vsel %vm435, %v426, 0
      %v461 = vsel %vm435, %v427, 0
      %v464 = vsel %vm435, %v428, 0
      %v467 = vsel %vm435, %v429, 0
      %v470 = vsel %vm435, %v430, 0
      %v473 = vsel %vm435, %v431, 0
      %v476 = vsel %vm435, %v432, 0
      %v479 = vsel %vm435, %v433, 0
      %v482 = vsel %vm435, %v434, 0
      %vm484 = vcmask 1043456
      %v486 = vsel %vm484, %v347, 0
      %488 = vmatprep.subr.bf16.mxu0 0
      %489 = vmatpush1.bf16.msra.mxu0 0
      %490 = vmatprep.subr.bf16.mxu0 0
      %491 = vmatpush1.bf16.msra.mxu0 0
      %492 = vmatprep.subr.bf16.mxu0 0
      %493 = vmatpush1.bf16.msra.mxu0 0
      %494 = vmatprep.subr.bf16.mxu0 0
      %495 = vmatpush1.bf16.msra.mxu0 0
      %496 = vmatprep.subr.bf16.mxu0 0
      %497 = vmatpush1.bf16.msra.mxu0 0
      %498 = vmatprep.subr.bf16.mxu0 0
      %499 = vmatpush1.bf16.msra.mxu0 0
      %500 = vmatprep.subr.bf16.mxu0 0
      %501 = vmatpush1.bf16.msra.mxu0 0
      %502 = vmatprep.subr.bf16.mxu0 0
      %503 = vmatpush1.bf16.msra.mxu0 %v486
      %504 = vmatprep.subr.bf16.mxu0 0
      %505 = vmatpush2.bf16.msra.mxu0 0
      %506 = vmatprep.subr.bf16.mxu0 0
      %507 = vmatpush2.bf16.msra.mxu0 0
      %508 = vmatprep.subr.bf16.mxu0 0
      %509 = vmatpush2.bf16.msra.mxu0 0
      %510 = vmatprep.subr.bf16.mxu0 0
      %511 = vmatpush2.bf16.msra.mxu0 0
      %512 = vmatprep.subr.bf16.mxu0 0
      %513 = vmatpush2.bf16.msra.mxu0 0
      %514 = vmatprep.subr.bf16.mxu0 0
      %515 = vmatpush2.bf16.msra.mxu0 0
      %516 = vmatprep.subr.bf16.mxu0 0
      %517 = vmatpush2.bf16.msra.mxu0 0
      %518 = vmatprep.subr.bf16.mxu0 0
      %519 = vmatpush2.bf16.msra.mxu0 0
      %520 = vmatprep.mubr.bf16.mxu0 0
      %521 = vmatmul.mubr.bf16.gmra.mxu0 %v437
      %v522 = vpop.f32.mrf.mxu0
      %v523 = vadd.f32 %v353, %v522
      %v524 = vpop.f32.mrf.mxu0
      %v525 = vpop.f32.mrf.mxu0
      %v526 = vadd.f32 %v353, %v525
      %v527 = vpop.f32.mrf.mxu0
      %528 = vmatprep.mubr.bf16.mxu0 0
      %529 = vmatmul.mubr.bf16.gmra.mxu0 %v440
      %v530 = vpop.f32.mrf.mxu0
      %v531 = vadd.f32 %v353, %v530
      %v532 = vpop.f32.mrf.mxu0
      %v533 = vpop.f32.mrf.mxu0
      %v534 = vadd.f32 %v353, %v533
      %v535 = vpop.f32.mrf.mxu0
      %536 = vmatprep.mubr.bf16.mxu0 0
      %537 = vmatmul.mubr.bf16.gmra.mxu0 %v443
      %v538 = vpop.f32.mrf.mxu0
      %v539 = vadd.f32 %v353, %v538
      %v540 = vpop.f32.mrf.mxu0
      %v541 = vpop.f32.mrf.mxu0
      %v542 = vadd.f32 %v353, %v541
      %v543 = vpop.f32.mrf.mxu0
      %544 = vmatprep.mubr.bf16.mxu0 0
      %545 = vmatmul.mubr.bf16.gmra.mxu0 %v446
      %v546 = vpop.f32.mrf.mxu0
      %v547 = vadd.f32 %v353, %v546
      %v548 = vpop.f32.mrf.mxu0
      %v549 = vpop.f32.mrf.mxu0
      %v550 = vadd.f32 %v353, %v549
      %v551 = vpop.f32.mrf.mxu0
      %552 = vmatprep.mubr.bf16.mxu0 0
      %553 = vmatmul.mubr.bf16.gmra.mxu0 %v449
      %v554 = vpop.f32.mrf.mxu0
      %v555 = vadd.f32 %v353, %v554
      %v556 = vpop.f32.mrf.mxu0
      %v557 = vpop.f32.mrf.mxu0
      %v558 = vadd.f32 %v353, %v557
      %v559 = vpop.f32.mrf.mxu0
      %560 = vmatprep.mubr.bf16.mxu0 0
      %561 = vmatmul.mubr.bf16.gmra.mxu0 %v452
      %v562 = vpop.f32.mrf.mxu0
      %v563 = vadd.f32 %v353, %v562
      %v564 = vpop.f32.mrf.mxu0
      %v565 = vpop.f32.mrf.mxu0
      %v566 = vadd.f32 %v353, %v565
      %v567 = vpop.f32.mrf.mxu0
      %568 = vmatprep.mubr.bf16.mxu0 0
      %569 = vmatmul.mubr.bf16.gmra.mxu0 %v455
      %v570 = vpop.f32.mrf.mxu0
      %v571 = vadd.f32 %v353, %v570
      %v572 = vpop.f32.mrf.mxu0
      %v573 = vpop.f32.mrf.mxu0
      %v574 = vadd.f32 %v353, %v573
      %v575 = vpop.f32.mrf.mxu0
      %576 = vmatprep.mubr.bf16.mxu0 0
      %577 = vmatmul.mubr.bf16.gmra.mxu0 %v458
      %v578 = vpop.f32.mrf.mxu0
      %v579 = vadd.f32 %v353, %v578
      %v580 = vpop.f32.mrf.mxu0
      %v581 = vpop.f32.mrf.mxu0
      %v582 = vadd.f32 %v353, %v581
      %v583 = vpop.f32.mrf.mxu0
      %584 = vmatprep.mubr.bf16.mxu0 0
      %585 = vmatmul.mubr.bf16.gmra.mxu0 %v461
      %v586 = vpop.f32.mrf.mxu0
      %v587 = vadd.f32 %v353, %v586
      %v588 = vpop.f32.mrf.mxu0
      %v589 = vpop.f32.mrf.mxu0
      %v590 = vadd.f32 %v353, %v589
      %v591 = vpop.f32.mrf.mxu0
      %592 = vmatprep.mubr.bf16.mxu0 0
      %593 = vmatmul.mubr.bf16.gmra.mxu0 %v464
      %v594 = vpop.f32.mrf.mxu0
      %v595 = vadd.f32 %v353, %v594
      %v596 = vpop.f32.mrf.mxu0
      %v597 = vpop.f32.mrf.mxu0
      %v598 = vadd.f32 %v353, %v597
      %v599 = vpop.f32.mrf.mxu0
      %600 = vmatprep.mubr.bf16.mxu0 0
      %601 = vmatmul.mubr.bf16.gmra.mxu0 %v467
      %v602 = vpop.f32.mrf.mxu0
      %v603 = vadd.f32 %v353, %v602
      %v604 = vpop.f32.mrf.mxu0
      %v605 = vpop.f32.mrf.mxu0
      %v606 = vadd.f32 %v353, %v605
      %v607 = vpop.f32.mrf.mxu0
      %608 = vmatprep.mubr.bf16.mxu0 0
      %609 = vmatmul.mubr.bf16.gmra.mxu0 %v470
      %v610 = vpop.f32.mrf.mxu0
      %v611 = vadd.f32 %v353, %v610
      %v612 = vpop.f32.mrf.mxu0
      %v613 = vpop.f32.mrf.mxu0
      %v614 = vadd.f32 %v353, %v613
      %v615 = vpop.f32.mrf.mxu0
      %616 = vmatprep.mubr.bf16.mxu0 0
      %617 = vmatmul.mubr.bf16.gmra.mxu0 %v473
      %v618 = vpop.f32.mrf.mxu0
      %v619 = vadd.f32 %v353, %v618
      %v620 = vpop.f32.mrf.mxu0
      %v621 = vpop.f32.mrf.mxu0
      %v622 = vadd.f32 %v353, %v621
      %v623 = vpop.f32.mrf.mxu0
      %624 = vmatprep.mubr.bf16.mxu0 0
      %625 = vmatmul.mubr.bf16.gmra.mxu0 %v476
      %v626 = vpop.f32.mrf.mxu0
      %v627 = vadd.f32 %v353, %v626
      %v628 = vpop.f32.mrf.mxu0
      %v629 = vpop.f32.mrf.mxu0
      %v630 = vadd.f32 %v353, %v629
      %v631 = vpop.f32.mrf.mxu0
      %632 = vmatprep.mubr.bf16.mxu0 0
      %633 = vmatmul.mubr.bf16.gmra.mxu0 %v479
      %v634 = vpop.f32.mrf.mxu0
      %v635 = vadd.f32 %v353, %v634
      %v636 = vpop.f32.mrf.mxu0
      %v637 = vpop.f32.mrf.mxu0
      %v638 = vadd.f32 %v353, %v637
      %v639 = vpop.f32.mrf.mxu0
      %640 = vmatprep.mubr.bf16.mxu0 0
      %641 = vmatmul.mubr.bf16.gmra.mxu0 %v482
      %v642 = vpop.f32.mrf.mxu0
      %v643 = vadd.f32 %v353, %v642
      %v644 = vpop.f32.mrf.mxu0
      %v645 = vpop.f32.mrf.mxu0
      %v646 = vadd.f32 %v353, %v645
      %v647 = vpop.f32.mrf.mxu0
      %648 = vdwg.mxu0
      %v649 = vld [vmem:[%s289] sm:$0xf]
      %v650 = vld [vmem:[%s289 + $0x4] sm:$0xf]
      %v651 = vld [vmem:[%s289 + $0x8] sm:$0xf]
      %v652 = vld [vmem:[%s289 + $0xc] sm:$0xf]
      %v653 = vld [vmem:[%s289 + $0x10] sm:$0xf]
      %v654 = vld [vmem:[%s289 + $0x14] sm:$0xf]
      %v655 = vld [vmem:[%s289 + $0x18] sm:$0xf]
      %v656 = vld [vmem:[%s289 + $0x1c] sm:$0xf]
      %v657 = vld [vmem:[%s289 + $0x20] sm:$0xf]
      %v658 = vld [vmem:[%s289 + $0x24] sm:$0xf]
      %v659 = vld [vmem:[%s289 + $0x28] sm:$0xf]
      %v660 = vld [vmem:[%s289 + $0x2c] sm:$0xf]
      %v661 = vld [vmem:[%s289 + $0x30] sm:$0xf]
      %v662 = vld [vmem:[%s289 + $0x34] sm:$0xf]
      %v663 = vld [vmem:[%s289 + $0x38] sm:$0xf]
      %v664 = vld [vmem:[%s289 + $0x3c] sm:$0xf]
      %v665 = vld [vmem:[%s289 + $0x40] sm:$0xf]
      %v666 = vld [vmem:[%s289 + $0x44] sm:$0xf]
      %v667 = vld [vmem:[%s289 + $0x48] sm:$0xf]
      %v668 = vld [vmem:[%s289 + $0x4c] sm:$0xf]
      %v669 = vld [vmem:[%s289 + $0x50] sm:$0xf]
      %v670 = vld [vmem:[%s289 + $0x54] sm:$0xf]
      %v671 = vld [vmem:[%s289 + $0x58] sm:$0xf]
      %v672 = vld [vmem:[%s289 + $0x5c] sm:$0xf]
      %v673 = vld [vmem:[%s289 + $0x60] sm:$0xf]
      %v674 = vld [vmem:[%s289 + $0x64] sm:$0xf]
      %v675 = vld [vmem:[%s289 + $0x68] sm:$0xf]
      %v676 = vld [vmem:[%s289 + $0x6c] sm:$0xf]
      %v677 = vld [vmem:[%s289 + $0x70] sm:$0xf]
      %v678 = vld [vmem:[%s289 + $0x74] sm:$0xf]
      %v679 = vld [vmem:[%s289 + $0x78] sm:$0xf]
      %v680 = vld [vmem:[%s289 + $0x7c] sm:$0xf]
      %v681 = vunpack.c.l.bf16 %v649
      %v682 = vunpack.c.l.bf16 %v650
      %v683 = vunpack.c.l.bf16 %v651
      %v684 = vunpack.c.l.bf16 %v652
      %v685 = vunpack.c.l.bf16 %v653
      %v686 = vunpack.c.l.bf16 %v654
      %v687 = vunpack.c.l.bf16 %v655
      %v688 = vunpack.c.l.bf16 %v656
      %v689 = vunpack.c.l.bf16 %v657
      %v690 = vunpack.c.l.bf16 %v658
      %v691 = vunpack.c.l.bf16 %v659
      %v692 = vunpack.c.l.bf16 %v660
      %v693 = vunpack.c.l.bf16 %v661
      %v694 = vunpack.c.l.bf16 %v662
      %v695 = vunpack.c.l.bf16 %v663
      %v696 = vunpack.c.l.bf16 %v664
      %v697 = vunpack.c.l.bf16 %v665
      %v698 = vunpack.c.l.bf16 %v666
      %v699 = vunpack.c.l.bf16 %v667
      %v700 = vunpack.c.l.bf16 %v668
      %v701 = vunpack.c.l.bf16 %v669
      %v702 = vunpack.c.l.bf16 %v670
      %v703 = vunpack.c.l.bf16 %v671
      %v704 = vunpack.c.l.bf16 %v672
      %v705 = vunpack.c.l.bf16 %v673
      %v706 = vunpack.c.l.bf16 %v674
      %v707 = vunpack.c.l.bf16 %v675
      %v708 = vunpack.c.l.bf16 %v676
      %v709 = vunpack.c.l.bf16 %v677
      %v710 = vunpack.c.l.bf16 %v678
      %v711 = vunpack.c.l.bf16 %v679
      %v712 = vunpack.c.l.bf16 %v680
      %v713 = vld [vmem:[%s293] sm:$0x1]
      %v715 = vlaneseq
      %v716 = vshrl.u32 %v715, 7
      %v717 = vsub.s32 0, %v716
      %v718 = vrot.slane %v713, %v717
      %v720 = vmul.f32 %v681, %v718
      %v721 = vmul.f32 %v682, %v718
      %v722 = vmul.f32 %v683, %v718
      %v723 = vmul.f32 %v684, %v718
      %v724 = vmul.f32 %v685, %v718
      %v725 = vmul.f32 %v686, %v718
      %v726 = vmul.f32 %v687, %v718
      %v727 = vmul.f32 %v688, %v718
      %v728 = vmul.f32 %v689, %v718
      %v729 = vmul.f32 %v690, %v718
      %v730 = vmul.f32 %v691, %v718
      %v731 = vmul.f32 %v692, %v718
      %v732 = vmul.f32 %v693, %v718
      %v733 = vmul.f32 %v694, %v718
      %v734 = vmul.f32 %v695, %v718
      %v735 = vmul.f32 %v696, %v718
      %v736 = vmul.f32 %v697, %v718
      %v737 = vmul.f32 %v698, %v718
      %v738 = vmul.f32 %v699, %v718
      %v739 = vmul.f32 %v700, %v718
      %v740 = vmul.f32 %v701, %v718
      %v741 = vmul.f32 %v702, %v718
      %v742 = vmul.f32 %v703, %v718
      %v743 = vmul.f32 %v704, %v718
      %v744 = vmul.f32 %v705, %v718
      %v745 = vmul.f32 %v706, %v718
      %v746 = vmul.f32 %v707, %v718
      %v747 = vmul.f32 %v708, %v718
      %v748 = vmul.f32 %v709, %v718
      %v749 = vmul.f32 %v710, %v718
      %v750 = vmul.f32 %v711, %v718
      %v751 = vmul.f32 %v712, %v718
      %v752 = vadd.f32 %v720, %v523
      %v753 = vadd.f32 %v721, %v526
      %v754 = vadd.f32 %v722, %v531
      %v755 = vadd.f32 %v723, %v534
      %v756 = vadd.f32 %v724, %v539
      %v757 = vadd.f32 %v725, %v542
      %v758 = vadd.f32 %v726, %v547
      %v759 = vadd.f32 %v727, %v550
      %v760 = vadd.f32 %v728, %v555
      %v761 = vadd.f32 %v729, %v558
      %v762 = vadd.f32 %v730, %v563
      %v763 = vadd.f32 %v731, %v566
      %v764 = vadd.f32 %v732, %v571
      %v765 = vadd.f32 %v733, %v574
      %v766 = vadd.f32 %v734, %v579
      %v767 = vadd.f32 %v735, %v582
      %v768 = vadd.f32 %v736, %v587
      %v769 = vadd.f32 %v737, %v590
      %v770 = vadd.f32 %v738, %v595
      %v771 = vadd.f32 %v739, %v598
      %v772 = vadd.f32 %v740, %v603
      %v773 = vadd.f32 %v741, %v606
      %v774 = vadd.f32 %v742, %v611
      %v775 = vadd.f32 %v743, %v614
      %v776 = vadd.f32 %v744, %v619
      %v777 = vadd.f32 %v745, %v622
      %v778 = vadd.f32 %v746, %v627
      %v779 = vadd.f32 %v747, %v630
      %v780 = vadd.f32 %v748, %v635
      %v781 = vadd.f32 %v749, %v638
      %v782 = vadd.f32 %v750, %v643
      %v783 = vadd.f32 %v751, %v646
      %v784 = vpack.c.bf16 %v753, %v752
      %v785 = vpack.c.bf16 %v755, %v754
      %v786 = vpack.c.bf16 %v757, %v756
      %v787 = vpack.c.bf16 %v759, %v758
      %v788 = vpack.c.bf16 %v761, %v760
      %v789 = vpack.c.bf16 %v763, %v762
      %v790 = vpack.c.bf16 %v765, %v764
      %v791 = vpack.c.bf16 %v767, %v766
      %v792 = vpack.c.bf16 %v769, %v768
      %v793 = vpack.c.bf16 %v771, %v770
      %v794 = vpack.c.bf16 %v773, %v772
      %v795 = vpack.c.bf16 %v775, %v774
      %v796 = vpack.c.bf16 %v777, %v776
      %v797 = vpack.c.bf16 %v779, %v778
      %v798 = vpack.c.bf16 %v781, %v780
      %v799 = vpack.c.bf16 %v783, %v782
      %v816 = vunpack.c.l.b16 %v784
      %v817 = vunpack.c.h.b16 %v784
      %v818 = vunpack.c.l.b16 %v785
      %v819 = vunpack.c.h.b16 %v785
      %v820 = vunpack.c.l.b16 %v786
      %v821 = vunpack.c.h.b16 %v786
      %v822 = vunpack.c.l.b16 %v787
      %v823 = vunpack.c.h.b16 %v787
      %v824 = vunpack.c.l.b16 %v788
      %v825 = vunpack.c.h.b16 %v788
      %v826 = vunpack.c.l.b16 %v789
      %v827 = vunpack.c.h.b16 %v789
      %v828 = vunpack.c.l.b16 %v790
      %v829 = vunpack.c.h.b16 %v790
      %v830 = vunpack.c.l.b16 %v791
      %v831 = vunpack.c.h.b16 %v791
      %v832 = vunpack.c.l.b16 %v792
      %v833 = vunpack.c.h.b16 %v792
      %v834 = vunpack.c.l.b16 %v793
      %v835 = vunpack.c.h.b16 %v793
      %v836 = vunpack.c.l.b16 %v794
      %v837 = vunpack.c.h.b16 %v794
      %v838 = vunpack.c.l.b16 %v795
      %v839 = vunpack.c.h.b16 %v795
      %v840 = vunpack.c.l.b16 %v796
      %v841 = vunpack.c.h.b16 %v796
      %v842 = vunpack.c.l.b16 %v797
      %v843 = vunpack.c.h.b16 %v797
      %v844 = vunpack.c.l.b16 %v798
      %v845 = vunpack.c.h.b16 %v798
      %v846 = vunpack.c.l.b16 %v799
      %v847 = vunpack.c.h.b16 %v799
      %v848 = vpack.c.b16 %v816, %v816
      %v849 = vpack.c.b16 %v817, %v817
      %v850 = vpack.c.b16 %v818, %v818
      %v851 = vpack.c.b16 %v819, %v819
      %v852 = vpack.c.b16 %v820, %v820
      %v853 = vpack.c.b16 %v821, %v821
      %v854 = vpack.c.b16 %v822, %v822
      %v855 = vpack.c.b16 %v823, %v823
      %v856 = vpack.c.b16 %v824, %v824
      %v857 = vpack.c.b16 %v825, %v825
      %v858 = vpack.c.b16 %v826, %v826
      %v859 = vpack.c.b16 %v827, %v827
      %v860 = vpack.c.b16 %v828, %v828
      %v861 = vpack.c.b16 %v829, %v829
      %v862 = vpack.c.b16 %v830, %v830
      %v863 = vpack.c.b16 %v831, %v831
      %v864 = vpack.c.b16 %v832, %v832
      %v865 = vpack.c.b16 %v833, %v833
      %v866 = vpack.c.b16 %v834, %v834
      %v867 = vpack.c.b16 %v835, %v835
      %v868 = vpack.c.b16 %v836, %v836
      %v869 = vpack.c.b16 %v837, %v837
      %v870 = vpack.c.b16 %v838, %v838
      %v871 = vpack.c.b16 %v839, %v839
      %v872 = vpack.c.b16 %v840, %v840
      %v873 = vpack.c.b16 %v841, %v841
      %v874 = vpack.c.b16 %v842, %v842
      %v875 = vpack.c.b16 %v843, %v843
      %v876 = vpack.c.b16 %v844, %v844
      %v877 = vpack.c.b16 %v845, %v845
      %v878 = vpack.c.b16 %v846, %v846
      %v879 = vpack.c.b16 %v847, %v847
      %912 = vst [vmem:[%s312] sm:$0xf] %v848
      %913 = vst [vmem:[%s312 + $0x4] sm:$0xf] %v849
      %914 = vst [vmem:[%s312 + $0x8] sm:$0xf] %v850
      %915 = vst [vmem:[%s312 + $0xc] sm:$0xf] %v851
      %916 = vst [vmem:[%s312 + $0x10] sm:$0xf] %v852
      %917 = vst [vmem:[%s312 + $0x14] sm:$0xf] %v853
      %918 = vst [vmem:[%s312 + $0x18] sm:$0xf] %v854
      %919 = vst [vmem:[%s312 + $0x1c] sm:$0xf] %v855
      %920 = vst [vmem:[%s312 + $0x20] sm:$0xf] %v856
      %921 = vst [vmem:[%s312 + $0x24] sm:$0xf] %v857
      %922 = vst [vmem:[%s312 + $0x28] sm:$0xf] %v858
      %923 = vst [vmem:[%s312 + $0x2c] sm:$0xf] %v859
      %924 = vst [vmem:[%s312 + $0x30] sm:$0xf] %v860
      %925 = vst [vmem:[%s312 + $0x34] sm:$0xf] %v861
      %926 = vst [vmem:[%s312 + $0x38] sm:$0xf] %v862
      %927 = vst [vmem:[%s312 + $0x3c] sm:$0xf] %v863
      %928 = vst [vmem:[%s312 + $0x40] sm:$0xf] %v864
      %929 = vst [vmem:[%s312 + $0x44] sm:$0xf] %v865
      %930 = vst [vmem:[%s312 + $0x48] sm:$0xf] %v866
      %931 = vst [vmem:[%s312 + $0x4c] sm:$0xf] %v867
      %932 = vst [vmem:[%s312 + $0x50] sm:$0xf] %v868
      %933 = vst [vmem:[%s312 + $0x54] sm:$0xf] %v869
      %934 = vst [vmem:[%s312 + $0x58] sm:$0xf] %v870
      %935 = vst [vmem:[%s312 + $0x5c] sm:$0xf] %v871
      %936 = vst [vmem:[%s312 + $0x60] sm:$0xf] %v872
      %937 = vst [vmem:[%s312 + $0x64] sm:$0xf] %v873
      %938 = vst [vmem:[%s312 + $0x68] sm:$0xf] %v874
      %939 = vst [vmem:[%s312 + $0x6c] sm:$0xf] %v875
      %940 = vst [vmem:[%s312 + $0x70] sm:$0xf] %v876
      %941 = vst [vmem:[%s312 + $0x74] sm:$0xf] %v877
      %942 = vst [vmem:[%s312 + $0x78] sm:$0xf] %v878
      %943 = vst [vmem:[%s312 + $0x7c] sm:$0xf] %v879
      %s944 = smul.u32 32, %s21
      %p945 = scmp.lt.s32.totalorder %s20, 1
      %s946 = scalar_select %p945, %s20, 1
      %p947 = scmp.lt.s32.totalorder %s944, 31
      %s948 = scalar_select %p947, %s944, 31
      %s949 = smul.addr %s946, 32
      %s950 = sadd.s32 %s948, %s949
      %s951 = smul.addr %s950, 4
      %s952 = scalar_lea.vmem %s5, %s951
      // Predicated region
      $region41: #{block_forward.7} parent=39 // pred_check
        %p953 = pneg %p172
      $region42: #{block_forward.7} parent=39 // pred_check_branch
        %955 = sbr.rel (%p953) target = $region44
      $region43: #{block_forward.7} parent=39 // pred_region
        %s956 = smul.u32 32, %s21
      $region44: #{block_forward.7} parent=39 // pred_fallthru
        _
    $region40: #{block_forward.7} parent=5 // pred_fallthru
      _
    %p957 = scmp.le.s32.totalorder 2, %s11
    // Predicated region
    $region45: #{block_forward.7} parent=5 // pred_check
      %p958 = pneg %p957
    $region46: #{block_forward.7} parent=5 // pred_check_branch
      %960 = sbr.rel (%p958) target = $region48
    $region47: #{block_forward.7} parent=5 // pred_region
      %s961 = ssub.s32 %s11, 2
      // Predicated region
      $region49: #{block_forward.7} parent=47 // pred_check
        %p962 = pneg %p178
      $region50: #{block_forward.7} parent=47 // pred_check_branch
        %964 = sbr.rel (%p962) target = $region52
      $region51: #{block_forward.7} parent=47 // pred_region
        %s965 = smul.u32 32, %s23
        %p966 = scmp.lt.s32.totalorder %s22, 1
        %s967 = scalar_select %p966, %s22, 1
        %p968 = scmp.lt.s32.totalorder %s965, 31
        %s969 = scalar_select %p968, %s965, 31
        %s970 = smul.addr %s967, 32
        %s971 = sadd.s32 %s969, %s970
        %s972 = smul.addr %s971, 4
        %s973 = scalar_lea.vmem %s5, %s972
      $region52: #{block_forward.7} parent=47 // pred_fallthru
        _
    $region48: #{block_forward.7} parent=5 // pred_fallthru
      _
  $region6: #{block_forward.7} parent=0 // loop_footer
    %s15 = sadd.s32 1, %s11
  $region7: #{block_forward.7} parent=0 // loop_footer_branch
    %10 = sbr.rel target = $region3
  $region8: #{block_forward.7} parent=0 // loop_exit
    _

// kernel: block_forward.5
$region0: #{block_forward.5}
  #allocation0 [shape = 'u32[]', space=smem, size = 0x4, offset = 0x4, fixed_abs, tag = 'smem constant byte address 0x4 - core index']
  #allocation1 [shape = 'u32[144,128]{1,0:T(1,128)}', space=vmem, size = 0x12000, scoped, tag = 'internal scratch']
  #allocation2 [shape = 'bf16[18,18,128]{2,1,0:T(8,128)(2,1)}', space=vmem, size = 0x1b000, scoped, tag = 'scratch operand']
  %s0 = inlined_call_operand.vmem [shape: bf16[2,16,16,128], index: 0, kind: input, shape index: {}]
  %s1 = inlined_call_operand.vmem [shape: f32[3,3,128], index: 1, kind: input, shape index: {}]
  %s2 = inlined_call_operand.vmem [shape: f32[1,128], index: 2, kind: input, shape index: {}]
  %s3 = inlined_call_operand.vmem [shape: bf16[2,16,16,128], index: 3, kind: output, shape index: {}]
  %s4 = sld [smem:[#allocation0]]
  $region45: #{block_forward.5} parent=0
    _
  %s6 = ssub.s32 1, %s4
  %s7 = scalar_select 0, %s6, %s4
  loop: start=0, step=1, limit=4
  $region2: #{block_forward.5} parent=0 // loop_pre_header
    _
  $region3: #{block_forward.5} parent=0 // loop_header
    %s9 = sphi 0, %s13
    %p10 = scmp.ge.s32.totalorder %s9, 4
    %s16 = sphi 0, %s28
    %s17 = sphi 0, %s24
    %s18 = sphi 0, %s16
    %s19 = sphi 0, %s17
    %s20 = sphi 0, %s18
    %s21 = sphi 0, %s19
    %s33 = sphi 0, %s35
    %s36 = sphi 0, %s33
    %s37 = sphi 0, %s36
    %s53 = sphi 0, %s37
    %s59 = sphi 0, %s61
    %s62 = sphi 0, %s59
    %s63 = sphi 0, %s62
    %s79 = sphi 0, %s63
    %s85 = sphi 0, %s87
    %s88 = sphi 0, %s85
    %s89 = sphi 0, %s88
    %s105 = sphi 0, %s89
    %s113 = sphi 0, %s115
    %s116 = sphi 0, %s113
    %s117 = sphi 0, %s116
    %s133 = sphi 0, %s117
  $region4: #{block_forward.5} parent=0 // loop_header_branch
    %12 = sbr.rel (%p10) target = $region8
  $region5: #{block_forward.5} parent=0 // loop_body
    %s14 = ssub.s32 %s9, 1
    %s15 = ssub.s32 %s9, 2
    %s22 = sadd.s32 1, %s17
    %p23 = scmp.ge.s32.totalorder %s22, 1
    %s24 = scalar_select %p23, 0, %s22
    %s25 = sadd.s32 1, %s16
    %s26 = scalar_select %p23, %s25, %s16
    %p27 = scmp.ge.s32.totalorder %s26, 2
    %s28 = scalar_select %p27, 0, %s26
    %s29 = ssub.s32 %s16, %s28
    %s30 = ssub.s32 %s17, %s24
    %s31 = sor.u32 %s29, %s30
    %p32 = scmp.eq.s32.totalorder %s31, 0
    %s34 = sadd.s32 %s33, 1
    %s35 = scalar_select %p32, %s33, %s34
    %p38 = pneg %p32
    %p39 = scmp.eq.s32.totalorder %s9, 1
    %p40 = por %p38, %p39
    %p41 = scmp.ne.s32.totalorder %s33, %s36
    %p42 = scmp.eq.s32.totalorder %s9, 0
    %p43 = por %p41, %p42
    %p44 = scmp.ne.s32.totalorder %s33, %s36
    %p45 = scmp.eq.s32.totalorder %s14, 1
    %p46 = por %p44, %p45
    %p47 = scmp.ne.s32.totalorder %s36, %s37
    %p48 = scmp.eq.s32.totalorder %s14, 0
    %p49 = por %p47, %p48
    %p50 = scmp.ne.s32.totalorder %s36, %s37
    %p51 = scmp.eq.s32.totalorder %s15, 1
    %p52 = por %p50, %p51
    %p54 = scmp.ne.s32.totalorder %s37, %s53
    %p55 = scmp.eq.s32.totalorder %s15, 0
    %p56 = por %p54, %p55
    %s57 = ssub.s32 %s17, %s24
    %p58 = scmp.eq.s32.totalorder %s57, 0
    %s60 = sadd.s32 %s59, 1
    %s61 = scalar_select %p58, %s59, %s60
    %p64 = pneg %p58
    %p65 = scmp.eq.s32.totalorder %s9, 1
    %p66 = por %p64, %p65
    %p67 = scmp.ne.s32.totalorder %s59, %s62
    %p68 = scmp.eq.s32.totalorder %s9, 0
    %p69 = por %p67, %p68
    %p70 = scmp.ne.s32.totalorder %s59, %s62
    %p71 = scmp.eq.s32.totalorder %s14, 1
    %p72 = por %p70, %p71
    %p73 = scmp.ne.s32.totalorder %s62, %s63
    %p74 = scmp.eq.s32.totalorder %s14, 0
    %p75 = por %p73, %p74
    %p76 = scmp.ne.s32.totalorder %s62, %s63
    %p77 = scmp.eq.s32.totalorder %s15, 1
    %p78 = por %p76, %p77
    %p80 = scmp.ne.s32.totalorder %s63, %s79
    %p81 = scmp.eq.s32.totalorder %s15, 0
    %p82 = por %p80, %p81
    %s83 = ssub.s32 %s17, %s24
    %p84 = scmp.eq.s32.totalorder %s83, 0
    %s86 = sadd.s32 %s85, 1
    %s87 = scalar_select %p84, %s85, %s86
    %p90 = pneg %p84
    %p91 = scmp.eq.s32.totalorder %s9, 1
    %p92 = por %p90, %p91
    %p93 = scmp.ne.s32.totalorder %s85, %s88
    %p94 = scmp.eq.s32.totalorder %s9, 0
    %p95 = por %p93, %p94
    %p96 = scmp.ne.s32.totalorder %s85, %s88
    %p97 = scmp.eq.s32.totalorder %s14, 1
    %p98 = por %p96, %p97
    %p99 = scmp.ne.s32.totalorder %s88, %s89
    %p100 = scmp.eq.s32.totalorder %s14, 0
    %p101 = por %p99, %p100
    %p102 = scmp.ne.s32.totalorder %s88, %s89
    %p103 = scmp.eq.s32.totalorder %s15, 1
    %p104 = por %p102, %p103
    %p106 = scmp.ne.s32.totalorder %s89, %s105
    %p107 = scmp.eq.s32.totalorder %s15, 0
    %p108 = por %p106, %p107
    %s109 = ssub.s32 %s16, %s28
    %s110 = ssub.s32 %s17, %s24
    %s111 = sor.u32 %s109, %s110
    %p112 = scmp.eq.s32.totalorder %s111, 0
    %s114 = sadd.s32 %s113, 1
    %s115 = scalar_select %p112, %s113, %s114
    %p118 = pneg %p112
    %p119 = scmp.eq.s32.totalorder %s9, 1
    %p120 = por %p118, %p119
    %p121 = scmp.ne.s32.totalorder %s113, %s116
    %p122 = scmp.eq.s32.totalorder %s9, 0
    %p123 = por %p121, %p122
    %p124 = scmp.ne.s32.totalorder %s113, %s116
    %p125 = scmp.eq.s32.totalorder %s14, 1
    %p126 = por %p124, %p125
    %p127 = scmp.ne.s32.totalorder %s116, %s117
    %p128 = scmp.eq.s32.totalorder %s14, 0
    %p129 = por %p127, %p128
    %p130 = scmp.ne.s32.totalorder %s116, %s117
    %p131 = scmp.eq.s32.totalorder %s15, 1
    %p132 = por %p130, %p131
    %p134 = scmp.ne.s32.totalorder %s117, %s133
    %p135 = scmp.eq.s32.totalorder %s15, 0
    %p136 = por %p134, %p135
    %p137 = scmp.le.s32.totalorder 1, %s9
    %p138 = scmp.lt.s32.totalorder %s9, 3
    %p139 = pnand %p137, %p138
    %p140 = pneg %p139
    // Predicated region
    $region9: #{block_forward.5} parent=5 // pred_check
      _
    $region10: #{block_forward.5} parent=5 // pred_check_branch
      %142 = sbr.rel (%p139) target = $region12
    $region11: #{block_forward.5} parent=5 // pred_region
      %s143 = ssub.s32 %s9, 1
      // Predicated region
      $region13: #{block_forward.5} parent=11 // pred_check
        %p144 = pneg %p75
      $region14: #{block_forward.5} parent=11 // pred_check_branch
        %146 = sbr.rel (%p144) target = $region16
      $region15: #{block_forward.5} parent=11 // pred_region
        %p147 = scmp.lt.s32.totalorder %s19, 0
        %s148 = scalar_select %p147, %s19, 0
        %s149 = smul.addr %s148, 4
        %s150 = scalar_lea.vmem %s1, %s149
      $region16: #{block_forward.5} parent=11 // pred_fallthru
        _
      // Predicated region
      $region17: #{block_forward.5} parent=11 // pred_check
        %p151 = pneg %p101
      $region18: #{block_forward.5} parent=11 // pred_check_branch
        %153 = sbr.rel (%p151) target = $region20
      $region19: #{block_forward.5} parent=11 // pred_region
        %p154 = scmp.lt.s32.totalorder %s19, 0
        %s155 = scalar_select %p154, %s19, 0
        %s156 = scalar_lea.vmem %s2, %s155
      $region20: #{block_forward.5} parent=11 // pred_fallthru
        _
    $region12: #{block_forward.5} parent=5 // pred_fallthru
      _
    %p157 = scmp.lt.s32.totalorder %s9, 2
    // Predicated region
    $region21: #{block_forward.5} parent=5 // pred_check
      %p158 = pneg %p157
    $region22: #{block_forward.5} parent=5 // pred_check_branch
      %160 = sbr.rel (%p158) target = $region24
    $region23: #{block_forward.5} parent=5 // pred_region
      // Predicated region
      $region25: #{block_forward.5} parent=23 // pred_check
        %p161 = pneg %p43
      $region26: #{block_forward.5} parent=23 // pred_check_branch
        %163 = sbr.rel (%p161) target = $region28
      $region27: #{block_forward.5} parent=23 // pred_region
        %p164 = scmp.lt.s32.totalorder %s16, 1
        %s165 = scalar_select %p164, %s16, 1
        %p166 = scmp.lt.s32.totalorder %s17, 0
        %s167 = scalar_select %p166, %s17, 0
        %s168 = smul.addr %s165, 32
        %s169 = sadd.s32 %s167, %s168
        %s170 = smul.addr %s169, 4
        %s171 = scalar_lea.vmem %s0, %s170
      $region28: #{block_forward.5} parent=23 // pred_fallthru
        _
    $region24: #{block_forward.5} parent=5 // pred_fallthru
      _
    %p172 = scmp.le.s32.totalorder 1, %s9
    %p173 = scmp.lt.s32.totalorder %s9, 3
    %p174 = pnand %p172, %p173
    %p175 = pneg %p174
    // Predicated region
    $region29: #{block_forward.5} parent=5 // pred_check
      _
    $region30: #{block_forward.5} parent=5 // pred_check_branch
      %177 = sbr.rel (%p174) target = $region32
    $region31: #{block_forward.5} parent=5 // pred_region
      %s178 = ssub.s32 %s9, 1
      %p179 = scmp.lt.s32.totalorder %s18, 1
      %s180 = scalar_select %p179, %s18, 1
      %p181 = scmp.lt.s32.totalorder %s19, 0
      %s182 = scalar_select %p181, %s19, 0
      %s183 = smul.addr %s180, 32
      %s184 = sadd.s32 %s182, %s183
      %s185 = smul.addr %s184, 4
      %s186 = scalar_lea.vmem %s0, %s185
      %p187 = pneg %p49
      %p188 = pneg %p46
      %p189 = scmp.lt.s32.totalorder %s19, 0
      %s190 = scalar_select %p189, %s19, 0
      %s191 = smul.addr %s190, 4
      %s192 = scalar_lea.vmem %s1, %s191
      %p193 = pneg %p75
      %p194 = pneg %p72
      %p195 = scmp.lt.s32.totalorder %s19, 0
      %s196 = scalar_select %p195, %s19, 0
      %s197 = scalar_lea.vmem %s2, %s196
      %p198 = pneg %p101
      %p199 = pneg %p98
      %p200 = pneg %p129
      %p201 = pneg %p126
      %p202 = scmp.lt.s32.totalorder %s18, 1
      %s203 = scalar_select %p202, %s18, 1
      %p204 = scmp.lt.s32.totalorder %s19, 0
      %s205 = scalar_select %p204, %s19, 0
      %s206 = smul.addr %s203, 32
      %s207 = sadd.s32 %s205, %s206
      %s208 = smul.addr %s207, 4
      %s209 = scalar_lea.vmem %s3, %s208
      %p210 = scmp.lt.s32.totalorder %s18, 1
      %s211 = scalar_select %p210, %s18, 1
      %p212 = scmp.lt.s32.totalorder %s19, 0
      %s213 = scalar_select %p212, %s19, 0
      %s214 = smul.addr %s211, 32
      %s215 = sadd.s32 %s213, %s214
      %s216 = smul.addr %s215, 4
      %s217 = scalar_lea.vmem %s0, %s216
      %p218 = scmp.lt.s32.totalorder %s19, 0
      %s219 = scalar_select %p218, %s19, 0
      %s220 = smul.addr %s219, 4
      %s221 = scalar_lea.vmem %s1, %s220
      %p222 = scmp.lt.s32.totalorder %s19, 0
      %s223 = scalar_select %p222, %s19, 0
      %s224 = scalar_lea.vmem %s2, %s223
      %p225 = scmp.lt.s32.totalorder %s18, 1
      %s226 = scalar_select %p225, %s18, 1
      %p227 = scmp.lt.s32.totalorder %s19, 0
      %s228 = scalar_select %p227, %s19, 0
      %s229 = smul.addr %s226, 32
      %s230 = sadd.s32 %s228, %s229
      %s231 = smul.addr %s230, 4
      %s232 = scalar_lea.vmem %s3, %s231
      %234 = vst [vmem:[#allocation2] sm:$0xf] 0
      %235 = vst [vmem:[#allocation2 + $0x4] sm:$0xf] 0
      %236 = vst [vmem:[#allocation2 + $0x8] sm:$0x1] 0
      %s237 = scalar_lea.vmem [#allocation2], 204
      %238 = vst [vmem:[%s237] sm:$0xf] 0
      %239 = vst [vmem:[%s237 + $0x4] sm:$0xf] 0
      %240 = vst [vmem:[%s237 + $0x8] sm:$0x1] 0
      %s241 = scalar_lea.vmem [#allocation2], 12
      %vm242 = vcmask 1040384
      %vm243 = vsmask.f32 256
      %vm244 = vmand %vm242, %vm243
      %v245 = vld [vmem:[%s241] sm:$0x1]
      %v246 = vsel %vm244, 0, %v245
      %247 = vst [vmem:[%s241] sm:$0x1] %v246
      %v248 = vld [vmem:[%s241 + $0xc] sm:$0x1]
      %v249 = vsel %vm244, 0, %v248
      %250 = vst [vmem:[%s241 + $0xc] sm:$0x1] %v249
      %v251 = vld [vmem:[%s241 + $0x18] sm:$0x1]
      %v252 = vsel %vm244, 0, %v251
      %253 = vst [vmem:[%s241 + $0x18] sm:$0x1] %v252
      %v254 = vld [vmem:[%s241 + $0x24] sm:$0x1]
      %v255 = vsel %vm244, 0, %v254
      %256 = vst [vmem:[%s241 + $0x24] sm:$0x1] %v255
      %v257 = vld [vmem:[%s241 + $0x30] sm:$0x1]
      %v258 = vsel %vm244, 0, %v257
      %259 = vst [vmem:[%s241 + $0x30] sm:$0x1] %v258
      %v260 = vld [vmem:[%s241 + $0x3c] sm:$0x1]
      %v261 = vsel %vm244, 0, %v260
      %262 = vst [vmem:[%s241 + $0x3c] sm:$0x1] %v261
      %v263 = vld [vmem:[%s241 + $0x48] sm:$0x1]
      %v264 = vsel %vm244, 0, %v263
      %265 = vst [vmem:[%s241 + $0x48] sm:$0x1] %v264
      %v266 = vld [vmem:[%s241 + $0x54] sm:$0x1]
      %v267 = vsel %vm244, 0, %v266
      %268 = vst [vmem:[%s241 + $0x54] sm:$0x1] %v267
      %v269 = vld [vmem:[%s241 + $0x60] sm:$0x1]
      %v270 = vsel %vm244, 0, %v269
      %271 = vst [vmem:[%s241 + $0x60] sm:$0x1] %v270
      %v272 = vld [vmem:[%s241 + $0x6c] sm:$0x1]
      %v273 = vsel %vm244, 0, %v272
      %274 = vst [vmem:[%s241 + $0x6c] sm:$0x1] %v273
      %v275 = vld [vmem:[%s241 + $0x78] sm:$0x1]
      %v276 = vsel %vm244, 0, %v275
      %277 = vst [vmem:[%s241 + $0x78] sm:$0x1] %v276
      %v278 = vld [vmem:[%s241 + $0x84] sm:$0x1]
      %v279 = vsel %vm244, 0, %v278
      %280 = vst [vmem:[%s241 + $0x84] sm:$0x1] %v279
      %v281 = vld [vmem:[%s241 + $0x90] sm:$0x1]
      %v282 = vsel %vm244, 0, %v281
      %283 = vst [vmem:[%s241 + $0x90] sm:$0x1] %v282
      %v284 = vld [vmem:[%s241 + $0x9c] sm:$0x1]
      %v285 = vsel %vm244, 0, %v284
      %286 = vst [vmem:[%s241 + $0x9c] sm:$0x1] %v285
      %v287 = vld [vmem:[%s241 + $0xa8] sm:$0x1]
      %v288 = vsel %vm244, 0, %v287
      %289 = vst [vmem:[%s241 + $0xa8] sm:$0x1] %v288
      %v290 = vld [vmem:[%s241 + $0xb4] sm:$0x1]
      %v291 = vsel %vm244, 0, %v290
      %292 = vst [vmem:[%s241 + $0xb4] sm:$0x1] %v291
      %vm293 = vsmask.f32 7938
      %vm294 = vmand %vm242, %vm293
      %v295 = vld [vmem:[%s241 + $0x8] sm:$0x1]
      %v296 = vsel %vm294, 0, %v295
      %297 = vst [vmem:[%s241 + $0x8] sm:$0x1] %v296
      %v298 = vld [vmem:[%s241 + $0x14] sm:$0x1]
      %v299 = vsel %vm294, 0, %v298
      %300 = vst [vmem:[%s241 + $0x14] sm:$0x1] %v299
      %v301 = vld [vmem:[%s241 + $0x20] sm:$0x1]
      %v302 = vsel %vm294, 0, %v301
      %303 = vst [vmem:[%s241 + $0x20] sm:$0x1] %v302
      %v304 = vld [vmem:[%s241 + $0x2c] sm:$0x1]
      %v305 = vsel %vm294, 0, %v304
      %306 = vst [vmem:[%s241 + $0x2c] sm:$0x1] %v305
      %v307 = vld [vmem:[%s241 + $0x38] sm:$0x1]
      %v308 = vsel %vm294, 0, %v307
      %309 = vst [vmem:[%s241 + $0x38] sm:$0x1] %v308
      %v310 = vld [vmem:[%s241 + $0x44] sm:$0x1]
      %v311 = vsel %vm294, 0, %v310
      %312 = vst [vmem:[%s241 + $0x44] sm:$0x1] %v311
      %v313 = vld [vmem:[%s241 + $0x50] sm:$0x1]
      %v314 = vsel %vm294, 0, %v313
      %315 = vst [vmem:[%s241 + $0x50] sm:$0x1] %v314
      %v316 = vld [vmem:[%s241 + $0x5c] sm:$0x1]
      %v317 = vsel %vm294, 0, %v316
      %318 = vst [vmem:[%s241 + $0x5c] sm:$0x1] %v317
      %v319 = vld [vmem:[%s241 + $0x68] sm:$0x1]
      %v320 = vsel %vm294, 0, %v319
      %321 = vst [vmem:[%s241 + $0x68] sm:$0x1] %v320
      %v322 = vld [vmem:[%s241 + $0x74] sm:$0x1]
      %v323 = vsel %vm294, 0, %v322
      %324 = vst [vmem:[%s241 + $0x74] sm:$0x1] %v323
      %v325 = vld [vmem:[%s241 + $0x80] sm:$0x1]
      %v326 = vsel %vm294, 0, %v325
      %327 = vst [vmem:[%s241 + $0x80] sm:$0x1] %v326
      %v328 = vld [vmem:[%s241 + $0x8c] sm:$0x1]
      %v329 = vsel %vm294, 0, %v328
      %330 = vst [vmem:[%s241 + $0x8c] sm:$0x1] %v329
      %v331 = vld [vmem:[%s241 + $0x98] sm:$0x1]
      %v332 = vsel %vm294, 0, %v331
      %333 = vst [vmem:[%s241 + $0x98] sm:$0x1] %v332
      %v334 = vld [vmem:[%s241 + $0xa4] sm:$0x1]
      %v335 = vsel %vm294, 0, %v334
      %336 = vst [vmem:[%s241 + $0xa4] sm:$0x1] %v335
      %v337 = vld [vmem:[%s241 + $0xb0] sm:$0x1]
      %v338 = vsel %vm294, 0, %v337
      %339 = vst [vmem:[%s241 + $0xb0] sm:$0x1] %v338
      %v340 = vld [vmem:[%s241 + $0xbc] sm:$0x1]
      %v341 = vsel %vm294, 0, %v340
      %342 = vst [vmem:[%s241 + $0xbc] sm:$0x1] %v341
      %v343 = vld [vmem:[%s217] sm:$0xf]
      %v344 = vld [vmem:[%s217 + $0x4] sm:$0xf]
      %v345 = vld [vmem:[%s217 + $0x8] sm:$0xf]
      %v346 = vld [vmem:[%s217 + $0xc] sm:$0xf]
      %v347 = vld [vmem:[%s217 + $0x10] sm:$0xf]
      %v348 = vld [vmem:[%s217 + $0x14] sm:$0xf]
      %v349 = vld [vmem:[%s217 + $0x18] sm:$0xf]
      %v350 = vld [vmem:[%s217 + $0x1c] sm:$0xf]
      %v351 = vld [vmem:[%s217 + $0x20] sm:$0xf]
      %v352 = vld [vmem:[%s217 + $0x24] sm:$0xf]
      %v353 = vld [vmem:[%s217 + $0x28] sm:$0xf]
      %v354 = vld [vmem:[%s217 + $0x2c] sm:$0xf]
      %v355 = vld [vmem:[%s217 + $0x30] sm:$0xf]
      %v356 = vld [vmem:[%s217 + $0x34] sm:$0xf]
      %v357 = vld [vmem:[%s217 + $0x38] sm:$0xf]
      %v358 = vld [vmem:[%s217 + $0x3c] sm:$0xf]
      %v359 = vld [vmem:[%s217 + $0x40] sm:$0xf]
      %v360 = vld [vmem:[%s217 + $0x44] sm:$0xf]
      %v361 = vld [vmem:[%s217 + $0x48] sm:$0xf]
      %v362 = vld [vmem:[%s217 + $0x4c] sm:$0xf]
      %v363 = vld [vmem:[%s217 + $0x50] sm:$0xf]
      %v364 = vld [vmem:[%s217 + $0x54] sm:$0xf]
      %v365 = vld [vmem:[%s217 + $0x58] sm:$0xf]
      %v366 = vld [vmem:[%s217 + $0x5c] sm:$0xf]
      %v367 = vld [vmem:[%s217 + $0x60] sm:$0xf]
      %v368 = vld [vmem:[%s217 + $0x64] sm:$0xf]
      %v369 = vld [vmem:[%s217 + $0x68] sm:$0xf]
      %v370 = vld [vmem:[%s217 + $0x6c] sm:$0xf]
      %v371 = vld [vmem:[%s217 + $0x70] sm:$0xf]
      %v372 = vld [vmem:[%s217 + $0x74] sm:$0xf]
      %v373 = vld [vmem:[%s217 + $0x78] sm:$0xf]
      %v374 = vld [vmem:[%s217 + $0x7c] sm:$0xf]
      %vm375 = vsmask.f32 4368
      %vm376 = vmor %vm243, %vm375
      %v378 = vshrl.u32 %v343, 16
      %v380 = vrot.slane %v378, 7
      %v381 = vshll.u32 %v343, 16
      %v383 = vor.u32 %v380, %v381
      %v384 = vrot.slane %v380, 4
      %v386 = vshrl.u32 %v344, 16
      %v388 = vrot.slane %v386, 7
      %v389 = vshll.u32 %v344, 16
      %v391 = vor.u32 %v388, %v389
      %v392 = vsel %vm376, %v384, %v391
      %v393 = vrot.slane %v388, 4
      %v395 = vshrl.u32 %v345, 16
      %v397 = vrot.slane %v395, 7
      %v398 = vshll.u32 %v345, 16
      %v400 = vor.u32 %v397, %v398
      %v401 = vrot.slane %v397, 4
      %v403 = vshrl.u32 %v346, 16
      %v405 = vrot.slane %v403, 7
      %v406 = vshll.u32 %v346, 16
      %v408 = vor.u32 %v405, %v406
      %v409 = vsel %vm376, %v401, %v408
      %v410 = vrot.slane %v405, 4
      %v412 = vshrl.u32 %v347, 16
      %v414 = vrot.slane %v412, 7
      %v415 = vshll.u32 %v347, 16
      %v417 = vor.u32 %v414, %v415
      %v418 = vrot.slane %v414, 4
      %v420 = vshrl.u32 %v348, 16
      %v422 = vrot.slane %v420, 7
      %v423 = vshll.u32 %v348, 16
      %v425 = vor.u32 %v422, %v423
      %v426 = vsel %vm376, %v418, %v425
      %v427 = vrot.slane %v422, 4
      %v429 = vshrl.u32 %v349, 16
      %v431 = vrot.slane %v429, 7
      %v432 = vshll.u32 %v349, 16
      %v434 = vor.u32 %v431, %v432
      %v435 = vrot.slane %v431, 4
      %v437 = vshrl.u32 %v350, 16
      %v439 = vrot.slane %v437, 7
      %v440 = vshll.u32 %v350, 16
      %v442 = vor.u32 %v439, %v440
      %v443 = vsel %vm376, %v435, %v442
      %v444 = vrot.slane %v439, 4
      %v446 = vshrl.u32 %v351, 16
      %v448 = vrot.slane %v446, 7
      %v449 = vshll.u32 %v351, 16
      %v451 = vor.u32 %v448, %v449
      %v452 = vrot.slane %v448, 4
      %v454 = vshrl.u32 %v352, 16
      %v456 = vrot.slane %v454, 7
      %v457 = vshll.u32 %v352, 16
      %v459 = vor.u32 %v456, %v457
      %v460 = vsel %vm376, %v452, %v459
      %v461 = vrot.slane %v456, 4
      %v463 = vshrl.u32 %v353, 16
      %v465 = vrot.slane %v463, 7
      %v466 = vshll.u32 %v353, 16
      %v468 = vor.u32 %v465, %v466
      %v469 = vrot.slane %v465, 4
      %v471 = vshrl.u32 %v354, 16
      %v473 = vrot.slane %v471, 7
      %v474 = vshll.u32 %v354, 16
      %v476 = vor.u32 %v473, %v474
      %v477 = vsel %vm376, %v469, %v476
      %v478 = vrot.slane %v473, 4
      %v480 = vshrl.u32 %v355, 16
      %v482 = vrot.slane %v480, 7
      %v483 = vshll.u32 %v355, 16
      %v485 = vor.u32 %v482, %v483
      %v486 = vrot.slane %v482, 4
      %v488 = vshrl.u32 %v356, 16
      %v490 = vrot.slane %v488, 7
      %v491 = vshll.u32 %v356, 16
      %v493 = vor.u32 %v490, %v491
      %v494 = vsel %vm376, %v486, %v493
      %v495 = vrot.slane %v490, 4
      %v497 = vshrl.u32 %v357, 16
      %v499 = vrot.slane %v497, 7
      %v500 = vshll.u32 %v357, 16
      %v502 = vor.u32 %v499, %v500
      %v503 = vrot.slane %v499, 4
      %v505 = vshrl.u32 %v358, 16
      %v507 = vrot.slane %v505, 7
      %v508 = vshll.u32 %v358, 16
      %v510 = vor.u32 %v507, %v508
      %v511 = vsel %vm376, %v503, %v510
      %v512 = vrot.slane %v507, 4
      %v514 = vshrl.u32 %v359, 16
      %v516 = vrot.slane %v514, 7
      %v517 = vshll.u32 %v359, 16
      %v519 = vor.u32 %v516, %v517
      %v520 = vrot.slane %v516, 4
      %v522 = vshrl.u32 %v360, 16
      %v524 = vrot.slane %v522, 7
      %v525 = vshll.u32 %v360, 16
      %v527 = vor.u32 %v524, %v525
      %v528 = vsel %vm376, %v520, %v527
      %v529 = vrot.slane %v524, 4
      %v531 = vshrl.u32 %v361, 16
      %v533 = vrot.slane %v531, 7
      %v534 = vshll.u32 %v361, 16
      %v536 = vor.u32 %v533, %v534
      %v537 = vrot.slane %v533, 4
      %v539 = vshrl.u32 %v362, 16
      %v541 = vrot.slane %v539, 7
      %v542 = vshll.u32 %v362, 16
      %v544 = vor.u32 %v541, %v542
      %v545 = vsel %vm376, %v537, %v544
      %v546 = vrot.slane %v541, 4
      %v548 = vshrl.u32 %v363, 16
      %v550 = vrot.slane %v548, 7
      %v551 = vshll.u32 %v363, 16
      %v553 = vor.u32 %v550, %v551
      %v554 = vrot.slane %v550, 4
      %v556 = vshrl.u32 %v364, 16
      %v558 = vrot.slane %v556, 7
      %v559 = vshll.u32 %v364, 16
      %v561 = vor.u32 %v558, %v559
      %v562 = vsel %vm376, %v554, %v561
      %v563 = vrot.slane %v558, 4
      %v565 = vshrl.u32 %v365, 16
      %v567 = vrot.slane %v565, 7
      %v568 = vshll.u32 %v365, 16
      %v570 = vor.u32 %v567, %v568
      %v571 = vrot.slane %v567, 4
      %v573 = vshrl.u32 %v366, 16
      %v575 = vrot.slane %v573, 7
      %v576 = vshll.u32 %v366, 16
      %v578 = vor.u32 %v575, %v576
      %v579 = vsel %vm376, %v571, %v578
      %v580 = vrot.slane %v575, 4
      %v582 = vshrl.u32 %v367, 16
      %v584 = vrot.slane %v582, 7
      %v585 = vshll.u32 %v367, 16
      %v587 = vor.u32 %v584, %v585
      %v588 = vrot.slane %v584, 4
      %v590 = vshrl.u32 %v368, 16
      %v592 = vrot.slane %v590, 7
      %v593 = vshll.u32 %v368, 16
      %v595 = vor.u32 %v592, %v593
      %v596 = vsel %vm376, %v588, %v595
      %v597 = vrot.slane %v592, 4
      %v599 = vshrl.u32 %v369, 16
      %v601 = vrot.slane %v599, 7
      %v602 = vshll.u32 %v369, 16
      %v604 = vor.u32 %v601, %v602
      %v605 = vrot.slane %v601, 4
      %v607 = vshrl.u32 %v370, 16
      %v609 = vrot.slane %v607, 7
      %v610 = vshll.u32 %v370, 16
      %v612 = vor.u32 %v609, %v610
      %v613 = vsel %vm376, %v605, %v612
      %v614 = vrot.slane %v609, 4
      %v616 = vshrl.u32 %v371, 16
      %v618 = vrot.slane %v616, 7
      %v619 = vshll.u32 %v371, 16
      %v621 = vor.u32 %v618, %v619
      %v622 = vrot.slane %v618, 4
      %v624 = vshrl.u32 %v372, 16
      %v626 = vrot.slane %v624, 7
      %v627 = vshll.u32 %v372, 16
      %v629 = vor.u32 %v626, %v627
      %v630 = vsel %vm376, %v622, %v629
      %v631 = vrot.slane %v626, 4
      %v633 = vshrl.u32 %v373, 16
      %v635 = vrot.slane %v633, 7
      %v636 = vshll.u32 %v373, 16
      %v638 = vor.u32 %v635, %v636
      %v639 = vrot.slane %v635, 4
      %v641 = vshrl.u32 %v374, 16
      %v643 = vrot.slane %v641, 7
      %v644 = vshll.u32 %v374, 16
      %v646 = vor.u32 %v643, %v644
      %v647 = vsel %vm376, %v639, %v646
      %v648 = vrot.slane %v643, 4
      %vm697 = vcmask 1043456
      %vm698 = vmand %vm697, %vm293
      %v699 = vld [vmem:[%s241] sm:$0xf]
      %v700 = vsel %vm698, %v383, %v699
      %701 = vst [vmem:[%s241] sm:$0xf] %v700
      %702 = vst [vmem:[%s241 + $0x4] sm:$0xf] %v392
      %v703 = vld [vmem:[%s241 + $0x8] sm:$0x1]
      %v704 = vsel %vm244, %v393, %v703
      %705 = vst [vmem:[%s241 + $0x8] sm:$0x1] %v704
      %v706 = vld [vmem:[%s241 + $0xc] sm:$0xf]
      %v707 = vsel %vm698, %v400, %v706
      %708 = vst [vmem:[%s241 + $0xc] sm:$0xf] %v707
      %709 = vst [vmem:[%s241 + $0x10] sm:$0xf] %v409
      %v710 = vld [vmem:[%s241 + $0x14] sm:$0x1]
      %v711 = vsel %vm244, %v410, %v710
      %712 = vst [vmem:[%s241 + $0x14] sm:$0x1] %v711
      %v713 = vld [vmem:[%s241 + $0x18] sm:$0xf]
      %v714 = vsel %vm698, %v417, %v713
      %715 = vst [vmem:[%s241 + $0x18] sm:$0xf] %v714
      %716 = vst [vmem:[%s241 + $0x1c] sm:$0xf] %v426
      %v717 = vld [vmem:[%s241 + $0x20] sm:$0x1]
      %v718 = vsel %vm244, %v427, %v717
      %719 = vst [vmem:[%s241 + $0x20] sm:$0x1] %v718
      %v720 = vld [vmem:[%s241 + $0x24] sm:$0xf]
      %v721 = vsel %vm698, %v434, %v720
      %722 = vst [vmem:[%s241 + $0x24] sm:$0xf] %v721
      %723 = vst [vmem:[%s241 + $0x28] sm:$0xf] %v443
      %v724 = vld [vmem:[%s241 + $0x2c] sm:$0x1]
      %v725 = vsel %vm244, %v444, %v724
      %726 = vst [vmem:[%s241 + $0x2c] sm:$0x1] %v725
      %v727 = vld [vmem:[%s241 + $0x30] sm:$0xf]
      %v728 = vsel %vm698, %v451, %v727
      %729 = vst [vmem:[%s241 + $0x30] sm:$0xf] %v728
      %730 = vst [vmem:[%s241 + $0x34] sm:$0xf] %v460
      %v731 = vld [vmem:[%s241 + $0x38] sm:$0x1]
      %v732 = vsel %vm244, %v461, %v731
      %733 = vst [vmem:[%s241 + $0x38] sm:$0x1] %v732
      %v734 = vld [vmem:[%s241 + $0x3c] sm:$0xf]
      %v735 = vsel %vm698, %v468, %v734
      %736 = vst [vmem:[%s241 + $0x3c] sm:$0xf] %v735
      %737 = vst [vmem:[%s241 + $0x40] sm:$0xf] %v477
      %v738 = vld [vmem:[%s241 + $0x44] sm:$0x1]
      %v739 = vsel %vm244, %v478, %v738
      %740 = vst [vmem:[%s241 + $0x44] sm:$0x1] %v739
      %v741 = vld [vmem:[%s241 + $0x48] sm:$0xf]
      %v742 = vsel %vm698, %v485, %v741
      %743 = vst [vmem:[%s241 + $0x48] sm:$0xf] %v742
      %744 = vst [vmem:[%s241 + $0x4c] sm:$0xf] %v494
      %v745 = vld [vmem:[%s241 + $0x50] sm:$0x1]
      %v746 = vsel %vm244, %v495, %v745
      %747 = vst [vmem:[%s241 + $0x50] sm:$0x1] %v746
      %v748 = vld [vmem:[%s241 + $0x54] sm:$0xf]
      %v749 = vsel %vm698, %v502, %v748
      %750 = vst [vmem:[%s241 + $0x54] sm:$0xf] %v749
      %751 = vst [vmem:[%s241 + $0x58] sm:$0xf] %v511
      %v752 = vld [vmem:[%s241 + $0x5c] sm:$0x1]
      %v753 = vsel %vm244, %v512, %v752
      %754 = vst [vmem:[%s241 + $0x5c] sm:$0x1] %v753
      %v755 = vld [vmem:[%s241 + $0x60] sm:$0xf]
      %v756 = vsel %vm698, %v519, %v755
      %757 = vst [vmem:[%s241 + $0x60] sm:$0xf] %v756
      %758 = vst [vmem:[%s241 + $0x64] sm:$0xf] %v528
      %v759 = vld [vmem:[%s241 + $0x68] sm:$0x1]
      %v760 = vsel %vm244, %v529, %v759
      %761 = vst [vmem:[%s241 + $0x68] sm:$0x1] %v760
      %v762 = vld [vmem:[%s241 + $0x6c] sm:$0xf]
      %v763 = vsel %vm698, %v536, %v762
      %764 = vst [vmem:[%s241 + $0x6c] sm:$0xf] %v763
      %765 = vst [vmem:[%s241 + $0x70] sm:$0xf] %v545
      %v766 = vld [vmem:[%s241 + $0x74] sm:$0x1]
      %v767 = vsel %vm244, %v546, %v766
      %768 = vst [vmem:[%s241 + $0x74] sm:$0x1] %v767
      %v769 = vld [vmem:[%s241 + $0x78] sm:$0xf]
      %v770 = vsel %vm698, %v553, %v769
      %771 = vst [vmem:[%s241 + $0x78] sm:$0xf] %v770
      %772 = vst [vmem:[%s241 + $0x7c] sm:$0xf] %v562
      %v773 = vld [vmem:[%s241 + $0x80] sm:$0x1]
      %v774 = vsel %vm244, %v563, %v773
      %775 = vst [vmem:[%s241 + $0x80] sm:$0x1] %v774
      %v776 = vld [vmem:[%s241 + $0x84] sm:$0xf]
      %v777 = vsel %vm698, %v570, %v776
      %778 = vst [vmem:[%s241 + $0x84] sm:$0xf] %v777
      %779 = vst [vmem:[%s241 + $0x88] sm:$0xf] %v579
      %v780 = vld [vmem:[%s241 + $0x8c] sm:$0x1]
      %v781 = vsel %vm244, %v580, %v780
      %782 = vst [vmem:[%s241 + $0x8c] sm:$0x1] %v781
      %v783 = vld [vmem:[%s241 + $0x90] sm:$0xf]
      %v784 = vsel %vm698, %v587, %v783
      %785 = vst [vmem:[%s241 + $0x90] sm:$0xf] %v784
      %786 = vst [vmem:[%s241 + $0x94] sm:$0xf] %v596
      %v787 = vld [vmem:[%s241 + $0x98] sm:$0x1]
      %v788 = vsel %vm244, %v597, %v787
      %789 = vst [vmem:[%s241 + $0x98] sm:$0x1] %v788
      %v790 = vld [vmem:[%s241 + $0x9c] sm:$0xf]
      %v791 = vsel %vm698, %v604, %v790
      %792 = vst [vmem:[%s241 + $0x9c] sm:$0xf] %v791
      %793 = vst [vmem:[%s241 + $0xa0] sm:$0xf] %v613
      %v794 = vld [vmem:[%s241 + $0xa4] sm:$0x1]
      %v795 = vsel %vm244, %v614, %v794
      %796 = vst [vmem:[%s241 + $0xa4] sm:$0x1] %v795
      %v797 = vld [vmem:[%s241 + $0xa8] sm:$0xf]
      %v798 = vsel %vm698, %v621, %v797
      %799 = vst [vmem:[%s241 + $0xa8] sm:$0xf] %v798
      %800 = vst [vmem:[%s241 + $0xac] sm:$0xf] %v630
      %v801 = vld [vmem:[%s241 + $0xb0] sm:$0x1]
      %v802 = vsel %vm244, %v631, %v801
      %803 = vst [vmem:[%s241 + $0xb0] sm:$0x1] %v802
      %v804 = vld [vmem:[%s241 + $0xb4] sm:$0xf]
      %v805 = vsel %vm698, %v638, %v804
      %806 = vst [vmem:[%s241 + $0xb4] sm:$0xf] %v805
      %807 = vst [vmem:[%s241 + $0xb8] sm:$0xf] %v647
      %v808 = vld [vmem:[%s241 + $0xbc] sm:$0x1]
      %v809 = vsel %vm244, %v648, %v808
      %810 = vst [vmem:[%s241 + $0xbc] sm:$0x1] %v809
      %v811 = vld [vmem:[%s221] sm:$0x7]
      %v812 = vld [vmem:[%s221 + $0x4] sm:$0x7]
      %v813 = vld [vmem:[%s221 + $0x8] sm:$0x7]
      %v814 = vld [vmem:[%s224] sm:$0x1]
      %v815 = vld [vmem:[#allocation2] sm:$0xf]
      %v816 = vld [vmem:[#allocation2 + $0x4] sm:$0xf]
      %v817 = vld [vmem:[#allocation2 + $0x8] sm:$0x1]
      %v818 = vld [vmem:[#allocation2 + $0xc] sm:$0xf]
      %v819 = vld [vmem:[#allocation2 + $0x10] sm:$0xf]
      %v820 = vld [vmem:[#allocation2 + $0x14] sm:$0x1]
      %v821 = vld [vmem:[#allocation2 + $0x18] sm:$0xf]
      %v822 = vld [vmem:[#allocation2 + $0x1c] sm:$0xf]
      %v823 = vld [vmem:[#allocation2 + $0x20] sm:$0x1]
      %v824 = vld [vmem:[#allocation2 + $0x24] sm:$0xf]
      %v825 = vld [vmem:[#allocation2 + $0x28] sm:$0xf]
      %v826 = vld [vmem:[#allocation2 + $0x2c] sm:$0x1]
      %v827 = vld [vmem:[#allocation2 + $0x30] sm:$0xf]
      %v828 = vld [vmem:[#allocation2 + $0x34] sm:$0xf]
      %v829 = vld [vmem:[#allocation2 + $0x38] sm:$0x1]
      %v830 = vld [vmem:[#allocation2 + $0x3c] sm:$0xf]
      %v831 = vld [vmem:[#allocation2 + $0x40] sm:$0xf]
      %v832 = vld [vmem:[#allocation2 + $0x44] sm:$0x1]
      %v833 = vld [vmem:[#allocation2 + $0x48] sm:$0xf]
      %v834 = vld [vmem:[#allocation2 + $0x4c] sm:$0xf]
      %v835 = vld [vmem:[#allocation2 + $0x50] sm:$0x1]
      %v836 = vld [vmem:[#allocation2 + $0x54] sm:$0xf]
      %v837 = vld [vmem:[#allocation2 + $0x58] sm:$0xf]
      %v838 = vld [vmem:[#allocation2 + $0x5c] sm:$0x1]
      %v839 = vunpack.c.l.bf16 %v815
      %v840 = vunpack.c.l.bf16 %v816
      %v841 = vunpack.c.l.bf16 %v817
      %v842 = vunpack.c.l.bf16 %v818
      %v843 = vunpack.c.l.bf16 %v819
      %v844 = vunpack.c.l.bf16 %v820
      %v845 = vunpack.c.l.bf16 %v821
      %v846 = vunpack.c.l.bf16 %v822
      %v847 = vunpack.c.l.bf16 %v823
      %v848 = vunpack.c.l.bf16 %v824
      %v849 = vunpack.c.l.bf16 %v825
      %v850 = vunpack.c.l.bf16 %v826
      %v851 = vunpack.c.l.bf16 %v827
      %v852 = vunpack.c.l.bf16 %v828
      %v853 = vunpack.c.l.bf16 %v829
      %v854 = vunpack.c.l.bf16 %v830
      %v855 = vunpack.c.l.bf16 %v831
      %v856 = vunpack.c.l.bf16 %v832
      %v857 = vunpack.c.l.bf16 %v833
      %v858 = vunpack.c.l.bf16 %v834
      %v859 = vunpack.c.l.bf16 %v835
      %v860 = vunpack.c.l.bf16 %v836
      %v861 = vunpack.c.l.bf16 %v837
      %v862 = vunpack.c.l.bf16 %v838
      %v863 = vlaneseq
      %v864 = vshrl.u32 %v863, 7
      %v865 = vsub.s32 0, %v864
      %v866 = vrot.slane %v811, %v865
      %v867 = vmul.f32 %v839, %v866
      %v868 = vmul.f32 %v840, %v866
      %v869 = vmul.f32 %v842, %v866
      %v870 = vmul.f32 %v843, %v866
      %v871 = vmul.f32 %v845, %v866
      %v872 = vmul.f32 %v846, %v866
      %v873 = vmul.f32 %v848, %v866
      %v874 = vmul.f32 %v849, %v866
      %v875 = vmul.f32 %v851, %v866
      %v876 = vmul.f32 %v852, %v866
      %v877 = vmul.f32 %v854, %v866
      %v878 = vmul.f32 %v855, %v866
      %v879 = vmul.f32 %v857, %v866
      %v880 = vmul.f32 %v858, %v866
      %v881 = vmul.f32 %v860, %v866
      %v882 = vmul.f32 %v861, %v866
      %v883 = vlaneseq
      %v884 = vshrl.u32 %v883, 7
      %v885 = vsub.s32 1, %v884
      %v886 = vrot.slane %v811, %v885
      %v887 = vmul.f32 %v839, %v886
      %v888 = vmul.f32 %v840, %v886
      %v889 = vmul.f32 %v841, %v886
      %v890 = vmul.f32 %v842, %v886
      %v891 = vmul.f32 %v843, %v886
      %v892 = vmul.f32 %v844, %v886
      %v893 = vmul.f32 %v845, %v886
      %v894 = vmul.f32 %v846, %v886
      %v895 = vmul.f32 %v847, %v886
      %v896 = vmul.f32 %v848, %v886
      %v897 = vmul.f32 %v849, %v886
      %v898 = vmul.f32 %v850, %v886
      %v899 = vmul.f32 %v851, %v886
      %v900 = vmul.f32 %v852, %v886
      %v901 = vmul.f32 %v853, %v886
      %v902 = vmul.f32 %v854, %v886
      %v903 = vmul.f32 %v855, %v886
      %v904 = vmul.f32 %v856, %v886
      %v905 = vmul.f32 %v857, %v886
      %v906 = vmul.f32 %v858, %v886
      %v907 = vmul.f32 %v859, %v886
      %v908 = vmul.f32 %v860, %v886
      %v909 = vmul.f32 %v861, %v886
      %v910 = vmul.f32 %v862, %v886
      %vm935 = vcmask 1046528
      %v936 = vrot.slane %v887, 1
      %v937 = vrot.slane %v888, 1
      %v938 = vsel %vm935, %v936, %v937
      %v939 = vrot.slane %v889, 1
      %v940 = vsel %vm935, %v937, %v939
      %v941 = vrot.slane %v890, 1
      %v942 = vrot.slane %v891, 1
      %v943 = vsel %vm935, %v941, %v942
      %v944 = vrot.slane %v892, 1
      %v945 = vsel %vm935, %v942, %v944
      %v946 = vrot.slane %v893, 1
      %v947 = vrot.slane %v894, 1
      %v948 = vsel %vm935, %v946, %v947
      %v949 = vrot.slane %v895, 1
      %v950 = vsel %vm935, %v947, %v949
      %v951 = vrot.slane %v896, 1
      %v952 = vrot.slane %v897, 1
      %v953 = vsel %vm935, %v951, %v952
      %v954 = vrot.slane %v898, 1
      %v955 = vsel %vm935, %v952, %v954
      %v956 = vrot.slane %v899, 1
      %v957 = vrot.slane %v900, 1
      %v958 = vsel %vm935, %v956, %v957
      %v959 = vrot.slane %v901, 1
      %v960 = vsel %vm935, %v957, %v959
      %v961 = vrot.slane %v902, 1
      %v962 = vrot.slane %v903, 1
      %v963 = vsel %vm935, %v961, %v962
      %v964 = vrot.slane %v904, 1
      %v965 = vsel %vm935, %v962, %v964
      %v966 = vrot.slane %v905, 1
      %v967 = vrot.slane %v906, 1
      %v968 = vsel %vm935, %v966, %v967
      %v969 = vrot.slane %v907, 1
      %v970 = vsel %vm935, %v967, %v969
      %v971 = vrot.slane %v908, 1
      %v972 = vrot.slane %v909, 1
      %v973 = vsel %vm935, %v971, %v972
      %v974 = vrot.slane %v910, 1
      %v975 = vsel %vm935, %v972, %v974
      %v992 = vadd.f32 %v867, %v938
      %v993 = vadd.f32 %v868, %v940
      %v994 = vadd.f32 %v869, %v943
      %v995 = vadd.f32 %v870, %v945
      %v996 = vadd.f32 %v871, %v948
      %v997 = vadd.f32 %v872, %v950
      %v998 = vadd.f32 %v873, %v953
      %v999 = vadd.f32 %v874, %v955
      %v1000 = vadd.f32 %v875, %v958
      %v1001 = vadd.f32 %v876, %v960
      %v1002 = vadd.f32 %v877, %v963
      %v1003 = vadd.f32 %v878, %v965
      %v1004 = vadd.f32 %v879, %v968
      %v1005 = vadd.f32 %v880, %v970
      %v1006 = vadd.f32 %v881, %v973
      %v1007 = vadd.f32 %v882, %v975
      %v1008 = vlaneseq
      %v1009 = vshrl.u32 %v1008, 7
      %v1010 = vsub.s32 2, %v1009
      %v1011 = vrot.slane %v811, %v1010
      %v1012 = vmul.f32 %v839, %v1011
      %v1013 = vmul.f32 %v840, %v1011
      %v1014 = vmul.f32 %v841, %v1011
      %v1015 = vmul.f32 %v842, %v1011
      %v1016 = vmul.f32 %v843, %v1011
      %v1017 = vmul.f32 %v844, %v1011
      %v1018 = vmul.f32 %v845, %v1011
      %v1019 = vmul.f32 %v846, %v1011
      %v1020 = vmul.f32 %v847, %v1011
      %v1021 = vmul.f32 %v848, %v1011
      %v1022 = vmul.f32 %v849, %v1011
      %v1023 = vmul.f32 %v850, %v1011
      %v1024 = vmul.f32 %v851, %v1011
      %v1025 = vmul.f32 %v852, %v1011
      %v1026 = vmul.f32 %v853, %v1011
      %v1027 = vmul.f32 %v854, %v1011
      %v1028 = vmul.f32 %v855, %v1011
      %v1029 = vmul.f32 %v856, %v1011
      %v1030 = vmul.f32 %v857, %v1011
      %v1031 = vmul.f32 %v858, %v1011
      %v1032 = vmul.f32 %v859, %v1011
      %v1033 = vmul.f32 %v860, %v1011
      %v1034 = vmul.f32 %v861, %v1011
      %v1035 = vmul.f32 %v862, %v1011
      %vm1060 = vcmask 1045504
      %v1061 = vrot.slane %v1012, 2
      %v1062 = vrot.slane %v1013, 2
      %v1063 = vsel %vm1060, %v1061, %v1062
      %v1064 = vrot.slane %v1014, 2
      %v1065 = vsel %vm1060, %v1062, %v1064
      %v1066 = vrot.slane %v1015, 2
      %v1067 = vrot.slane %v1016, 2
      %v1068 = vsel %vm1060, %v1066, %v1067
      %v1069 = vrot.slane %v1017, 2
      %v1070 = vsel %vm1060, %v1067, %v1069
      %v1071 = vrot.slane %v1018, 2
      %v1072 = vrot.slane %v1019, 2
      %v1073 = vsel %vm1060, %v1071, %v1072
      %v1074 = vrot.slane %v1020, 2
      %v1075 = vsel %vm1060, %v1072, %v1074
      %v1076 = vrot.slane %v1021, 2
      %v1077 = vrot.slane %v1022, 2
      %v1078 = vsel %vm1060, %v1076, %v1077
      %v1079 = vrot.slane %v1023, 2
      %v1080 = vsel %vm1060, %v1077, %v1079
      %v1081 = vrot.slane %v1024, 2
      %v1082 = vrot.slane %v1025, 2
      %v1083 = vsel %vm1060, %v1081, %v1082
      %v1084 = vrot.slane %v1026, 2
      %v1085 = vsel %vm1060, %v1082, %v1084
      %v1086 = vrot.slane %v1027, 2
      %v1087 = vrot.slane %v1028, 2
      %v1088 = vsel %vm1060, %v1086, %v1087
      %v1089 = vrot.slane %v1029, 2
      %v1090 = vsel %vm1060, %v1087, %v1089
      %v1091 = vrot.slane %v1030, 2
      %v1092 = vrot.slane %v1031, 2
      %v1093 = vsel %vm1060, %v1091, %v1092
      %v1094 = vrot.slane %v1032, 2
      %v1095 = vsel %vm1060, %v1092, %v1094
      %v1096 = vrot.slane %v1033, 2
      %v1097 = vrot.slane %v1034, 2
      %v1098 = vsel %vm1060, %v1096, %v1097
      %v1099 = vrot.slane %v1035, 2
      %v1100 = vsel %vm1060, %v1097, %v1099
      %v1117 = vadd.f32 %v992, %v1063
      %v1118 = vadd.f32 %v993, %v1065
      %v1119 = vadd.f32 %v994, %v1068
      %v1120 = vadd.f32 %v995, %v1070
      %v1121 = vadd.f32 %v996, %v1073
      %v1122 = vadd.f32 %v997, %v1075
      %v1123 = vadd.f32 %v998, %v1078
      %v1124 = vadd.f32 %v999, %v1080
      %v1125 = vadd.f32 %v1000, %v1083
      %v1126 = vadd.f32 %v1001, %v1085
      %v1127 = vadd.f32 %v1002, %v1088
      %v1128 = vadd.f32 %v1003, %v1090
      %v1129 = vadd.f32 %v1004, %v1093
      %v1130 = vadd.f32 %v1005, %v1095
      %v1131 = vadd.f32 %v1006, %v1098
      %v1132 = vadd.f32 %v1007, %v1100
      %v1133 = vld [vmem:[%s241] sm:$0xf]
      %v1134 = vld [vmem:[%s241 + $0x4] sm:$0xf]
      %v1135 = vld [vmem:[%s241 + $0x8] sm:$0x1]
      %v1136 = vld [vmem:[%s241 + $0xc] sm:$0xf]
      %v1137 = vld [vmem:[%s241 + $0x10] sm:$0xf]
      %v1138 = vld [vmem:[%s241 + $0x14] sm:$0x1]
      %v1139 = vld [vmem:[%s241 + $0x18] sm:$0xf]
      %v1140 = vld [vmem:[%s241 + $0x1c] sm:$0xf]
      %v1141 = vld [vmem:[%s241 + $0x20] sm:$0x1]
      %v1142 = vld [vmem:[%s241 + $0x24] sm:$0xf]
      %v1143 = vld [vmem:[%s241 + $0x28] sm:$0xf]
      %v1144 = vld [vmem:[%s241 + $0x2c] sm:$0x1]
      %v1145 = vld [vmem:[%s241 + $0x30] sm:$0xf]
      %v1146 = vld [vmem:[%s241 + $0x34] sm:$0xf]
      %v1147 = vld [vmem:[%s241 + $0x38] sm:$0x1]
      %v1148 = vld [vmem:[%s241 + $0x3c] sm:$0xf]
      %v1149 = vld [vmem:[%s241 + $0x40] sm:$0xf]
      %v1150 = vld [vmem:[%s241 + $0x44] sm:$0x1]
      %v1151 = vld [vmem:[%s241 + $0x48] sm:$0xf]
      %v1152 = vld [vmem:[%s241 + $0x4c] sm:$0xf]
      %v1153 = vld [vmem:[%s241 + $0x50] sm:$0x1]
      %v1154 = vld [vmem:[%s241 + $0x54] sm:$0xf]
      %v1155 = vld [vmem:[%s241 + $0x58] sm:$0xf]
      %v1156 = vld [vmem:[%s241 + $0x5c] sm:$0x1]
      %v1157 = vunpack.c.l.bf16 %v1133
      %v1158 = vunpack.c.l.bf16 %v1134
      %v1159 = vunpack.c.l.bf16 %v1135
      %v1160 = vunpack.c.l.bf16 %v1136
      %v1161 = vunpack.c.l.bf16 %v1137
      %v1162 = vunpack.c.l.bf16 %v1138
      %v1163 = vunpack.c.l.bf16 %v1139
      %v1164 = vunpack.c.l.bf16 %v1140
      %v1165 = vunpack.c.l.bf16 %v1141
      %v1166 = vunpack.c.l.bf16 %v1142
      %v1167 = vunpack.c.l.bf16 %v1143
      %v1168 = vunpack.c.l.bf16 %v1144
      %v1169 = vunpack.c.l.bf16 %v1145
      %v1170 = vunpack.c.l.bf16 %v1146
      %v1171 = vunpack.c.l.bf16 %v1147
      %v1172 = vunpack.c.l.bf16 %v1148
      %v1173 = vunpack.c.l.bf16 %v1149
      %v1174 = vunpack.c.l.bf16 %v1150
      %v1175 = vunpack.c.l.bf16 %v1151
      %v1176 = vunpack.c.l.bf16 %v1152
      %v1177 = vunpack.c.l.bf16 %v1153
      %v1178 = vunpack.c.l.bf16 %v1154
      %v1179 = vunpack.c.l.bf16 %v1155
      %v1180 = vunpack.c.l.bf16 %v1156
      %v1181 = vlaneseq
      %v1182 = vshrl.u32 %v1181, 7
      %v1183 = vsub.s32 0, %v1182
      %v1184 = vrot.slane %v812, %v1183
      %v1185 = vmul.f32 %v1157, %v1184
      %v1186 = vmul.f32 %v1158, %v1184
      %v1187 = vmul.f32 %v1160, %v1184
      %v1188 = vmul.f32 %v1161, %v1184
      %v1189 = vmul.f32 %v1163, %v1184
      %v1190 = vmul.f32 %v1164, %v1184
      %v1191 = vmul.f32 %v1166, %v1184
      %v1192 = vmul.f32 %v1167, %v1184
      %v1193 = vmul.f32 %v1169, %v1184
      %v1194 = vmul.f32 %v1170, %v1184
      %v1195 = vmul.f32 %v1172, %v1184
      %v1196 = vmul.f32 %v1173, %v1184
      %v1197 = vmul.f32 %v1175, %v1184
      %v1198 = vmul.f32 %v1176, %v1184
      %v1199 = vmul.f32 %v1178, %v1184
      %v1200 = vmul.f32 %v1179, %v1184
      %v1201 = vadd.f32 %v1117, %v1185
      %v1202 = vadd.f32 %v1118, %v1186
      %v1203 = vadd.f32 %v1119, %v1187
      %v1204 = vadd.f32 %v1120, %v1188
      %v1205 = vadd.f32 %v1121, %v1189
      %v1206 = vadd.f32 %v1122, %v1190
      %v1207 = vadd.f32 %v1123, %v1191
      %v1208 = vadd.f32 %v1124, %v1192
      %v1209 = vadd.f32 %v1125, %v1193
      %v1210 = vadd.f32 %v1126, %v1194
      %v1211 = vadd.f32 %v1127, %v1195
      %v1212 = vadd.f32 %v1128, %v1196
      %v1213 = vadd.f32 %v1129, %v1197
      %v1214 = vadd.f32 %v1130, %v1198
      %v1215 = vadd.f32 %v1131, %v1199
      %v1216 = vadd.f32 %v1132, %v1200
      %v1217 = vlaneseq
      %v1218 = vshrl.u32 %v1217, 7
      %v1219 = vsub.s32 1, %v1218
      %v1220 = vrot.slane %v812, %v1219
      %v1221 = vmul.f32 %v1157, %v1220
      %v1222 = vmul.f32 %v1158, %v1220
      %v1223 = vmul.f32 %v1159, %v1220
      %v1224 = vmul.f32 %v1160, %v1220
      %v1225 = vmul.f32 %v1161, %v1220
      %v1226 = vmul.f32 %v1162, %v1220
      %v1227 = vmul.f32 %v1163, %v1220
      %v1228 = vmul.f32 %v1164, %v1220
      %v1229 = vmul.f32 %v1165, %v1220
      %v1230 = vmul.f32 %v1166, %v1220
      %v1231 = vmul.f32 %v1167, %v1220
      %v1232 = vmul.f32 %v1168, %v1220
      %v1233 = vmul.f32 %v1169, %v1220
      %v1234 = vmul.f32 %v1170, %v1220
      %v1235 = vmul.f32 %v1171, %v1220
      %v1236 = vmul.f32 %v1172, %v1220
      %v1237 = vmul.f32 %v1173, %v1220
      %v1238 = vmul.f32 %v1174, %v1220
      %v1239 = vmul.f32 %v1175, %v1220
      %v1240 = vmul.f32 %v1176, %v1220
      %v1241 = vmul.f32 %v1177, %v1220
      %v1242 = vmul.f32 %v1178, %v1220
      %v1243 = vmul.f32 %v1179, %v1220
      %v1244 = vmul.f32 %v1180, %v1220
      %v1269 = vrot.slane %v1221, 1
      %v1270 = vrot.slane %v1222, 1
      %v1271 = vsel %vm935, %v1269, %v1270
      %v1272 = vrot.slane %v1223, 1
      %v1273 = vsel %vm935, %v1270, %v1272
      %v1274 = vrot.slane %v1224, 1
      %v1275 = vrot.slane %v1225, 1
      %v1276 = vsel %vm935, %v1274, %v1275
      %v1277 = vrot.slane %v1226, 1
      %v1278 = vsel %vm935, %v1275, %v1277
      %v1279 = vrot.slane %v1227, 1
      %v1280 = vrot.slane %v1228, 1
      %v1281 = vsel %vm935, %v1279, %v1280
      %v1282 = vrot.slane %v1229, 1
      %v1283 = vsel %vm935, %v1280, %v1282
      %v1284 = vrot.slane %v1230, 1
      %v1285 = vrot.slane %v1231, 1
      %v1286 = vsel %vm935, %v1284, %v1285
      %v1287 = vrot.slane %v1232, 1
      %v1288 = vsel %vm935, %v1285, %v1287
      %v1289 = vrot.slane %v1233, 1
      %v1290 = vrot.slane %v1234, 1
      %v1291 = vsel %vm935, %v1289, %v1290
      %v1292 = vrot.slane %v1235, 1
      %v1293 = vsel %vm935, %v1290, %v1292
      %v1294 = vrot.slane %v1236, 1
      %v1295 = vrot.slane %v1237, 1
      %v1296 = vsel %vm935, %v1294, %v1295
      %v1297 = vrot.slane %v1238, 1
      %v1298 = vsel %vm935, %v1295, %v1297
      %v1299 = vrot.slane %v1239, 1
      %v1300 = vrot.slane %v1240, 1
      %v1301 = vsel %vm935, %v1299, %v1300
      %v1302 = vrot.slane %v1241, 1
      %v1303 = vsel %vm935, %v1300, %v1302
      %v1304 = vrot.slane %v1242, 1
      %v1305 = vrot.slane %v1243, 1
      %v1306 = vsel %vm935, %v1304, %v1305
      %v1307 = vrot.slane %v1244, 1
      %v1308 = vsel %vm935, %v1305, %v1307
      %v1325 = vadd.f32 %v1201, %v1271
      %v1326 = vadd.f32 %v1202, %v1273
      %v1327 = vadd.f32 %v1203, %v1276
      %v1328 = vadd.f32 %v1204, %v1278
      %v1329 = vadd.f32 %v1205, %v1281
      %v1330 = vadd.f32 %v1206, %v1283
      %v1331 = vadd.f32 %v1207, %v1286
      %v1332 = vadd.f32 %v1208, %v1288
      %v1333 = vadd.f32 %v1209, %v1291
      %v1334 = vadd.f32 %v1210, %v1293
      %v1335 = vadd.f32 %v1211, %v1296
      %v1336 = vadd.f32 %v1212, %v1298
      %v1337 = vadd.f32 %v1213, %v1301
      %v1338 = vadd.f32 %v1214, %v1303
      %v1339 = vadd.f32 %v1215, %v1306
      %v1340 = vadd.f32 %v1216, %v1308
      %v1341 = vlaneseq
      %v1342 = vshrl.u32 %v1341, 7
      %v1343 = vsub.s32 2, %v1342
      %v1344 = vrot.slane %v812, %v1343
      %v1345 = vmul.f32 %v1157, %v1344
      %v1346 = vmul.f32 %v1158, %v1344
      %v1347 = vmul.f32 %v1159, %v1344
      %v1348 = vmul.f32 %v1160, %v1344
      %v1349 = vmul.f32 %v1161, %v1344
      %v1350 = vmul.f32 %v1162, %v1344
      %v1351 = vmul.f32 %v1163, %v1344
      %v1352 = vmul.f32 %v1164, %v1344
      %v1353 = vmul.f32 %v1165, %v1344
      %v1354 = vmul.f32 %v1166, %v1344
      %v1355 = vmul.f32 %v1167, %v1344
      %v1356 = vmul.f32 %v1168, %v1344
      %v1357 = vmul.f32 %v1169, %v1344
      %v1358 = vmul.f32 %v1170, %v1344
      %v1359 = vmul.f32 %v1171, %v1344
      %v1360 = vmul.f32 %v1172, %v1344
      %v1361 = vmul.f32 %v1173, %v1344
      %v1362 = vmul.f32 %v1174, %v1344
      %v1363 = vmul.f32 %v1175, %v1344
      %v1364 = vmul.f32 %v1176, %v1344
      %v1365 = vmul.f32 %v1177, %v1344
      %v1366 = vmul.f32 %v1178, %v1344
      %v1367 = vmul.f32 %v1179, %v1344
      %v1368 = vmul.f32 %v1180, %v1344
      %v1393 = vrot.slane %v1345, 2
      %v1394 = vrot.slane %v1346, 2
      %v1395 = vsel %vm1060, %v1393, %v1394
      %v1396 = vrot.slane %v1347, 2
      %v1397 = vsel %vm1060, %v1394, %v1396
      %v1398 = vrot.slane %v1348, 2
      %v1399 = vrot.slane %v1349, 2
      %v1400 = vsel %vm1060, %v1398, %v1399
      %v1401 = vrot.slane %v1350, 2
      %v1402 = vsel %vm1060, %v1399, %v1401
      %v1403 = vrot.slane %v1351, 2
      %v1404 = vrot.slane %v1352, 2
      %v1405 = vsel %vm1060, %v1403, %v1404
      %v1406 = vrot.slane %v1353, 2
      %v1407 = vsel %vm1060, %v1404, %v1406
      %v1408 = vrot.slane %v1354, 2
      %v1409 = vrot.slane %v1355, 2
      %v1410 = vsel %vm1060, %v1408, %v1409
      %v1411 = vrot.slane %v1356, 2
      %v1412 = vsel %vm1060, %v1409, %v1411
      %v1413 = vrot.slane %v1357, 2
      %v1414 = vrot.slane %v1358, 2
      %v1415 = vsel %vm1060, %v1413, %v1414
      %v1416 = vrot.slane %v1359, 2
      %v1417 = vsel %vm1060, %v1414, %v1416
      %v1418 = vrot.slane %v1360, 2
      %v1419 = vrot.slane %v1361, 2
      %v1420 = vsel %vm1060, %v1418, %v1419
      %v1421 = vrot.slane %v1362, 2
      %v1422 = vsel %vm1060, %v1419, %v1421
      %v1423 = vrot.slane %v1363, 2
      %v1424 = vrot.slane %v1364, 2
      %v1425 = vsel %vm1060, %v1423, %v1424
      %v1426 = vrot.slane %v1365, 2
      %v1427 = vsel %vm1060, %v1424, %v1426
      %v1428 = vrot.slane %v1366, 2
      %v1429 = vrot.slane %v1367, 2
      %v1430 = vsel %vm1060, %v1428, %v1429
      %v1431 = vrot.slane %v1368, 2
      %v1432 = vsel %vm1060, %v1429, %v1431
      %v1449 = vadd.f32 %v1325, %v1395
      %v1450 = vadd.f32 %v1326, %v1397
      %v1451 = vadd.f32 %v1327, %v1400
      %v1452 = vadd.f32 %v1328, %v1402
      %v1453 = vadd.f32 %v1329, %v1405
      %v1454 = vadd.f32 %v1330, %v1407
      %v1455 = vadd.f32 %v1331, %v1410
      %v1456 = vadd.f32 %v1332, %v1412
      %v1457 = vadd.f32 %v1333, %v1415
      %v1458 = vadd.f32 %v1334, %v1417
      %v1459 = vadd.f32 %v1335, %v1420
      %v1460 = vadd.f32 %v1336, %v1422
      %v1461 = vadd.f32 %v1337, %v1425
      %v1462 = vadd.f32 %v1338, %v1427
      %v1463 = vadd.f32 %v1339, %v1430
      %v1464 = vadd.f32 %v1340, %v1432
      %s1465 = scalar_lea.vmem [#allocation2], 24
      %v1466 = vld [vmem:[%s1465] sm:$0xf]
      %v1467 = vld [vmem:[%s1465 + $0x4] sm:$0xf]
      %v1468 = vld [vmem:[%s1465 + $0x8] sm:$0x1]
      %v1469 = vld [vmem:[%s1465 + $0xc] sm:$0xf]
      %v1470 = vld [vmem:[%s1465 + $0x10] sm:$0xf]
      %v1471 = vld [vmem:[%s1465 + $0x14] sm:$0x1]
      %v1472 = vld [vmem:[%s1465 + $0x18] sm:$0xf]
      %v1473 = vld [vmem:[%s1465 + $0x1c] sm:$0xf]
      %v1474 = vld [vmem:[%s1465 + $0x20] sm:$0x1]
      %v1475 = vld [vmem:[%s1465 + $0x24] sm:$0xf]
      %v1476 = vld [vmem:[%s1465 + $0x28] sm:$0xf]
      %v1477 = vld [vmem:[%s1465 + $0x2c] sm:$0x1]
      %v1478 = vld [vmem:[%s1465 + $0x30] sm:$0xf]
      %v1479 = vld [vmem:[%s1465 + $0x34] sm:$0xf]
      %v1480 = vld [vmem:[%s1465 + $0x38] sm:$0x1]
      %v1481 = vld [vmem:[%s1465 + $0x3c] sm:$0xf]
      %v1482 = vld [vmem:[%s1465 + $0x40] sm:$0xf]
      %v1483 = vld [vmem:[%s1465 + $0x44] sm:$0x1]
      %v1484 = vld [vmem:[%s1465 + $0x48] sm:$0xf]
      %v1485 = vld [vmem:[%s1465 + $0x4c] sm:$0xf]
      %v1486 = vld [vmem:[%s1465 + $0x50] sm:$0x1]
      %v1487 = vld [vmem:[%s1465 + $0x54] sm:$0xf]
      %v1488 = vld [vmem:[%s1465 + $0x58] sm:$0xf]
      %v1489 = vld [vmem:[%s1465 + $0x5c] sm:$0x1]
      %v1490 = vunpack.c.l.bf16 %v1466
      %v1491 = vunpack.c.l.bf16 %v1467
      %v1492 = vunpack.c.l.bf16 %v1468
      %v1493 = vunpack.c.l.bf16 %v1469
      %v1494 = vunpack.c.l.bf16 %v1470
      %v1495 = vunpack.c.l.bf16 %v1471
      %v1496 = vunpack.c.l.bf16 %v1472
      %v1497 = vunpack.c.l.bf16 %v1473
      %v1498 = vunpack.c.l.bf16 %v1474
      %v1499 = vunpack.c.l.bf16 %v1475
      %v1500 = vunpack.c.l.bf16 %v1476
      %v1501 = vunpack.c.l.bf16 %v1477
      %v1502 = vunpack.c.l.bf16 %v1478
      %v1503 = vunpack.c.l.bf16 %v1479
      %v1504 = vunpack.c.l.bf16 %v1480
      %v1505 = vunpack.c.l.bf16 %v1481
      %v1506 = vunpack.c.l.bf16 %v1482
      %v1507 = vunpack.c.l.bf16 %v1483
      %v1508 = vunpack.c.l.bf16 %v1484
      %v1509 = vunpack.c.l.bf16 %v1485
      %v1510 = vunpack.c.l.bf16 %v1486
      %v1511 = vunpack.c.l.bf16 %v1487
      %v1512 = vunpack.c.l.bf16 %v1488
      %v1513 = vunpack.c.l.bf16 %v1489
      %v1514 = vlaneseq
      %v1515 = vshrl.u32 %v1514, 7
      %v1516 = vsub.s32 0, %v1515
      %v1517 = vrot.slane %v813, %v1516
      %v1518 = vmul.f32 %v1490, %v1517
      %v1519 = vmul.f32 %v1491, %v1517
      %v1520 = vmul.f32 %v1493, %v1517
      %v1521 = vmul.f32 %v1494, %v1517
      %v1522 = vmul.f32 %v1496, %v1517
      %v1523 = vmul.f32 %v1497, %v1517
      %v1524 = vmul.f32 %v1499, %v1517
      %v1525 = vmul.f32 %v1500, %v1517
      %v1526 = vmul.f32 %v1502, %v1517
      %v1527 = vmul.f32 %v1503, %v1517
      %v1528 = vmul.f32 %v1505, %v1517
      %v1529 = vmul.f32 %v1506, %v1517
      %v1530 = vmul.f32 %v1508, %v1517
      %v1531 = vmul.f32 %v1509, %v1517
      %v1532 = vmul.f32 %v1511, %v1517
      %v1533 = vmul.f32 %v1512, %v1517
      %v1534 = vadd.f32 %v1449, %v1518
      %v1535 = vadd.f32 %v1450, %v1519
      %v1536 = vadd.f32 %v1451, %v1520
      %v1537 = vadd.f32 %v1452, %v1521
      %v1538 = vadd.f32 %v1453, %v1522
      %v1539 = vadd.f32 %v1454, %v1523
      %v1540 = vadd.f32 %v1455, %v1524
      %v1541 = vadd.f32 %v1456, %v1525
      %v1542 = vadd.f32 %v1457, %v1526
      %v1543 = vadd.f32 %v1458, %v1527
      %v1544 = vadd.f32 %v1459, %v1528
      %v1545 = vadd.f32 %v1460, %v1529
      %v1546 = vadd.f32 %v1461, %v1530
      %v1547 = vadd.f32 %v1462, %v1531
      %v1548 = vadd.f32 %v1463, %v1532
      %v1549 = vadd.f32 %v1464, %v1533
      %v1550 = vlaneseq
      %v1551 = vshrl.u32 %v1550, 7
      %v1552 = vsub.s32 1, %v1551
      %v1553 = vrot.slane %v813, %v1552
      %v1554 = vmul.f32 %v1490, %v1553
      %v1555 = vmul.f32 %v1491, %v1553
      %v1556 = vmul.f32 %v1492, %v1553
      %v1557 = vmul.f32 %v1493, %v1553
      %v1558 = vmul.f32 %v1494, %v1553
      %v1559 = vmul.f32 %v1495, %v1553
      %v1560 = vmul.f32 %v1496, %v1553
      %v1561 = vmul.f32 %v1497, %v1553
      %v1562 = vmul.f32 %v1498, %v1553
      %v1563 = vmul.f32 %v1499, %v1553
      %v1564 = vmul.f32 %v1500, %v1553
      %v1565 = vmul.f32 %v1501, %v1553
      %v1566 = vmul.f32 %v1502, %v1553
      %v1567 = vmul.f32 %v1503, %v1553
      %v1568 = vmul.f32 %v1504, %v1553
      %v1569 = vmul.f32 %v1505, %v1553
      %v1570 = vmul.f32 %v1506, %v1553
      %v1571 = vmul.f32 %v1507, %v1553
      %v1572 = vmul.f32 %v1508, %v1553
      %v1573 = vmul.f32 %v1509, %v1553
      %v1574 = vmul.f32 %v1510, %v1553
      %v1575 = vmul.f32 %v1511, %v1553
      %v1576 = vmul.f32 %v1512, %v1553
      %v1577 = vmul.f32 %v1513, %v1553
      %v1602 = vrot.slane %v1554, 1
      %v1603 = vrot.slane %v1555, 1
      %v1604 = vsel %vm935, %v1602, %v1603
      %v1605 = vrot.slane %v1556, 1
      %v1606 = vsel %vm935, %v1603, %v1605
      %v1607 = vrot.slane %v1557, 1
      %v1608 = vrot.slane %v1558, 1
      %v1609 = vsel %vm935, %v1607, %v1608
      %v1610 = vrot.slane %v1559, 1
      %v1611 = vsel %vm935, %v1608, %v1610
      %v1612 = vrot.slane %v1560, 1
      %v1613 = vrot.slane %v1561, 1
      %v1614 = vsel %vm935, %v1612, %v1613
      %v1615 = vrot.slane %v1562, 1
      %v1616 = vsel %vm935, %v1613, %v1615
      %v1617 = vrot.slane %v1563, 1
      %v1618 = vrot.slane %v1564, 1
      %v1619 = vsel %vm935, %v1617, %v1618
      %v1620 = vrot.slane %v1565, 1
      %v1621 = vsel %vm935, %v1618, %v1620
      %v1622 = vrot.slane %v1566, 1
      %v1623 = vrot.slane %v1567, 1
      %v1624 = vsel %vm935, %v1622, %v1623
      %v1625 = vrot.slane %v1568, 1
      %v1626 = vsel %vm935, %v1623, %v1625
      %v1627 = vrot.slane %v1569, 1
      %v1628 = vrot.slane %v1570, 1
      %v1629 = vsel %vm935, %v1627, %v1628
      %v1630 = vrot.slane %v1571, 1
      %v1631 = vsel %vm935, %v1628, %v1630
      %v1632 = vrot.slane %v1572, 1
      %v1633 = vrot.slane %v1573, 1
      %v1634 = vsel %vm935, %v1632, %v1633
      %v1635 = vrot.slane %v1574, 1
      %v1636 = vsel %vm935, %v1633, %v1635
      %v1637 = vrot.slane %v1575, 1
      %v1638 = vrot.slane %v1576, 1
      %v1639 = vsel %vm935, %v1637, %v1638
      %v1640 = vrot.slane %v1577, 1
      %v1641 = vsel %vm935, %v1638, %v1640
      %v1658 = vadd.f32 %v1534, %v1604
      %v1659 = vadd.f32 %v1535, %v1606
      %v1660 = vadd.f32 %v1536, %v1609
      %v1661 = vadd.f32 %v1537, %v1611
      %v1662 = vadd.f32 %v1538, %v1614
      %v1663 = vadd.f32 %v1539, %v1616
      %v1664 = vadd.f32 %v1540, %v1619
      %v1665 = vadd.f32 %v1541, %v1621
      %v1666 = vadd.f32 %v1542, %v1624
      %v1667 = vadd.f32 %v1543, %v1626
      %v1668 = vadd.f32 %v1544, %v1629
      %v1669 = vadd.f32 %v1545, %v1631
      %v1670 = vadd.f32 %v1546, %v1634
      %v1671 = vadd.f32 %v1547, %v1636
      %v1672 = vadd.f32 %v1548, %v1639
      %v1673 = vadd.f32 %v1549, %v1641
      %v1674 = vlaneseq
      %v1675 = vshrl.u32 %v1674, 7
      %v1676 = vsub.s32 2, %v1675
      %v1677 = vrot.slane %v813, %v1676
      %v1678 = vmul.f32 %v1490, %v1677
      %v1679 = vmul.f32 %v1491, %v1677
      %v1680 = vmul.f32 %v1492, %v1677
      %v1681 = vmul.f32 %v1493, %v1677
      %v1682 = vmul.f32 %v1494, %v1677
      %v1683 = vmul.f32 %v1495, %v1677
      %v1684 = vmul.f32 %v1496, %v1677
      %v1685 = vmul.f32 %v1497, %v1677
      %v1686 = vmul.f32 %v1498, %v1677
      %v1687 = vmul.f32 %v1499, %v1677
      %v1688 = vmul.f32 %v1500, %v1677
      %v1689 = vmul.f32 %v1501, %v1677
      %v1690 = vmul.f32 %v1502, %v1677
      %v1691 = vmul.f32 %v1503, %v1677
      %v1692 = vmul.f32 %v1504, %v1677
      %v1693 = vmul.f32 %v1505, %v1677
      %v1694 = vmul.f32 %v1506, %v1677
      %v1695 = vmul.f32 %v1507, %v1677
      %v1696 = vmul.f32 %v1508, %v1677
      %v1697 = vmul.f32 %v1509, %v1677
      %v1698 = vmul.f32 %v1510, %v1677
      %v1699 = vmul.f32 %v1511, %v1677
      %v1700 = vmul.f32 %v1512, %v1677
      %v1701 = vmul.f32 %v1513, %v1677
      %v1726 = vrot.slane %v1678, 2
      %v1727 = vrot.slane %v1679, 2
      %v1728 = vsel %vm1060, %v1726, %v1727
      %v1729 = vrot.slane %v1680, 2
      %v1730 = vsel %vm1060, %v1727, %v1729
      %v1731 = vrot.slane %v1681, 2
      %v1732 = vrot.slane %v1682, 2
      %v1733 = vsel %vm1060, %v1731, %v1732
      %v1734 = vrot.slane %v1683, 2
      %v1735 = vsel %vm1060, %v1732, %v1734
      %v1736 = vrot.slane %v1684, 2
      %v1737 = vrot.slane %v1685, 2
      %v1738 = vsel %vm1060, %v1736, %v1737
      %v1739 = vrot.slane %v1686, 2
      %v1740 = vsel %vm1060, %v1737, %v1739
      %v1741 = vrot.slane %v1687, 2
      %v1742 = vrot.slane %v1688, 2
      %v1743 = vsel %vm1060, %v1741, %v1742
      %v1744 = vrot.slane %v1689, 2
      %v1745 = vsel %vm1060, %v1742, %v1744
      %v1746 = vrot.slane %v1690, 2
      %v1747 = vrot.slane %v1691, 2
      %v1748 = vsel %vm1060, %v1746, %v1747
      %v1749 = vrot.slane %v1692, 2
      %v1750 = vsel %vm1060, %v1747, %v1749
      %v1751 = vrot.slane %v1693, 2
      %v1752 = vrot.slane %v1694, 2
      %v1753 = vsel %vm1060, %v1751, %v1752
      %v1754 = vrot.slane %v1695, 2
      %v1755 = vsel %vm1060, %v1752, %v1754
      %v1756 = vrot.slane %v1696, 2
      %v1757 = vrot.slane %v1697, 2
      %v1758 = vsel %vm1060, %v1756, %v1757
      %v1759 = vrot.slane %v1698, 2
      %v1760 = vsel %vm1060, %v1757, %v1759
      %v1761 = vrot.slane %v1699, 2
      %v1762 = vrot.slane %v1700, 2
      %v1763 = vsel %vm1060, %v1761, %v1762
      %v1764 = vrot.slane %v1701, 2
      %v1765 = vsel %vm1060, %v1762, %v1764
      %v1782 = vadd.f32 %v1658, %v1728
      %v1783 = vadd.f32 %v1659, %v1730
      %v1784 = vadd.f32 %v1660, %v1733
      %v1785 = vadd.f32 %v1661, %v1735
      %v1786 = vadd.f32 %v1662, %v1738
      %v1787 = vadd.f32 %v1663, %v1740
      %v1788 = vadd.f32 %v1664, %v1743
      %v1789 = vadd.f32 %v1665, %v1745
      %v1790 = vadd.f32 %v1666, %v1748
      %v1791 = vadd.f32 %v1667, %v1750
      %v1792 = vadd.f32 %v1668, %v1753
      %v1793 = vadd.f32 %v1669, %v1755
      %v1794 = vadd.f32 %v1670, %v1758
      %v1795 = vadd.f32 %v1671, %v1760
      %v1796 = vadd.f32 %v1672, %v1763
      %v1797 = vadd.f32 %v1673, %v1765
      %v1799 = vlaneseq
      %v1800 = vshrl.u32 %v1799, 7
      %v1801 = vsub.s32 0, %v1800
      %v1802 = vrot.slane %v814, %v1801
      %v1804 = vadd.f32 %v1782, %v1802
      %v1805 = vadd.f32 %v1783, %v1802
      %v1806 = vadd.f32 %v1784, %v1802
      %v1807 = vadd.f32 %v1785, %v1802
      %v1808 = vadd.f32 %v1786, %v1802
      %v1809 = vadd.f32 %v1787, %v1802
      %v1810 = vadd.f32 %v1788, %v1802
      %v1811 = vadd.f32 %v1789, %v1802
      %v1812 = vadd.f32 %v1790, %v1802
      %v1813 = vadd.f32 %v1791, %v1802
      %v1814 = vadd.f32 %v1792, %v1802
      %v1815 = vadd.f32 %v1793, %v1802
      %v1816 = vadd.f32 %v1794, %v1802
      %v1817 = vadd.f32 %v1795, %v1802
      %v1818 = vadd.f32 %v1796, %v1802
      %v1819 = vadd.f32 %v1797, %v1802
      %v1820 = vadd.f32 %v1804, 3.0
      %v1821 = vadd.f32 %v1805, 3.0
      %v1822 = vadd.f32 %v1806, 3.0
      %v1823 = vadd.f32 %v1807, 3.0
      %v1824 = vadd.f32 %v1808, 3.0
      %v1825 = vadd.f32 %v1809, 3.0
      %v1826 = vadd.f32 %v1810, 3.0
      %v1827 = vadd.f32 %v1811, 3.0
      %v1828 = vadd.f32 %v1812, 3.0
      %v1829 = vadd.f32 %v1813, 3.0
      %v1830 = vadd.f32 %v1814, 3.0
      %v1831 = vadd.f32 %v1815, 3.0
      %v1832 = vadd.f32 %v1816, 3.0
      %v1833 = vadd.f32 %v1817, 3.0
      %v1834 = vadd.f32 %v1818, 3.0
      %v1835 = vadd.f32 %v1819, 3.0
      %v1836 = vmax.f32 %v1820, 0.0
      %v1837 = vmax.f32 %v1821, 0.0
      %v1838 = vmax.f32 %v1822, 0.0
      %v1839 = vmax.f32 %v1823, 0.0
      %v1840 = vmax.f32 %v1824, 0.0
      %v1841 = vmax.f32 %v1825, 0.0
      %v1842 = vmax.f32 %v1826, 0.0
      %v1843 = vmax.f32 %v1827, 0.0
      %v1844 = vmax.f32 %v1828, 0.0
      %v1845 = vmax.f32 %v1829, 0.0
      %v1846 = vmax.f32 %v1830, 0.0
      %v1847 = vmax.f32 %v1831, 0.0
      %v1848 = vmax.f32 %v1832, 0.0
      %v1849 = vmax.f32 %v1833, 0.0
      %v1850 = vmax.f32 %v1834, 0.0
      %v1851 = vmax.f32 %v1835, 0.0
      %v1852 = vmin.f32 %v1836, 6.0
      %v1853 = vmin.f32 %v1837, 6.0
      %v1854 = vmin.f32 %v1838, 6.0
      %v1855 = vmin.f32 %v1839, 6.0
      %v1856 = vmin.f32 %v1840, 6.0
      %v1857 = vmin.f32 %v1841, 6.0
      %v1858 = vmin.f32 %v1842, 6.0
      %v1859 = vmin.f32 %v1843, 6.0
      %v1860 = vmin.f32 %v1844, 6.0
      %v1861 = vmin.f32 %v1845, 6.0
      %v1862 = vmin.f32 %v1846, 6.0
      %v1863 = vmin.f32 %v1847, 6.0
      %v1864 = vmin.f32 %v1848, 6.0
      %v1865 = vmin.f32 %v1849, 6.0
      %v1866 = vmin.f32 %v1850, 6.0
      %v1867 = vmin.f32 %v1851, 6.0
      %v1868 = vmul.f32 %v1804, %v1852
      %v1869 = vmul.f32 %v1805, %v1853
      %v1870 = vmul.f32 %v1806, %v1854
      %v1871 = vmul.f32 %v1807, %v1855
      %v1872 = vmul.f32 %v1808, %v1856
      %v1873 = vmul.f32 %v1809, %v1857
      %v1874 = vmul.f32 %v1810, %v1858
      %v1875 = vmul.f32 %v1811, %v1859
      %v1876 = vmul.f32 %v1812, %v1860
      %v1877 = vmul.f32 %v1813, %v1861
      %v1878 = vmul.f32 %v1814, %v1862
      %v1879 = vmul.f32 %v1815, %v1863
      %v1880 = vmul.f32 %v1816, %v1864
      %v1881 = vmul.f32 %v1817, %v1865
      %v1882 = vmul.f32 %v1818, %v1866
      %v1883 = vmul.f32 %v1819, %v1867
      %v1884 = vmul.f32 %v1868, 0.16666667
      %v1885 = vmul.f32 %v1869, 0.16666667
      %v1886 = vmul.f32 %v1870, 0.16666667
      %v1887 = vmul.f32 %v1871, 0.16666667
      %v1888 = vmul.f32 %v1872, 0.16666667
      %v1889 = vmul.f32 %v1873, 0.16666667
      %v1890 = vmul.f32 %v1874, 0.16666667
      %v1891 = vmul.f32 %v1875, 0.16666667
      %v1892 = vmul.f32 %v1876, 0.16666667
      %v1893 = vmul.f32 %v1877, 0.16666667
      %v1894 = vmul.f32 %v1878, 0.16666667
      %v1895 = vmul.f32 %v1879, 0.16666667
      %v1896 = vmul.f32 %v1880, 0.16666667
      %v1897 = vmul.f32 %v1881, 0.16666667
      %v1898 = vmul.f32 %v1882, 0.16666667
      %v1899 = vmul.f32 %v1883, 0.16666667
      %v1900 = vpack.c.bf16 %v1885, %v1884
      %v1901 = vpack.c.bf16 %v1887, %v1886
      %v1902 = vpack.c.bf16 %v1889, %v1888
      %v1903 = vpack.c.bf16 %v1891, %v1890
      %v1904 = vpack.c.bf16 %v1893, %v1892
      %v1905 = vpack.c.bf16 %v1895, %v1894
      %v1906 = vpack.c.bf16 %v1897, %v1896
      %v1907 = vpack.c.bf16 %v1899, %v1898
      %v1916 = vunpack.c.l.b16 %v1900
      %v1917 = vunpack.c.h.b16 %v1900
      %v1918 = vunpack.c.l.b16 %v1901
      %v1919 = vunpack.c.h.b16 %v1901
      %v1920 = vunpack.c.l.b16 %v1902
      %v1921 = vunpack.c.h.b16 %v1902
      %v1922 = vunpack.c.l.b16 %v1903
      %v1923 = vunpack.c.h.b16 %v1903
      %v1924 = vunpack.c.l.b16 %v1904
      %v1925 = vunpack.c.h.b16 %v1904
      %v1926 = vunpack.c.l.b16 %v1905
      %v1927 = vunpack.c.h.b16 %v1905
      %v1928 = vunpack.c.l.b16 %v1906
      %v1929 = vunpack.c.h.b16 %v1906
      %v1930 = vunpack.c.l.b16 %v1907
      %v1931 = vunpack.c.h.b16 %v1907
      %v1932 = vpack.c.b16 %v1916, %v1916
      %v1933 = vpack.c.b16 %v1917, %v1917
      %v1934 = vpack.c.b16 %v1918, %v1918
      %v1935 = vpack.c.b16 %v1919, %v1919
      %v1936 = vpack.c.b16 %v1920, %v1920
      %v1937 = vpack.c.b16 %v1921, %v1921
      %v1938 = vpack.c.b16 %v1922, %v1922
      %v1939 = vpack.c.b16 %v1923, %v1923
      %v1940 = vpack.c.b16 %v1924, %v1924
      %v1941 = vpack.c.b16 %v1925, %v1925
      %v1942 = vpack.c.b16 %v1926, %v1926
      %v1943 = vpack.c.b16 %v1927, %v1927
      %v1944 = vpack.c.b16 %v1928, %v1928
      %v1945 = vpack.c.b16 %v1929, %v1929
      %v1946 = vpack.c.b16 %v1930, %v1930
      %v1947 = vpack.c.b16 %v1931, %v1931
      %1964 = vst [vmem:[%s232] sm:$0xf] %v1932
      %1965 = vst [vmem:[%s232 + $0x4] sm:$0xf] %v1933
      %1966 = vst [vmem:[%s232 + $0x8] sm:$0xf] %v1934
      %1967 = vst [vmem:[%s232 + $0xc] sm:$0xf] %v1935
      %1968 = vst [vmem:[%s232 + $0x10] sm:$0xf] %v1936
      %1969 = vst [vmem:[%s232 + $0x14] sm:$0xf] %v1937
      %1970 = vst [vmem:[%s232 + $0x18] sm:$0xf] %v1938
      %1971 = vst [vmem:[%s232 + $0x1c] sm:$0xf] %v1939
      %1972 = vst [vmem:[%s232 + $0x20] sm:$0xf] %v1940
      %1973 = vst [vmem:[%s232 + $0x24] sm:$0xf] %v1941
      %1974 = vst [vmem:[%s232 + $0x28] sm:$0xf] %v1942
      %1975 = vst [vmem:[%s232 + $0x2c] sm:$0xf] %v1943
      %1976 = vst [vmem:[%s232 + $0x30] sm:$0xf] %v1944
      %1977 = vst [vmem:[%s232 + $0x34] sm:$0xf] %v1945
      %1978 = vst [vmem:[%s232 + $0x38] sm:$0xf] %v1946
      %1979 = vst [vmem:[%s232 + $0x3c] sm:$0xf] %v1947
      %s1980 = scalar_lea.vmem [#allocation2], 96
      %v1981 = vld [vmem:[%s1980] sm:$0xf]
      %v1982 = vld [vmem:[%s1980 + $0x4] sm:$0xf]
      %v1983 = vld [vmem:[%s1980 + $0x8] sm:$0x1]
      %v1984 = vld [vmem:[%s1980 + $0xc] sm:$0xf]
      %v1985 = vld [vmem:[%s1980 + $0x10] sm:$0xf]
      %v1986 = vld [vmem:[%s1980 + $0x14] sm:$0x1]
      %v1987 = vld [vmem:[%s1980 + $0x18] sm:$0xf]
      %v1988 = vld [vmem:[%s1980 + $0x1c] sm:$0xf]
      %v1989 = vld [vmem:[%s1980 + $0x20] sm:$0x1]
      %v1990 = vld [vmem:[%s1980 + $0x24] sm:$0xf]
      %v1991 = vld [vmem:[%s1980 + $0x28] sm:$0xf]
      %v1992 = vld [vmem:[%s1980 + $0x2c] sm:$0x1]
      %v1993 = vld [vmem:[%s1980 + $0x30] sm:$0xf]
      %v1994 = vld [vmem:[%s1980 + $0x34] sm:$0xf]
      %v1995 = vld [vmem:[%s1980 + $0x38] sm:$0x1]
      %v1996 = vld [vmem:[%s1980 + $0x3c] sm:$0xf]
      %v1997 = vld [vmem:[%s1980 + $0x40] sm:$0xf]
      %v1998 = vld [vmem:[%s1980 + $0x44] sm:$0x1]
      %v1999 = vld [vmem:[%s1980 + $0x48] sm:$0xf]
      %v2000 = vld [vmem:[%s1980 + $0x4c] sm:$0xf]
      %v2001 = vld [vmem:[%s1980 + $0x50] sm:$0x1]
      %v2002 = vld [vmem:[%s1980 + $0x54] sm:$0xf]
      %v2003 = vld [vmem:[%s1980 + $0x58] sm:$0xf]
      %v2004 = vld [vmem:[%s1980 + $0x5c] sm:$0x1]
      %v2005 = vunpack.c.l.bf16 %v1981
      %v2006 = vunpack.c.l.bf16 %v1982
      %v2007 = vunpack.c.l.bf16 %v1983
      %v2008 = vunpack.c.l.bf16 %v1984
      %v2009 = vunpack.c.l.bf16 %v1985
      %v2010 = vunpack.c.l.bf16 %v1986
      %v2011 = vunpack.c.l.bf16 %v1987
      %v2012 = vunpack.c.l.bf16 %v1988
      %v2013 = vunpack.c.l.bf16 %v1989
      %v2014 = vunpack.c.l.bf16 %v1990
      %v2015 = vunpack.c.l.bf16 %v1991
      %v2016 = vunpack.c.l.bf16 %v1992
      %v2017 = vunpack.c.l.bf16 %v1993
      %v2018 = vunpack.c.l.bf16 %v1994
      %v2019 = vunpack.c.l.bf16 %v1995
      %v2020 = vunpack.c.l.bf16 %v1996
      %v2021 = vunpack.c.l.bf16 %v1997
      %v2022 = vunpack.c.l.bf16 %v1998
      %v2023 = vunpack.c.l.bf16 %v1999
      %v2024 = vunpack.c.l.bf16 %v2000
      %v2025 = vunpack.c.l.bf16 %v2001
      %v2026 = vunpack.c.l.bf16 %v2002
      %v2027 = vunpack.c.l.bf16 %v2003
      %v2028 = vunpack.c.l.bf16 %v2004
      %v2029 = vmul.f32 %v2005, %v866
      %v2030 = vmul.f32 %v2006, %v866
      %v2031 = vmul.f32 %v2008, %v866
      %v2032 = vmul.f32 %v2009, %v866
      %v2033 = vmul.f32 %v2011, %v866
      %v2034 = vmul.f32 %v2012, %v866
      %v2035 = vmul.f32 %v2014, %v866
      %v2036 = vmul.f32 %v2015, %v866
      %v2037 = vmul.f32 %v2017, %v866
      %v2038 = vmul.f32 %v2018, %v866
      %v2039 = vmul.f32 %v2020, %v866
      %v2040 = vmul.f32 %v2021, %v866
      %v2041 = vmul.f32 %v2023, %v866
      %v2042 = vmul.f32 %v2024, %v866
      %v2043 = vmul.f32 %v2026, %v866
      %v2044 = vmul.f32 %v2027, %v866
      %v2045 = vmul.f32 %v2005, %v886
      %v2046 = vmul.f32 %v2006, %v886
      %v2047 = vmul.f32 %v2007, %v886
      %v2048 = vmul.f32 %v2008, %v886
      %v2049 = vmul.f32 %v2009, %v886
      %v2050 = vmul.f32 %v2010, %v886
      %v2051 = vmul.f32 %v2011, %v886
      %v2052 = vmul.f32 %v2012, %v886
      %v2053 = vmul.f32 %v2013, %v886
      %v2054 = vmul.f32 %v2014, %v886
      %v2055 = vmul.f32 %v2015, %v886
      %v2056 = vmul.f32 %v2016, %v886
      %v2057 = vmul.f32 %v2017, %v886
      %v2058 = vmul.f32 %v2018, %v886
      %v2059 = vmul.f32 %v2019, %v886
      %v2060 = vmul.f32 %v2020, %v886
      %v2061 = vmul.f32 %v2021, %v886
      %v2062 = vmul.f32 %v2022, %v886
      %v2063 = vmul.f32 %v2023, %v886
      %v2064 = vmul.f32 %v2024, %v886
      %v2065 = vmul.f32 %v2025, %v886
      %v2066 = vmul.f32 %v2026, %v886
      %v2067 = vmul.f32 %v2027, %v886
      %v2068 = vmul.f32 %v2028, %v886
      %v2093 = vrot.slane %v2045, 1
      %v2094 = vrot.slane %v2046, 1
      %v2095 = vsel %vm935, %v2093, %v2094
      %v2096 = vrot.slane %v2047, 1
      %v2097 = vsel %vm935, %v2094, %v2096
      %v2098 = vrot.slane %v2048, 1
      %v2099 = vrot.slane %v2049, 1
      %v2100 = vsel %vm935, %v2098, %v2099
      %v2101 = vrot.slane %v2050, 1
      %v2102 = vsel %vm935, %v2099, %v2101
      %v2103 = vrot.slane %v2051, 1
      %v2104 = vrot.slane %v2052, 1
      %v2105 = vsel %vm935, %v2103, %v2104
      %v2106 = vrot.slane %v2053, 1
      %v2107 = vsel %vm935, %v2104, %v2106
      %v2108 = vrot.slane %v2054, 1
      %v2109 = vrot.slane %v2055, 1
      %v2110 = vsel %vm935, %v2108, %v2109
      %v2111 = vrot.slane %v2056, 1
      %v2112 = vsel %vm935, %v2109, %v2111
      %v2113 = vrot.slane %v2057, 1
      %v2114 = vrot.slane %v2058, 1
      %v2115 = vsel %vm935, %v2113, %v2114
      %v2116 = vrot.slane %v2059, 1
      %v2117 = vsel %vm935, %v2114, %v2116
      %v2118 = vrot.slane %v2060, 1
      %v2119 = vrot.slane %v2061, 1
      %v2120 = vsel %vm935, %v2118, %v2119
      %v2121 = vrot.slane %v2062, 1
      %v2122 = vsel %vm935, %v2119, %v2121
      %v2123 = vrot.slane %v2063, 1
      %v2124 = vrot.slane %v2064, 1
      %v2125 = vsel %vm935, %v2123, %v2124
      %v2126 = vrot.slane %v2065, 1
      %v2127 = vsel %vm935, %v2124, %v2126
      %v2128 = vrot.slane %v2066, 1
      %v2129 = vrot.slane %v2067, 1
      %v2130 = vsel %vm935, %v2128, %v2129
      %v2131 = vrot.slane %v2068, 1
      %v2132 = vsel %vm935, %v2129, %v2131
      %v2149 = vadd.f32 %v2029, %v2095
      %v2150 = vadd.f32 %v2030, %v2097
      %v2151 = vadd.f32 %v2031, %v2100
      %v2152 = vadd.f32 %v2032, %v2102
      %v2153 = vadd.f32 %v2033, %v2105
      %v2154 = vadd.f32 %v2034, %v2107
      %v2155 = vadd.f32 %v2035, %v2110
      %v2156 = vadd.f32 %v2036, %v2112
      %v2157 = vadd.f32 %v2037, %v2115
      %v2158 = vadd.f32 %v2038, %v2117
      %v2159 = vadd.f32 %v2039, %v2120
      %v2160 = vadd.f32 %v2040, %v2122
      %v2161 = vadd.f32 %v2041, %v2125
      %v2162 = vadd.f32 %v2042, %v2127
      %v2163 = vadd.f32 %v2043, %v2130
      %v2164 = vadd.f32 %v2044, %v2132
      %v2165 = vmul.f32 %v2005, %v1011
      %v2166 = vmul.f32 %v2006, %v1011
      %v2167 = vmul.f32 %v2007, %v1011
      %v2168 = vmul.f32 %v2008, %v1011
      %v2169 = vmul.f32 %v2009, %v1011
      %v2170 = vmul.f32 %v2010, %v1011
      %v2171 = vmul.f32 %v2011, %v1011
      %v2172 = vmul.f32 %v2012, %v1011
      %v2173 = vmul.f32 %v2013, %v1011
      %v2174 = vmul.f32 %v2014, %v1011
      %v2175 = vmul.f32 %v2015, %v1011
      %v2176 = vmul.f32 %v2016, %v1011
      %v2177 = vmul.f32 %v2017, %v1011
      %v2178 = vmul.f32 %v2018, %v1011
      %v2179 = vmul.f32 %v2019, %v1011
      %v2180 = vmul.f32 %v2020, %v1011
      %v2181 = vmul.f32 %v2021, %v1011
      %v2182 = vmul.f32 %v2022, %v1011
      %v2183 = vmul.f32 %v2023, %v1011
      %v2184 = vmul.f32 %v2024, %v1011
      %v2185 = vmul.f32 %v2025, %v1011
      %v2186 = vmul.f32 %v2026, %v1011
      %v2187 = vmul.f32 %v2027, %v1011
      %v2188 = vmul.f32 %v2028, %v1011
      %v2213 = vrot.slane %v2165, 2
      %v2214 = vrot.slane %v2166, 2
      %v2215 = vsel %vm1060, %v2213, %v2214
      %v2216 = vrot.slane %v2167, 2
      %v2217 = vsel %vm1060, %v2214, %v2216
      %v2218 = vrot.slane %v2168, 2
      %v2219 = vrot.slane %v2169, 2
      %v2220 = vsel %vm1060, %v2218, %v2219
      %v2221 = vrot.slane %v2170, 2
      %v2222 = vsel %vm1060, %v2219, %v2221
      %v2223 = vrot.slane %v2171, 2
      %v2224 = vrot.slane %v2172, 2
      %v2225 = vsel %vm1060, %v2223, %v2224
      %v2226 = vrot.slane %v2173, 2
      %v2227 = vsel %vm1060, %v2224, %v2226
      %v2228 = vrot.slane %v2174, 2
      %v2229 = vrot.slane %v2175, 2
      %v2230 = vsel %vm1060, %v2228, %v2229
      %v2231 = vrot.slane %v2176, 2
      %v2232 = vsel %vm1060, %v2229, %v2231
      %v2233 = vrot.slane %v2177, 2
      %v2234 = vrot.slane %v2178, 2
      %v2235 = vsel %vm1060, %v2233, %v2234
      %v2236 = vrot.slane %v2179, 2
      %v2237 = vsel %vm1060, %v2234, %v2236
      %v2238 = vrot.slane %v2180, 2
      %v2239 = vrot.slane %v2181, 2
      %v2240 = vsel %vm1060, %v2238, %v2239
      %v2241 = vrot.slane %v2182, 2
      %v2242 = vsel %vm1060, %v2239, %v2241
      %v2243 = vrot.slane %v2183, 2
      %v2244 = vrot.slane %v2184, 2
      %v2245 = vsel %vm1060, %v2243, %v2244
      %v2246 = vrot.slane %v2185, 2
      %v2247 = vsel %vm1060, %v2244, %v2246
      %v2248 = vrot.slane %v2186, 2
      %v2249 = vrot.slane %v2187, 2
      %v2250 = vsel %vm1060, %v2248, %v2249
      %v2251 = vrot.slane %v2188, 2
      %v2252 = vsel %vm1060, %v2249, %v2251
      %v2269 = vadd.f32 %v2149, %v2215
      %v2270 = vadd.f32 %v2150, %v2217
      %v2271 = vadd.f32 %v2151, %v2220
      %v2272 = vadd.f32 %v2152, %v2222
      %v2273 = vadd.f32 %v2153, %v2225
      %v2274 = vadd.f32 %v2154, %v2227
      %v2275 = vadd.f32 %v2155, %v2230
      %v2276 = vadd.f32 %v2156, %v2232
      %v2277 = vadd.f32 %v2157, %v2235
      %v2278 = vadd.f32 %v2158, %v2237
      %v2279 = vadd.f32 %v2159, %v2240
      %v2280 = vadd.f32 %v2160, %v2242
      %v2281 = vadd.f32 %v2161, %v2245
      %v2282 = vadd.f32 %v2162, %v2247
      %v2283 = vadd.f32 %v2163, %v2250
      %v2284 = vadd.f32 %v2164, %v2252
      %s2285 = scalar_lea.vmem [#allocation2], 108
      %v2286 = vld [vmem:[%s2285] sm:$0xf]
      %v2287 = vld [vmem:[%s2285 + $0x4] sm:$0xf]
      %v2288 = vld [vmem:[%s2285 + $0x8] sm:$0x1]
      %v2289 = vld [vmem:[%s2285 + $0xc] sm:$0xf]
      %v2290 = vld [vmem:[%s2285 + $0x10] sm:$0xf]
      %v2291 = vld [vmem:[%s2285 + $0x14] sm:$0x1]
      %v2292 = vld [vmem:[%s2285 + $0x18] sm:$0xf]
      %v2293 = vld [vmem:[%s2285 + $0x1c] sm:$0xf]
      %v2294 = vld [vmem:[%s2285 + $0x20] sm:$0x1]
      %v2295 = vld [vmem:[%s2285 + $0x24] sm:$0xf]
      %v2296 = vld [vmem:[%s2285 + $0x28] sm:$0xf]
      %v2297 = vld [vmem:[%s2285 + $0x2c] sm:$0x1]
      %v2298 = vld [vmem:[%s2285 + $0x30] sm:$0xf]
      %v2299 = vld [vmem:[%s2285 + $0x34] sm:$0xf]
      %v2300 = vld [vmem:[%s2285 + $0x38] sm:$0x1]
      %v2301 = vld [vmem:[%s2285 + $0x3c] sm:$0xf]
      %v2302 = vld [vmem:[%s2285 + $0x40] sm:$0xf]
      %v2303 = vld [vmem:[%s2285 + $0x44] sm:$0x1]
      %v2304 = vld [vmem:[%s2285 + $0x48] sm:$0xf]
      %v2305 = vld [vmem:[%s2285 + $0x4c] sm:$0xf]
      %v2306 = vld [vmem:[%s2285 + $0x50] sm:$0x1]
      %v2307 = vld [vmem:[%s2285 + $0x54] sm:$0xf]
      %v2308 = vld [vmem:[%s2285 + $0x58] sm:$0xf]
      %v2309 = vld [vmem:[%s2285 + $0x5c] sm:$0x1]
      %v2310 = vunpack.c.l.bf16 %v2286
      %v2311 = vunpack.c.l.bf16 %v2287
      %v2312 = vunpack.c.l.bf16 %v2288
      %v2313 = vunpack.c.l.bf16 %v2289
      %v2314 = vunpack.c.l.bf16 %v2290
      %v2315 = vunpack.c.l.bf16 %v2291
      %v2316 = vunpack.c.l.bf16 %v2292
      %v2317 = vunpack.c.l.bf16 %v2293
      %v2318 = vunpack.c.l.bf16 %v2294
      %v2319 = vunpack.c.l.bf16 %v2295
      %v2320 = vunpack.c.l.bf16 %v2296
      %v2321 = vunpack.c.l.bf16 %v2297
      %v2322 = vunpack.c.l.bf16 %v2298
      %v2323 = vunpack.c.l.bf16 %v2299
      %v2324 = vunpack.c.l.bf16 %v2300
      %v2325 = vunpack.c.l.bf16 %v2301
      %v2326 = vunpack.c.l.bf16 %v2302
      %v2327 = vunpack.c.l.bf16 %v2303
      %v2328 = vunpack.c.l.bf16 %v2304
      %v2329 = vunpack.c.l.bf16 %v2305
      %v2330 = vunpack.c.l.bf16 %v2306
      %v2331 = vunpack.c.l.bf16 %v2307
      %v2332 = vunpack.c.l.bf16 %v2308
      %v2333 = vunpack.c.l.bf16 %v2309
      %v2334 = vmul.f32 %v2310, %v1184
      %v2335 = vmul.f32 %v2311, %v1184
      %v2336 = vmul.f32 %v2313, %v1184
      %v2337 = vmul.f32 %v2314, %v1184
      %v2338 = vmul.f32 %v2316, %v1184
      %v2339 = vmul.f32 %v2317, %v1184
      %v2340 = vmul.f32 %v2319, %v1184
      %v2341 = vmul.f32 %v2320, %v1184
      %v2342 = vmul.f32 %v2322, %v1184
      %v2343 = vmul.f32 %v2323, %v1184
      %v2344 = vmul.f32 %v2325, %v1184
      %v2345 = vmul.f32 %v2326, %v1184
      %v2346 = vmul.f32 %v2328, %v1184
      %v2347 = vmul.f32 %v2329, %v1184
      %v2348 = vmul.f32 %v2331, %v1184
      %v2349 = vmul.f32 %v2332, %v1184
      %v2350 = vadd.f32 %v2269, %v2334
      %v2351 = vadd.f32 %v2270, %v2335
      %v2352 = vadd.f32 %v2271, %v2336
      %v2353 = vadd.f32 %v2272, %v2337
      %v2354 = vadd.f32 %v2273, %v2338
      %v2355 = vadd.f32 %v2274, %v2339
      %v2356 = vadd.f32 %v2275, %v2340
      %v2357 = vadd.f32 %v2276, %v2341
      %v2358 = vadd.f32 %v2277, %v2342
      %v2359 = vadd.f32 %v2278, %v2343
      %v2360 = vadd.f32 %v2279, %v2344
      %v2361 = vadd.f32 %v2280, %v2345
      %v2362 = vadd.f32 %v2281, %v2346
      %v2363 = vadd.f32 %v2282, %v2347
      %v2364 = vadd.f32 %v2283, %v2348
      %v2365 = vadd.f32 %v2284, %v2349
      %v2366 = vmul.f32 %v2310, %v1220
      %v2367 = vmul.f32 %v2311, %v1220
      %v2368 = vmul.f32 %v2312, %v1220
      %v2369 = vmul.f32 %v2313, %v1220
      %v2370 = vmul.f32 %v2314, %v1220
      %v2371 = vmul.f32 %v2315, %v1220
      %v2372 = vmul.f32 %v2316, %v1220
      %v2373 = vmul.f32 %v2317, %v1220
      %v2374 = vmul.f32 %v2318, %v1220
      %v2375 = vmul.f32 %v2319, %v1220
      %v2376 = vmul.f32 %v2320, %v1220
      %v2377 = vmul.f32 %v2321, %v1220
      %v2378 = vmul.f32 %v2322, %v1220
      %v2379 = vmul.f32 %v2323, %v1220
      %v2380 = vmul.f32 %v2324, %v1220
      %v2381 = vmul.f32 %v2325, %v1220
      %v2382 = vmul.f32 %v2326, %v1220
      %v2383 = vmul.f32 %v2327, %v1220
      %v2384 = vmul.f32 %v2328, %v1220
      %v2385 = vmul.f32 %v2329, %v1220
      %v2386 = vmul.f32 %v2330, %v1220
      %v2387 = vmul.f32 %v2331, %v1220
      %v2388 = vmul.f32 %v2332, %v1220
      %v2389 = vmul.f32 %v2333, %v1220
      %v2414 = vrot.slane %v2366, 1
      %v2415 = vrot.slane %v2367, 1
      %v2416 = vsel %vm935, %v2414, %v2415
      %v2417 = vrot.slane %v2368, 1
      %v2418 = vsel %vm935, %v2415, %v2417
      %v2419 = vrot.slane %v2369, 1
      %v2420 = vrot.slane %v2370, 1
      %v2421 = vsel %vm935, %v2419, %v2420
      %v2422 = vrot.slane %v2371, 1
      %v2423 = vsel %vm935, %v2420, %v2422
      %v2424 = vrot.slane %v2372, 1
      %v2425 = vrot.slane %v2373, 1
      %v2426 = vsel %vm935, %v2424, %v2425
      %v2427 = vrot.slane %v2374, 1
      %v2428 = vsel %vm935, %v2425, %v2427
      %v2429 = vrot.slane %v2375, 1
      %v2430 = vrot.slane %v2376, 1
      %v2431 = vsel %vm935, %v2429, %v2430
      %v2432 = vrot.slane %v2377, 1
      %v2433 = vsel %vm935, %v2430, %v2432
      %v2434 = vrot.slane %v2378, 1
      %v2435 = vrot.slane %v2379, 1
      %v2436 = vsel %vm935, %v2434, %v2435
      %v2437 = vrot.slane %v2380, 1
      %v2438 = vsel %vm935, %v2435, %v2437
      %v2439 = vrot.slane %v2381, 1
      %v2440 = vrot.slane %v2382, 1
      %v2441 = vsel %vm935, %v2439, %v2440
      %v2442 = vrot.slane %v2383, 1
      %v2443 = vsel %vm935, %v2440, %v2442
      %v2444 = vrot.slane %v2384, 1
      %v2445 = vrot.slane %v2385, 1
      %v2446 = vsel %vm935, %v2444, %v2445
      %v2447 = vrot.slane %v2386, 1
      %v2448 = vsel %vm935, %v2445, %v2447
      %v2449 = vrot.slane %v2387, 1
      %v2450 = vrot.slane %v2388, 1
      %v2451 = vsel %vm935, %v2449, %v2450
      %v2452 = vrot.slane %v2389, 1
      %v2453 = vsel %vm935, %v2450, %v2452
      %v2470 = vadd.f32 %v2350, %v2416
      %v2471 = vadd.f32 %v2351, %v2418
      %v2472 = vadd.f32 %v2352, %v2421
      %v2473 = vadd.f32 %v2353, %v2423
      %v2474 = vadd.f32 %v2354, %v2426
      %v2475 = vadd.f32 %v2355, %v2428
      %v2476 = vadd.f32 %v2356, %v2431
      %v2477 = vadd.f32 %v2357, %v2433
      %v2478 = vadd.f32 %v2358, %v2436
      %v2479 = vadd.f32 %v2359, %v2438
      %v2480 = vadd.f32 %v2360, %v2441
      %v2481 = vadd.f32 %v2361, %v2443
      %v2482 = vadd.f32 %v2362, %v2446
      %v2483 = vadd.f32 %v2363, %v2448
      %v2484 = vadd.f32 %v2364, %v2451
      %v2485 = vadd.f32 %v2365, %v2453
      %v2486 = vmul.f32 %v2310, %v1344
      %v2487 = vmul.f32 %v2311, %v1344
      %v2488 = vmul.f32 %v2312, %v1344
      %v2489 = vmul.f32 %v2313, %v1344
      %v2490 = vmul.f32 %v2314, %v1344
      %v2491 = vmul.f32 %v2315, %v1344
      %v2492 = vmul.f32 %v2316, %v1344
      %v2493 = vmul.f32 %v2317, %v1344
      %v2494 = vmul.f32 %v2318, %v1344
      %v2495 = vmul.f32 %v2319, %v1344
      %v2496 = vmul.f32 %v2320, %v1344
      %v2497 = vmul.f32 %v2321, %v1344
      %v2498 = vmul.f32 %v2322, %v1344
      %v2499 = vmul.f32 %v2323, %v1344
      %v2500 = vmul.f32 %v2324, %v1344
      %v2501 = vmul.f32 %v2325, %v1344
      %v2502 = vmul.f32 %v2326, %v1344
      %v2503 = vmul.f32 %v2327, %v1344
      %v2504 = vmul.f32 %v2328, %v1344
      %v2505 = vmul.f32 %v2329, %v1344
      %v2506 = vmul.f32 %v2330, %v1344
      %v2507 = vmul.f32 %v2331, %v1344
      %v2508 = vmul.f32 %v2332, %v1344
      %v2509 = vmul.f32 %v2333, %v1344
      %v2534 = vrot.slane %v2486, 2
      %v2535 = vrot.slane %v2487, 2
      %v2536 = vsel %vm1060, %v2534, %v2535
      %v2537 = vrot.slane %v2488, 2
      %v2538 = vsel %vm1060, %v2535, %v2537
      %v2539 = vrot.slane %v2489, 2
      %v2540 = vrot.slane %v2490, 2
      %v2541 = vsel %vm1060, %v2539, %v2540
      %v2542 = vrot.slane %v2491, 2
      %v2543 = vsel %vm1060, %v2540, %v2542
      %v2544 = vrot.slane %v2492, 2
      %v2545 = vrot.slane %v2493, 2
      %v2546 = vsel %vm1060, %v2544, %v2545
      %v2547 = vrot.slane %v2494, 2
      %v2548 = vsel %vm1060, %v2545, %v2547
      %v2549 = vrot.slane %v2495, 2
      %v2550 = vrot.slane %v2496, 2
      %v2551 = vsel %vm1060, %v2549, %v2550
      %v2552 = vrot.slane %v2497, 2
      %v2553 = vsel %vm1060, %v2550, %v2552
      %v2554 = vrot.slane %v2498, 2
      %v2555 = vrot.slane %v2499, 2
      %v2556 = vsel %vm1060, %v2554, %v2555
      %v2557 = vrot.slane %v2500, 2
      %v2558 = vsel %vm1060, %v2555, %v2557
      %v2559 = vrot.slane %v2501, 2
      %v2560 = vrot.slane %v2502, 2
      %v2561 = vsel %vm1060, %v2559, %v2560
      %v2562 = vrot.slane %v2503, 2
      %v2563 = vsel %vm1060, %v2560, %v2562
      %v2564 = vrot.slane %v2504, 2
      %v2565 = vrot.slane %v2505, 2
      %v2566 = vsel %vm1060, %v2564, %v2565
      %v2567 = vrot.slane %v2506, 2
      %v2568 = vsel %vm1060, %v2565, %v2567
      %v2569 = vrot.slane %v2507, 2
      %v2570 = vrot.slane %v2508, 2
      %v2571 = vsel %vm1060, %v2569, %v2570
      %v2572 = vrot.slane %v2509, 2
      %v2573 = vsel %vm1060, %v2570, %v2572
      %v2590 = vadd.f32 %v2470, %v2536
      %v2591 = vadd.f32 %v2471, %v2538
      %v2592 = vadd.f32 %v2472, %v2541
      %v2593 = vadd.f32 %v2473, %v2543
      %v2594 = vadd.f32 %v2474, %v2546
      %v2595 = vadd.f32 %v2475, %v2548
      %v2596 = vadd.f32 %v2476, %v2551
      %v2597 = vadd.f32 %v2477, %v2553
      %v2598 = vadd.f32 %v2478, %v2556
      %v2599 = vadd.f32 %v2479, %v2558
      %v2600 = vadd.f32 %v2480, %v2561
      %v2601 = vadd.f32 %v2481, %v2563
      %v2602 = vadd.f32 %v2482, %v2566
      %v2603 = vadd.f32 %v2483, %v2568
      %v2604 = vadd.f32 %v2484, %v2571
      %v2605 = vadd.f32 %v2485, %v2573
      %s2606 = scalar_lea.vmem [#allocation2], 120
      %v2607 = vld [vmem:[%s2606] sm:$0xf]
      %v2608 = vld [vmem:[%s2606 + $0x4] sm:$0xf]
      %v2609 = vld [vmem:[%s2606 + $0x8] sm:$0x1]
      %v2610 = vld [vmem:[%s2606 + $0xc] sm:$0xf]
      %v2611 = vld [vmem:[%s2606 + $0x10] sm:$0xf]
      %v2612 = vld [vmem:[%s2606 + $0x14] sm:$0x1]
      %v2613 = vld [vmem:[%s2606 + $0x18] sm:$0xf]
      %v2614 = vld [vmem:[%s2606 + $0x1c] sm:$0xf]
      %v2615 = vld [vmem:[%s2606 + $0x20] sm:$0x1]
      %v2616 = vld [vmem:[%s2606 + $0x24] sm:$0xf]
      %v2617 = vld [vmem:[%s2606 + $0x28] sm:$0xf]
      %v2618 = vld [vmem:[%s2606 + $0x2c] sm:$0x1]
      %v2619 = vld [vmem:[%s2606 + $0x30] sm:$0xf]
      %v2620 = vld [vmem:[%s2606 + $0x34] sm:$0xf]
      %v2621 = vld [vmem:[%s2606 + $0x38] sm:$0x1]
      %v2622 = vld [vmem:[%s2606 + $0x3c] sm:$0xf]
      %v2623 = vld [vmem:[%s2606 + $0x40] sm:$0xf]
      %v2624 = vld [vmem:[%s2606 + $0x44] sm:$0x1]
      %v2625 = vld [vmem:[%s2606 + $0x48] sm:$0xf]
      %v2626 = vld [vmem:[%s2606 + $0x4c] sm:$0xf]
      %v2627 = vld [vmem:[%s2606 + $0x50] sm:$0x1]
      %v2628 = vld [vmem:[%s2606 + $0x54] sm:$0xf]
      %v2629 = vld [vmem:[%s2606 + $0x58] sm:$0xf]
      %v2630 = vld [vmem:[%s2606 + $0x5c] sm:$0x1]
      %v2631 = vunpack.c.l.bf16 %v2607
      %v2632 = vunpack.c.l.bf16 %v2608
      %v2633 = vunpack.c.l.bf16 %v2609
      %v2634 = vunpack.c.l.bf16 %v2610
      %v2635 = vunpack.c.l.bf16 %v2611
      %v2636 = vunpack.c.l.bf16 %v2612
      %v2637 = vunpack.c.l.bf16 %v2613
      %v2638 = vunpack.c.l.bf16 %v2614
      %v2639 = vunpack.c.l.bf16 %v2615
      %v2640 = vunpack.c.l.bf16 %v2616
      %v2641 = vunpack.c.l.bf16 %v2617
      %v2642 = vunpack.c.l.bf16 %v2618
      %v2643 = vunpack.c.l.bf16 %v2619
      %v2644 = vunpack.c.l.bf16 %v2620
      %v2645 = vunpack.c.l.bf16 %v2621
      %v2646 = vunpack.c.l.bf16 %v2622
      %v2647 = vunpack.c.l.bf16 %v2623
      %v2648 = vunpack.c.l.bf16 %v2624
      %v2649 = vunpack.c.l.bf16 %v2625
      %v2650 = vunpack.c.l.bf16 %v2626
      %v2651 = vunpack.c.l.bf16 %v2627
      %v2652 = vunpack.c.l.bf16 %v2628
      %v2653 = vunpack.c.l.bf16 %v2629
      %v2654 = vunpack.c.l.bf16 %v2630
      %v2655 = vmul.f32 %v2631, %v1517
      %v2656 = vmul.f32 %v2632, %v1517
      %v2657 = vmul.f32 %v2634, %v1517
      %v2658 = vmul.f32 %v2635, %v1517
      %v2659 = vmul.f32 %v2637, %v1517
      %v2660 = vmul.f32 %v2638, %v1517
      %v2661 = vmul.f32 %v2640, %v1517
      %v2662 = vmul.f32 %v2641, %v1517
      %v2663 = vmul.f32 %v2643, %v1517
      %v2664 = vmul.f32 %v2644, %v1517
      %v2665 = vmul.f32 %v2646, %v1517
      %v2666 = vmul.f32 %v2647, %v1517
      %v2667 = vmul.f32 %v2649, %v1517
      %v2668 = vmul.f32 %v2650, %v1517
      %v2669 = vmul.f32 %v2652, %v1517
      %v2670 = vmul.f32 %v2653, %v1517
      %v2671 = vadd.f32 %v2590, %v2655
      %v2672 = vadd.f32 %v2591, %v2656
      %v2673 = vadd.f32 %v2592, %v2657
      %v2674 = vadd.f32 %v2593, %v2658
      %v2675 = vadd.f32 %v2594, %v2659
      %v2676 = vadd.f32 %v2595, %v2660
      %v2677 = vadd.f32 %v2596, %v2661
      %v2678 = vadd.f32 %v2597, %v2662
      %v2679 = vadd.f32 %v2598, %v2663
      %v2680 = vadd.f32 %v2599, %v2664
      %v2681 = vadd.f32 %v2600, %v2665
      %v2682 = vadd.f32 %v2601, %v2666
      %v2683 = vadd.f32 %v2602, %v2667
      %v2684 = vadd.f32 %v2603, %v2668
      %v2685 = vadd.f32 %v2604, %v2669
      %v2686 = vadd.f32 %v2605, %v2670
      %v2687 = vmul.f32 %v2631, %v1553
      %v2688 = vmul.f32 %v2632, %v1553
      %v2689 = vmul.f32 %v2633, %v1553
      %v2690 = vmul.f32 %v2634, %v1553
      %v2691 = vmul.f32 %v2635, %v1553
      %v2692 = vmul.f32 %v2636, %v1553
      %v2693 = vmul.f32 %v2637, %v1553
      %v2694 = vmul.f32 %v2638, %v1553
      %v2695 = vmul.f32 %v2639, %v1553
      %v2696 = vmul.f32 %v2640, %v1553
      %v2697 = vmul.f32 %v2641, %v1553
      %v2698 = vmul.f32 %v2642, %v1553
      %v2699 = vmul.f32 %v2643, %v1553
      %v2700 = vmul.f32 %v2644, %v1553
      %v2701 = vmul.f32 %v2645, %v1553
      %v2702 = vmul.f32 %v2646, %v1553
      %v2703 = vmul.f32 %v2647, %v1553
      %v2704 = vmul.f32 %v2648, %v1553
      %v2705 = vmul.f32 %v2649, %v1553
      %v2706 = vmul.f32 %v2650, %v1553
      %v2707 = vmul.f32 %v2651, %v1553
      %v2708 = vmul.f32 %v2652, %v1553
      %v2709 = vmul.f32 %v2653, %v1553
      %v2710 = vmul.f32 %v2654, %v1553
      %v2735 = vrot.slane %v2687, 1
      %v2736 = vrot.slane %v2688, 1
      %v2737 = vsel %vm935, %v2735, %v2736
      %v2738 = vrot.slane %v2689, 1
      %v2739 = vsel %vm935, %v2736, %v2738
      %v2740 = vrot.slane %v2690, 1
      %v2741 = vrot.slane %v2691, 1
      %v2742 = vsel %vm935, %v2740, %v2741
      %v2743 = vrot.slane %v2692, 1
      %v2744 = vsel %vm935, %v2741, %v2743
      %v2745 = vrot.slane %v2693, 1
      %v2746 = vrot.slane %v2694, 1
      %v2747 = vsel %vm935, %v2745, %v2746
      %v2748 = vrot.slane %v2695, 1
      %v2749 = vsel %vm935, %v2746, %v2748
      %v2750 = vrot.slane %v2696, 1
      %v2751 = vrot.slane %v2697, 1
      %v2752 = vsel %vm935, %v2750, %v2751
      %v2753 = vrot.slane %v2698, 1
      %v2754 = vsel %vm935, %v2751, %v2753
      %v2755 = vrot.slane %v2699, 1
      %v2756 = vrot.slane %v2700, 1
      %v2757 = vsel %vm935, %v2755, %v2756
      %v2758 = vrot.slane %v2701, 1
      %v2759 = vsel %vm935, %v2756, %v2758
      %v2760 = vrot.slane %v2702, 1
      %v2761 = vrot.slane %v2703, 1
      %v2762 = vsel %vm935, %v2760, %v2761
      %v2763 = vrot.slane %v2704, 1
      %v2764 = vsel %vm935, %v2761, %v2763
      %v2765 = vrot.slane %v2705, 1
      %v2766 = vrot.slane %v2706, 1
      %v2767 = vsel %vm935, %v2765, %v2766
      %v2768 = vrot.slane %v2707, 1
      %v2769 = vsel %vm935, %v2766, %v2768
      %v2770 = vrot.slane %v2708, 1
      %v2771 = vrot.slane %v2709, 1
      %v2772 = vsel %vm935, %v2770, %v2771
      %v2773 = vrot.slane %v2710, 1
      %v2774 = vsel %vm935, %v2771, %v2773
      %v2791 = vadd.f32 %v2671, %v2737
      %v2792 = vadd.f32 %v2672, %v2739
      %v2793 = vadd.f32 %v2673, %v2742
      %v2794 = vadd.f32 %v2674, %v2744
      %v2795 = vadd.f32 %v2675, %v2747
      %v2796 = vadd.f32 %v2676, %v2749
      %v2797 = vadd.f32 %v2677, %v2752
      %v2798 = vadd.f32 %v2678, %v2754
      %v2799 = vadd.f32 %v2679, %v2757
      %v2800 = vadd.f32 %v2680, %v2759
      %v2801 = vadd.f32 %v2681, %v2762
      %v2802 = vadd.f32 %v2682, %v2764
      %v2803 = vadd.f32 %v2683, %v2767
      %v2804 = vadd.f32 %v2684, %v2769
      %v2805 = vadd.f32 %v2685, %v2772
      %v2806 = vadd.f32 %v2686, %v2774
      %v2807 = vmul.f32 %v2631, %v1677
      %v2808 = vmul.f32 %v2632, %v1677
      %v2809 = vmul.f32 %v2633, %v1677
      %v2810 = vmul.f32 %v2634, %v1677
      %v2811 = vmul.f32 %v2635, %v1677
      %v2812 = vmul.f32 %v2636, %v1677
      %v2813 = vmul.f32 %v2637, %v1677
      %v2814 = vmul.f32 %v2638, %v1677
      %v2815 = vmul.f32 %v2639, %v1677
      %v2816 = vmul.f32 %v2640, %v1677
      %v2817 = vmul.f32 %v2641, %v1677
      %v2818 = vmul.f32 %v2642, %v1677
      %v2819 = vmul.f32 %v2643, %v1677
      %v2820 = vmul.f32 %v2644, %v1677
      %v2821 = vmul.f32 %v2645, %v1677
      %v2822 = vmul.f32 %v2646, %v1677
      %v2823 = vmul.f32 %v2647, %v1677
      %v2824 = vmul.f32 %v2648, %v1677
      %v2825 = vmul.f32 %v2649, %v1677
      %v2826 = vmul.f32 %v2650, %v1677
      %v2827 = vmul.f32 %v2651, %v1677
      %v2828 = vmul.f32 %v2652, %v1677
      %v2829 = vmul.f32 %v2653, %v1677
      %v2830 = vmul.f32 %v2654, %v1677
      %v2855 = vrot.slane %v2807, 2
      %v2856 = vrot.slane %v2808, 2
      %v2857 = vsel %vm1060, %v2855, %v2856
      %v2858 = vrot.slane %v2809, 2
      %v2859 = vsel %vm1060, %v2856, %v2858
      %v2860 = vrot.slane %v2810, 2
      %v2861 = vrot.slane %v2811, 2
      %v2862 = vsel %vm1060, %v2860, %v2861
      %v2863 = vrot.slane %v2812, 2
      %v2864 = vsel %vm1060, %v2861, %v2863
      %v2865 = vrot.slane %v2813, 2
      %v2866 = vrot.slane %v2814, 2
      %v2867 = vsel %vm1060, %v2865, %v2866
      %v2868 = vrot.slane %v2815, 2
      %v2869 = vsel %vm1060, %v2866, %v2868
      %v2870 = vrot.slane %v2816, 2
      %v2871 = vrot.slane %v2817, 2
      %v2872 = vsel %vm1060, %v2870, %v2871
      %v2873 = vrot.slane %v2818, 2
      %v2874 = vsel %vm1060, %v2871, %v2873
      %v2875 = vrot.slane %v2819, 2
      %v2876 = vrot.slane %v2820, 2
      %v2877 = vsel %vm1060, %v2875, %v2876
      %v2878 = vrot.slane %v2821, 2
      %v2879 = vsel %vm1060, %v2876, %v2878
      %v2880 = vrot.slane %v2822, 2
      %v2881 = vrot.slane %v2823, 2
      %v2882 = vsel %vm1060, %v2880, %v2881
      %v2883 = vrot.slane %v2824, 2
      %v2884 = vsel %vm1060, %v2881, %v2883
      %v2885 = vrot.slane %v2825, 2
      %v2886 = vrot.slane %v2826, 2
      %v2887 = vsel %vm1060, %v2885, %v2886
      %v2888 = vrot.slane %v2827, 2
      %v2889 = vsel %vm1060, %v2886, %v2888
      %v2890 = vrot.slane %v2828, 2
      %v2891 = vrot.slane %v2829, 2
      %v2892 = vsel %vm1060, %v2890, %v2891
      %v2893 = vrot.slane %v2830, 2
      %v2894 = vsel %vm1060, %v2891, %v2893
      %v2911 = vadd.f32 %v2791, %v2857
      %v2912 = vadd.f32 %v2792, %v2859
      %v2913 = vadd.f32 %v2793, %v2862
      %v2914 = vadd.f32 %v2794, %v2864
      %v2915 = vadd.f32 %v2795, %v2867
      %v2916 = vadd.f32 %v2796, %v2869
      %v2917 = vadd.f32 %v2797, %v2872
      %v2918 = vadd.f32 %v2798, %v2874
      %v2919 = vadd.f32 %v2799, %v2877
      %v2920 = vadd.f32 %v2800, %v2879
      %v2921 = vadd.f32 %v2801, %v2882
      %v2922 = vadd.f32 %v2802, %v2884
      %v2923 = vadd.f32 %v2803, %v2887
      %v2924 = vadd.f32 %v2804, %v2889
      %v2925 = vadd.f32 %v2805, %v2892
      %v2926 = vadd.f32 %v2806, %v2894
      %v2927 = vadd.f32 %v2911, %v1802
      %v2928 = vadd.f32 %v2912, %v1802
      %v2929 = vadd.f32 %v2913, %v1802
      %v2930 = vadd.f32 %v2914, %v1802
      %v2931 = vadd.f32 %v2915, %v1802
      %v2932 = vadd.f32 %v2916, %v1802
      %v2933 = vadd.f32 %v2917, %v1802
      %v2934 = vadd.f32 %v2918, %v1802
      %v2935 = vadd.f32 %v2919, %v1802
      %v2936 = vadd.f32 %v2920, %v1802
      %v2937 = vadd.f32 %v2921, %v1802
      %v2938 = vadd.f32 %v2922, %v1802
      %v2939 = vadd.f32 %v2923, %v1802
      %v2940 = vadd.f32 %v2924, %v1802
      %v2941 = vadd.f32 %v2925, %v1802
      %v2942 = vadd.f32 %v2926, %v1802
      %v2943 = vadd.f32 %v2927, 3.0
      %v2944 = vadd.f32 %v2928, 3.0
      %v2945 = vadd.f32 %v2929, 3.0
      %v2946 = vadd.f32 %v2930, 3.0
      %v2947 = vadd.f32 %v2931, 3.0
      %v2948 = vadd.f32 %v2932, 3.0
      %v2949 = vadd.f32 %v2933, 3.0
      %v2950 = vadd.f32 %v2934, 3.0
      %v2951 = vadd.f32 %v2935, 3.0
      %v2952 = vadd.f32 %v2936, 3.0
      %v2953 = vadd.f32 %v2937, 3.0
      %v2954 = vadd.f32 %v2938, 3.0
      %v2955 = vadd.f32 %v2939, 3.0
      %v2956 = vadd.f32 %v2940, 3.0
      %v2957 = vadd.f32 %v2941, 3.0
      %v2958 = vadd.f32 %v2942, 3.0
      %v2959 = vmax.f32 %v2943, 0.0
      %v2960 = vmax.f32 %v2944, 0.0
      %v2961 = vmax.f32 %v2945, 0.0
      %v2962 = vmax.f32 %v2946, 0.0
      %v2963 = vmax.f32 %v2947, 0.0
      %v2964 = vmax.f32 %v2948, 0.0
      %v2965 = vmax.f32 %v2949, 0.0
      %v2966 = vmax.f32 %v2950, 0.0
      %v2967 = vmax.f32 %v2951, 0.0
      %v2968 = vmax.f32 %v2952, 0.0
      %v2969 = vmax.f32 %v2953, 0.0
      %v2970 = vmax.f32 %v2954, 0.0
      %v2971 = vmax.f32 %v2955, 0.0
      %v2972 = vmax.f32 %v2956, 0.0
      %v2973 = vmax.f32 %v2957, 0.0
      %v2974 = vmax.f32 %v2958, 0.0
      %v2975 = vmin.f32 %v2959, 6.0
      %v2976 = vmin.f32 %v2960, 6.0
      %v2977 = vmin.f32 %v2961, 6.0
      %v2978 = vmin.f32 %v2962, 6.0
      %v2979 = vmin.f32 %v2963, 6.0
      %v2980 = vmin.f32 %v2964, 6.0
      %v2981 = vmin.f32 %v2965, 6.0
      %v2982 = vmin.f32 %v2966, 6.0
      %v2983 = vmin.f32 %v2967, 6.0
      %v2984 = vmin.f32 %v2968, 6.0
      %v2985 = vmin.f32 %v2969, 6.0
      %v2986 = vmin.f32 %v2970, 6.0
      %v2987 = vmin.f32 %v2971, 6.0
      %v2988 = vmin.f32 %v2972, 6.0
      %v2989 = vmin.f32 %v2973, 6.0
      %v2990 = vmin.f32 %v2974, 6.0
      %v2991 = vmul.f32 %v2927, %v2975
      %v2992 = vmul.f32 %v2928, %v2976
      %v2993 = vmul.f32 %v2929, %v2977
      %v2994 = vmul.f32 %v2930, %v2978
      %v2995 = vmul.f32 %v2931, %v2979
      %v2996 = vmul.f32 %v2932, %v2980
      %v2997 = vmul.f32 %v2933, %v2981
      %v2998 = vmul.f32 %v2934, %v2982
      %v2999 = vmul.f32 %v2935, %v2983
      %v3000 = vmul.f32 %v2936, %v2984
      %v3001 = vmul.f32 %v2937, %v2985
      %v3002 = vmul.f32 %v2938, %v2986
      %v3003 = vmul.f32 %v2939, %v2987
      %v3004 = vmul.f32 %v2940, %v2988
      %v3005 = vmul.f32 %v2941, %v2989
      %v3006 = vmul.f32 %v2942, %v2990
      %v3007 = vmul.f32 %v2991, 0.16666667
      %v3008 = vmul.f32 %v2992, 0.16666667
      %v3009 = vmul.f32 %v2993, 0.16666667
      %v3010 = vmul.f32 %v2994, 0.16666667
      %v3011 = vmul.f32 %v2995, 0.16666667
      %v3012 = vmul.f32 %v2996, 0.16666667
      %v3013 = vmul.f32 %v2997, 0.16666667
      %v3014 = vmul.f32 %v2998, 0.16666667
      %v3015 = vmul.f32 %v2999, 0.16666667
      %v3016 = vmul.f32 %v3000, 0.16666667
      %v3017 = vmul.f32 %v3001, 0.16666667
      %v3018 = vmul.f32 %v3002, 0.16666667
      %v3019 = vmul.f32 %v3003, 0.16666667
      %v3020 = vmul.f32 %v3004, 0.16666667
      %v3021 = vmul.f32 %v3005, 0.16666667
      %v3022 = vmul.f32 %v3006, 0.16666667
      %v3023 = vpack.c.bf16 %v3008, %v3007
      %v3024 = vpack.c.bf16 %v3010, %v3009
      %v3025 = vpack.c.bf16 %v3012, %v3011
      %v3026 = vpack.c.bf16 %v3014, %v3013
      %v3027 = vpack.c.bf16 %v3016, %v3015
      %v3028 = vpack.c.bf16 %v3018, %v3017
      %v3029 = vpack.c.bf16 %v3020, %v3019
      %v3030 = vpack.c.bf16 %v3022, %v3021
      %v3039 = vunpack.c.l.b16 %v3023
      %v3040 = vunpack.c.h.b16 %v3023
      %v3041 = vunpack.c.l.b16 %v3024
      %v3042 = vunpack.c.h.b16 %v3024
      %v3043 = vunpack.c.l.b16 %v3025
      %v3044 = vunpack.c.h.b16 %v3025
      %v3045 = vunpack.c.l.b16 %v3026
      %v3046 = vunpack.c.h.b16 %v3026
      %v3047 = vunpack.c.l.b16 %v3027
      %v3048 = vunpack.c.h.b16 %v3027
      %v3049 = vunpack.c.l.b16 %v3028
      %v3050 = vunpack.c.h.b16 %v3028
      %v3051 = vunpack.c.l.b16 %v3029
      %v3052 = vunpack.c.h.b16 %v3029
      %v3053 = vunpack.c.l.b16 %v3030
      %v3054 = vunpack.c.h.b16 %v3030
      %v3055 = vpack.c.b16 %v3039, %v3039
      %v3056 = vpack.c.b16 %v3040, %v3040
      %v3057 = vpack.c.b16 %v3041, %v3041
      %v3058 = vpack.c.b16 %v3042, %v3042
      %v3059 = vpack.c.b16 %v3043, %v3043
      %v3060 = vpack.c.b16 %v3044, %v3044
      %v3061 = vpack.c.b16 %v3045, %v3045
      %v3062 = vpack.c.b16 %v3046, %v3046
      %v3063 = vpack.c.b16 %v3047, %v3047
      %v3064 = vpack.c.b16 %v3048, %v3048
      %v3065 = vpack.c.b16 %v3049, %v3049
      %v3066 = vpack.c.b16 %v3050, %v3050
      %v3067 = vpack.c.b16 %v3051, %v3051
      %v3068 = vpack.c.b16 %v3052, %v3052
      %v3069 = vpack.c.b16 %v3053, %v3053
      %v3070 = vpack.c.b16 %v3054, %v3054
      %s3087 = scalar_lea.vmem %s232, 64
      %3088 = vst [vmem:[%s3087] sm:$0xf] %v3055
      %3089 = vst [vmem:[%s3087 + $0x4] sm:$0xf] %v3056
      %3090 = vst [vmem:[%s3087 + $0x8] sm:$0xf] %v3057
      %3091 = vst [vmem:[%s3087 + $0xc] sm:$0xf] %v3058
      %3092 = vst [vmem:[%s3087 + $0x10] sm:$0xf] %v3059
      %3093 = vst [vmem:[%s3087 + $0x14] sm:$0xf] %v3060
      %3094 = vst [vmem:[%s3087 + $0x18] sm:$0xf] %v3061
      %3095 = vst [vmem:[%s3087 + $0x1c] sm:$0xf] %v3062
      %3096 = vst [vmem:[%s3087 + $0x20] sm:$0xf] %v3063
      %3097 = vst [vmem:[%s3087 + $0x24] sm:$0xf] %v3064
      %3098 = vst [vmem:[%s3087 + $0x28] sm:$0xf] %v3065
      %3099 = vst [vmem:[%s3087 + $0x2c] sm:$0xf] %v3066
      %3100 = vst [vmem:[%s3087 + $0x30] sm:$0xf] %v3067
      %3101 = vst [vmem:[%s3087 + $0x34] sm:$0xf] %v3068
      %3102 = vst [vmem:[%s3087 + $0x38] sm:$0xf] %v3069
      %3103 = vst [vmem:[%s3087 + $0x3c] sm:$0xf] %v3070
      %p3104 = scmp.lt.s32.totalorder %s18, 1
      %s3105 = scalar_select %p3104, %s18, 1
      %p3106 = scmp.lt.s32.totalorder %s19, 0
      %s3107 = scalar_select %p3106, %s19, 0
      %s3108 = smul.addr %s3105, 32
      %s3109 = sadd.s32 %s3107, %s3108
      %s3110 = smul.addr %s3109, 4
      %s3111 = scalar_lea.vmem %s3, %s3110
      // Predicated region
      $region33: #{block_forward.5} parent=31 // pred_check
        %p3112 = pneg %p126
      $region34: #{block_forward.5} parent=31 // pred_check_branch
        %3114 = sbr.rel (%p3112) target = $region36
      $region35: #{block_forward.5} parent=31 // pred_region
        _
      $region36: #{block_forward.5} parent=31 // pred_fallthru
        _
    $region32: #{block_forward.5} parent=5 // pred_fallthru
      _
    %p3115 = scmp.le.s32.totalorder 2, %s9
    // Predicated region
    $region37: #{block_forward.5} parent=5 // pred_check
      %p3116 = pneg %p3115
    $region38: #{block_forward.5} parent=5 // pred_check_branch
      %3118 = sbr.rel (%p3116) target = $region40
    $region39: #{block_forward.5} parent=5 // pred_region
      %s3119 = ssub.s32 %s9, 2
      // Predicated region
      $region41: #{block_forward.5} parent=39 // pred_check
        %p3120 = pneg %p132
      $region42: #{block_forward.5} parent=39 // pred_check_branch
        %3122 = sbr.rel (%p3120) target = $region44
      $region43: #{block_forward.5} parent=39 // pred_region
        %p3123 = scmp.lt.s32.totalorder %s20, 1
        %s3124 = scalar_select %p3123, %s20, 1
        %p3125 = scmp.lt.s32.totalorder %s21, 0
        %s3126 = scalar_select %p3125, %s21, 0
        %s3127 = smul.addr %s3124, 32
        %s3128 = sadd.s32 %s3126, %s3127
        %s3129 = smul.addr %s3128, 4
        %s3130 = scalar_lea.vmem %s3, %s3129
      $region44: #{block_forward.5} parent=39 // pred_fallthru
        _
    $region40: #{block_forward.5} parent=5 // pred_fallthru
      _
  $region6: #{block_forward.5} parent=0 // loop_footer
    %s13 = sadd.s32 1, %s9
  $region7: #{block_forward.5} parent=0 // loop_footer_branch
    %8 = sbr.rel target = $region3
  $region8: #{block_forward.5} parent=0 // loop_exit
    _

</llo_original>
